<compile_context>
chip_gen: v6e
topology: v6e:2x2x1
jax: 0.10.0
libtpu: 0.0.40
codegen_flags: <defaults>
</compile_context>

<pallas_src>
import functools

import jax
import jax.numpy as jnp
from jax import lax
from jax.experimental import pallas as pl
from jax.experimental.pallas import tpu as pltpu


EPS = 1e-5
LANE = 128          # TPU lane width: channel dims are padded to a multiple of this
VMEM_LIMIT = 32 * 1024 * 1024   # safe on v5e/v6e/v7x; per-step working set is ~1 MiB


def _round_up(v, m):
    return (v + m - 1) // m * m


# --------------------------------------------------------------------------
# Kernel 1: 3x3 conv (pad=1) over one (batch, row-tile) block
#           + optional fused (previous-stage) BN affine + ReLU on the input
#           + per-tile partial BN statistics (sum, sum of squares) per channel
# --------------------------------------------------------------------------
def _conv_stats_kernel(x_hbm, w_ref, scale_ref, shift_ref,      # inputs
                       out_ref, stats_ref,                      # outputs
                       xrows, sems,                             # scratch
                       *, apply_input_act):
    _, th, w_img, cpo = out_ref.shape
    cpi = xrows.shape[-1]

    n = pl.program_id(0)
    j = pl.program_id(1)
    num_j = pl.num_programs(1)
    row0 = pl.multiple_of(j * th, th)

    # ---- gather the (th+2)-row halo window into VMEM (rows only; the W
    #      zero-padding is added at the value level below).  All DMA windows
    #      offset only the leading (untiled) axis.
    core = pltpu.make_async_copy(x_hbm.at[n, pl.ds(row0, th)],
                                 xrows.at[pl.ds(1, th)], sems.at[0])
    core.start()

    @pl.when(j > 0)
    def _():
        cp = pltpu.make_async_copy(x_hbm.at[n, pl.ds(row0 - 1, 1)],
                                   xrows.at[pl.ds(0, 1)], sems.at[1])
        cp.start()
        cp.wait()

    @pl.when(j == 0)
    def _():
        xrows[pl.ds(0, 1)] = jnp.zeros((1, w_img, cpi), jnp.float32)

    @pl.when(j < num_j - 1)
    def _():
        cp = pltpu.make_async_copy(x_hbm.at[n, pl.ds(row0 + th, 1)],
                                   xrows.at[pl.ds(th + 1, 1)], sems.at[2])
        cp.start()
        cp.wait()

    @pl.when(j == num_j - 1)
    def _():
        xrows[pl.ds(th + 1, 1)] = jnp.zeros((1, w_img, cpi), jnp.float32)

    core.wait()
    # TODO(synk): double-buffer the halo-window DMAs across grid steps to hide
    # the copy latency behind the matmuls (currently synchronous per step).

    x = xrows[...]                                    # (th+2, W, cpi) f32

    if apply_input_act:
        # Fused BN affine + ReLU of the previous stage, applied on load.
        x = jnp.maximum(x * scale_ref[...] + shift_ref[...], 0.0)
        # Image-boundary padding rows must remain exactly zero after the affine.
        r = lax.broadcasted_iota(jnp.int32, (th + 2, 1, 1), 0)
        ok = ((r >= 1) | (j > 0)) & ((r <= th) | (j < num_j - 1))
        x = jnp.where(ok, x, 0.0)

    # bf16 for the MXU; f32 accumulation below keeps BN numerics safe.
    xb = x.astype(jnp.bfloat16)
    zcol = jnp.zeros((th + 2, 1, cpi), jnp.bfloat16)
    xb = jnp.concatenate([zcol, xb, zcol], axis=1)    # W zero-pad: (th+2, W+2, cpi)

    # Fold the 3 dy taps onto the contraction (lane) axis: K = 3*cpi.
    xcat = jnp.concatenate([xb[0:th], xb[1:th + 1], xb[2:th + 2]], axis=-1)

    acc = jnp.zeros((th, w_img, cpo), jnp.float32)
    for dx in range(3):                               # 3 matmuls instead of 9
        acc = acc + lax.dot_general(
            xcat[:, dx:dx + w_img, :], w_ref[dx],
            dimension_numbers=(((2,), (0,)), ((), ())),
            preferred_element_type=jnp.float32)

    out_ref[0] = acc.astype(out_ref.dtype)

    # Partial BN statistics for this tile (per channel, f32).
    s = jnp.sum(acc, axis=(0, 1), keepdims=True)          # (1, 1, cpo)
    ss = jnp.sum(acc * acc, axis=(0, 1), keepdims=True)   # (1, 1, cpo)
    stats_ref[...] = jnp.concatenate([s, ss], axis=1).reshape(1, 1, 2, cpo)


def _conv_stats(x_nhwc, w_fold, in_scale, in_shift, cpo, th, apply_input_act):
    """Gridded conv pass: returns (raw conv output, per-tile partial stats)."""
    N, H, W, cpi = x_nhwc.shape
    num_j = H // th

    kernel = functools.partial(_conv_stats_kernel,
                               apply_input_act=apply_input_act)
    cost = pl.CostEstimate(
        flops=2 * N * H * W * 9 * cpi * cpo,
        transcendentals=0,
        bytes_accessed=N * H * W * cpi * 4 + N * H * W * cpo * 4
                       + 3 * 3 * cpi * cpo * 2)

    conv_out, stats = pl.pallas_call(
        kernel,
        out_shape=(jax.ShapeDtypeStruct((N, H, W, cpo), jnp.float32),
                   jax.ShapeDtypeStruct((N, num_j, 2, cpo), jnp.float32)),
        grid=(N, num_j),
        in_specs=[
            pl.BlockSpec(memory_space=pl.ANY),                          # x in HBM
            pl.BlockSpec((3, 3 * cpi, cpo), lambda n, j: (0, 0, 0)),    # folded weights
            pl.BlockSpec((1, cpi), lambda n, j: (0, 0)),                # input scale
            pl.BlockSpec((1, cpi), lambda n, j: (0, 0)),                # input shift
        ],
        out_specs=(
            pl.BlockSpec((1, th, W, cpo), lambda n, j: (n, j, 0, 0)),
            pl.BlockSpec((1, 1, 2, cpo), lambda n, j: (n, j, 0, 0)),
        ),
        scratch_shapes=[
            pltpu.VMEM((th + 2, W, cpi), jnp.float32),   # halo-row window
            pltpu.SemaphoreType.DMA((3,)),
        ],
        compiler_params=pltpu.CompilerParams(
            dimension_semantics=("parallel", "parallel"),
            vmem_limit_bytes=VMEM_LIMIT),
        cost_estimate=cost,
    )(x_nhwc, w_fold, in_scale, in_shift)
    return conv_out, stats


# --------------------------------------------------------------------------
# Kernel 2: elementwise BN affine + ReLU (used for the final stage output)
# --------------------------------------------------------------------------
def _bn_relu_kernel(x_ref, scale_ref, shift_ref, o_ref):
    y = x_ref[...] * scale_ref[...] + shift_ref[...]
    o_ref[...] = jnp.maximum(y, 0.0).astype(o_ref.dtype)


def _bn_relu(x, scale, shift, th):
    N, H, W, cpo = x.shape
    return pl.pallas_call(
        _bn_relu_kernel,
        out_shape=jax.ShapeDtypeStruct((N, H, W, cpo), jnp.float32),
        grid=(N, H // th),
        in_specs=[pl.BlockSpec((1, th, W, cpo), lambda n, j: (n, j, 0, 0)),
                  pl.BlockSpec((1, cpo), lambda n, j: (0, 0)),
                  pl.BlockSpec((1, cpo), lambda n, j: (0, 0))],
        out_specs=pl.BlockSpec((1, th, W, cpo), lambda n, j: (n, j, 0, 0)),
        compiler_params=pltpu.CompilerParams(
            dimension_semantics=("parallel", "parallel"),
            vmem_limit_bytes=VMEM_LIMIT),
    )(x, scale, shift)


# --------------------------------------------------------------------------
# Parameter / weight plumbing
# --------------------------------------------------------------------------
def _fold_weights(w_hwio, cpi, cpo):
    """(3,3,Cin,Cout) -> (3[dx], 3*cpi, cpo), dy folded into the contraction."""
    kh, kw, ci, co = w_hwio.shape
    w_pad = jnp.zeros((kh, kw, cpi, cpo), jnp.float32)
    w_pad = w_pad.at[:, :, :ci, :co].set(w_hwio.astype(jnp.float32))
    w_fold = jnp.transpose(w_pad, (1, 0, 2, 3)).reshape(kw, kh * cpi, cpo)
    return w_fold.astype(jnp.bfloat16)


def _pad_vec(v, c):
    return jnp.pad(v.astype(jnp.float32), (0, c - v.shape[0]))


def _moments(stats, count):
    """stats: (N, num_tiles, 2, Cpad) partial (sum, sumsq) -> (mean, var)."""
    s = jnp.sum(stats[:, :, 0, :], axis=(0, 1))
    ss = jnp.sum(stats[:, :, 1, :], axis=(0, 1))
    mean = s / count
    var = jnp.maximum(ss / count - mean * mean, 0.0)       # biased variance
    return mean, var


def _bn_affine(mean, var, gamma_pad, beta_pad, cpo):
    scale = gamma_pad * lax.rsqrt(var + EPS)
    shift = beta_pad - mean * scale
    return scale.reshape(1, cpo), shift.reshape(1, cpo)


def init_unet_block_params(key, in_channels, out_channels):
    """Deterministic synthetic parameters (shapes follow nn.Conv2d/BatchNorm2d)."""
    k1, k2, k3, k4 = jax.random.split(key, 4)
    scale1 = 1.0 / jnp.sqrt(in_channels * 9.0)
    scale2 = 1.0 / jnp.sqrt(out_channels * 9.0)
    return {
        "w1": jax.random.normal(k1, (3, 3, in_channels, out_channels)) * scale1,
        "b1": jax.random.normal(k2, (out_channels,)) * scale1,
        "gamma1": jnp.ones((out_channels,)),
        "beta1": jnp.zeros((out_channels,)),
        "w2": jax.random.normal(k3, (3, 3, out_channels, out_channels)) * scale2,
        "b2": jax.random.normal(k4, (out_channels,)) * scale2,
        "gamma2": jnp.ones((out_channels,)),
        "beta2": jnp.zeros((out_channels,)),
    }


# --------------------------------------------------------------------------
# Forward pass (public interface NCHW, matching PyTorch)
# --------------------------------------------------------------------------
@jax.jit
def unet_block_forward(x_nchw, params):
    N, Cin, H, W = x_nchw.shape
    Cout = params["w1"].shape[-1]
    Cpi = _round_up(Cin, LANE)
    Cpo = _round_up(Cout, LANE)
    TH = 8 if H % 8 == 0 else H          # row-tile height (H must be divisible)

    # NCHW -> NHWC, channels zero-padded to the lane width (input only; the
    # stage-1 -> stage-2 intermediate is produced lane-dense by the kernel).
    x = jnp.transpose(x_nchw, (0, 2, 3, 1)).astype(jnp.float32)
    x = jnp.pad(x, ((0, 0), (0, 0), (0, 0), (0, Cpi - Cin)))

    w1f = _fold_weights(params["w1"], Cpi, Cpo)
    w2f = _fold_weights(params["w2"], Cpo, Cpo)
    gamma1, beta1 = _pad_vec(params["gamma1"], Cpo), _pad_vec(params["beta1"], Cpo)
    gamma2, beta2 = _pad_vec(params["gamma2"], Cpo), _pad_vec(params["beta2"], Cpo)

    ident_scale = jnp.ones((1, Cpi), jnp.float32)
    ident_shift = jnp.zeros((1, Cpi), jnp.float32)
    count = float(N * H * W)

    # Stage 1: conv1 + partial stats.  (Conv bias is dropped: training-mode BN
    # subtracts the batch mean, which cancels it exactly.)
    conv1, st1 = _conv_stats(x, w1f, ident_scale, ident_shift, Cpo, TH, False)
    mean1, var1 = _moments(st1, count)
    scale1, shift1 = _bn_affine(mean1, var1, gamma1, beta1, Cpo)

    # Stage 2: BN1 + ReLU1 fused into the conv2 input load; conv2 + stats.
    conv2, st2 = _conv_stats(conv1, w2f, scale1, shift1, Cpo, TH, True)
    mean2, var2 = _moments(st2, count)
    scale2, shift2 = _bn_affine(mean2, var2, gamma2, beta2, Cpo)

    # Final BN2 + ReLU2 (elementwise kernel), then back to NCHW.
    y = _bn_relu(conv2, scale2, shift2, TH)
    y = y[..., :Cout]
    return jnp.transpose(y, (0, 3, 1, 2))


# ----------------------- pure-JAX reference (for checking) -----------------------
def _ref_stage(x_nhwc, w_hwio, b, gamma, beta):
    y = lax.conv_general_dilated(
        x_nhwc, w_hwio, window_strides=(1, 1), padding="SAME",
        dimension_numbers=("NHWC", "HWIO", "NHWC"))
    y = y + b
    mean = jnp.mean(y, axis=(0, 1, 2), keepdims=True)
    var = jnp.mean((y - mean) ** 2, axis=(0, 1, 2), keepdims=True)
    y = (y - mean) * lax.rsqrt(var + EPS) * gamma + beta
    return jnp.maximum(y, 0.0)


def unet_block_reference(x_nchw, params):
    x = jnp.transpose(x_nchw, (0, 2, 3, 1)).astype(jnp.float32)
    x = _ref_stage(x, params["w1"], params["b1"], params["gamma1"], params["beta1"])
    x = _ref_stage(x, params["w2"], params["b2"], params["gamma2"], params["beta2"])
    return jnp.transpose(x, (0, 3, 1, 2))


if __name__ == "__main__":
    key = jax.random.PRNGKey(0)
    k_x, k_p = jax.random.split(key)

    N, Cin, Cout, H, W = 2, 4, 8, 16, 16
    x = jax.random.normal(k_x, (N, Cin, H, W), dtype=jnp.float32)
    params = init_unet_block_params(k_p, Cin, Cout)

    out = jax.block_until_ready(unet_block_forward(x, params))
    ref = unet_block_reference(x, params)

    assert out.shape == (N, Cout, H, W)
    # bf16 MXU inputs with f32 accumulation -> tolerance a bit looser than pure f32.
    assert jnp.allclose(out, ref, rtol=5e-2, atol=5e-2), "mismatch vs reference"

    print("KERNEL_OK")
</pallas_src>

<mosaic_0001>
module attributes {stable_mosaic.version = 11 : i64} {
  func.func @_bn_relu_kernel(%arg0: i32, %arg1: i32, %arg2: memref<1x8x16x128xf32, #tpu.memory_space<vmem>>, %arg3: memref<1x128xf32, #tpu.memory_space<vmem>>, %arg4: memref<1x128xf32, #tpu.memory_space<vmem>>, %arg5: memref<1x8x16x128xf32, #tpu.memory_space<vmem>>) attributes {dimension_semantics = [#tpu.dimension_semantics<parallel>, #tpu.dimension_semantics<parallel>], iteration_bounds = array<i64: 2, 2>, scalar_prefetch = 0 : i64, scratch_operands = 0 : i64, tpu.core_type = #tpu.core_type<tc>, window_params = [{transform_indices = @transform_0, window_bounds = array<i64: 1, 8, 16, 128>}, {pipeline_mode = #tpu.pipeline_mode<synchronous>, transform_indices = @transform_1, window_bounds = array<i64: 1, 128>}, {pipeline_mode = #tpu.pipeline_mode<synchronous>, transform_indices = @transform_2, window_bounds = array<i64: 1, 128>}, {transform_indices = @transform_3, window_bounds = array<i64: 1, 8, 16, 128>}]} {
    %c0 = arith.constant 0 : index
    %c0_0 = arith.constant 0 : index
    %c0_1 = arith.constant 0 : index
    %c0_2 = arith.constant 0 : index
    %0 = vector.load %arg2[%c0, %c0_0, %c0_1, %c0_2] : memref<1x8x16x128xf32, #tpu.memory_space<vmem>>, vector<1x8x16x128xf32>
    %c0_3 = arith.constant 0 : index
    %c0_4 = arith.constant 0 : index
    %1 = vector.load %arg3[%c0_3, %c0_4] : memref<1x128xf32, #tpu.memory_space<vmem>>, vector<1x128xf32>
    %2 = vector.shape_cast %1 : vector<1x128xf32> to vector<1x1x1x128xf32>
    %3 = vector.broadcast %2 : vector<1x1x1x128xf32> to vector<1x8x16x128xf32>
    %4 = arith.mulf %0, %3 : vector<1x8x16x128xf32>
    %c0_5 = arith.constant 0 : index
    %c0_6 = arith.constant 0 : index
    %5 = vector.load %arg4[%c0_5, %c0_6] : memref<1x128xf32, #tpu.memory_space<vmem>>, vector<1x128xf32>
    %6 = vector.shape_cast %5 : vector<1x128xf32> to vector<1x1x1x128xf32>
    %7 = vector.broadcast %6 : vector<1x1x1x128xf32> to vector<1x8x16x128xf32>
    %8 = arith.addf %4, %7 : vector<1x8x16x128xf32>
    %cst = arith.constant 0.000000e+00 : f32
    %9 = vector.broadcast %cst : f32 to vector<1x8x16x128xf32>
    %10 = arith.maximumf %8, %9 : vector<1x8x16x128xf32>
    %c0_7 = arith.constant 0 : index
    %c0_8 = arith.constant 0 : index
    %c0_9 = arith.constant 0 : index
    %c0_10 = arith.constant 0 : index
    %11 = vector.load %arg5[%c0_7, %c0_8, %c0_9, %c0_10] : memref<1x8x16x128xf32, #tpu.memory_space<vmem>>, vector<1x8x16x128xf32>
    tpu.vector_store %arg5[%c0_7, %c0_8, %c0_9, %c0_10], %10 {strides = array<i32>} : memref<1x8x16x128xf32, #tpu.memory_space<vmem>>, vector<1x8x16x128xf32>,
    return
  }
  func.func @transform_0(%arg0: i32, %arg1: i32) -> (i32, i32, i32, i32) {
    %c0_i32 = arith.constant 0 : i32
    %c0_i32_0 = arith.constant 0 : i32
    %c0_i32_1 = arith.constant 0 : i32
    return %arg0, %arg1, %c0_i32, %c0_i32_0 : i32, i32, i32, i32
  }
  func.func @transform_1(%arg0: i32, %arg1: i32) -> (i32, i32) {
    %c0_i32 = arith.constant 0 : i32
    %c0_i32_0 = arith.constant 0 : i32
    %c0_i32_1 = arith.constant 0 : i32
    return %c0_i32, %c0_i32_0 : i32, i32
  }
  func.func @transform_2(%arg0: i32, %arg1: i32) -> (i32, i32) {
    %c0_i32 = arith.constant 0 : i32
    %c0_i32_0 = arith.constant 0 : i32
    %c0_i32_1 = arith.constant 0 : i32
    return %c0_i32, %c0_i32_0 : i32, i32
  }
  func.func @transform_3(%arg0: i32, %arg1: i32) -> (i32, i32, i32, i32) {
    %c0_i32 = arith.constant 0 : i32
    %c0_i32_0 = arith.constant 0 : i32
    %c0_i32_1 = arith.constant 0 : i32
    return %arg0, %arg1, %c0_i32, %c0_i32_0 : i32, i32, i32, i32
  }
}

module attributes {stable_mosaic.version = 11 : i64} {
  func.func @_conv_stats_kernel(%arg0: i32, %arg1: i32, %arg2: memref<2x16x16x128xf32, #tpu.memory_space<any>>, %arg3: memref<3x384x128xbf16, #tpu.memory_space<vmem>>, %arg4: memref<1x128xf32, #tpu.memory_space<vmem>>, %arg5: memref<1x128xf32, #tpu.memory_space<vmem>>, %arg6: memref<1x8x16x128xf32, #tpu.memory_space<vmem>>, %arg7: memref<1x1x2x128xf32, #tpu.memory_space<vmem>>, %arg8: memref<10x16x128xf32, #tpu.memory_space<vmem>>, %arg9: memref<3x!tpu.dma_semaphore, #tpu.memory_space<semaphore_mem>>) attributes {dimension_semantics = [#tpu.dimension_semantics<parallel>, #tpu.dimension_semantics<parallel>], iteration_bounds = array<i64: 2, 2>, scalar_prefetch = 0 : i64, scratch_operands = 2 : i64, tpu.core_type = #tpu.core_type<tc>, window_params = [{}, {pipeline_mode = #tpu.pipeline_mode<synchronous>, transform_indices = @transform_1, window_bounds = array<i64: 3, 384, 128>}, {pipeline_mode = #tpu.pipeline_mode<synchronous>, transform_indices = @transform_2, window_bounds = array<i64: 1, 128>}, {pipeline_mode = #tpu.pipeline_mode<synchronous>, transform_indices = @transform_3, window_bounds = array<i64: 1, 128>}, {transform_indices = @transform_4, window_bounds = array<i64: 1, 8, 16, 128>}, {transform_indices = @transform_5, window_bounds = array<i64: 1, 1, 2, 128>}]} {
    %c8_i32 = arith.constant 8 : i32
    %0 = arith.muli %arg1, %c8_i32 : i32
    %1 = tpu.assume_multiple %0, 8 : i32
    %c0_i32 = arith.constant 0 : i32
    %c0_i32_0 = arith.constant 0 : i32
    %c0_i32_1 = arith.constant 0 : i32
    %2 = tpu.memref_slice %arg2[%arg0, %1, %c0_i32_0, %c0_i32_1] : memref<2x16x16x128xf32, #tpu.memory_space<any>> -> memref<1x8x16x128xf32, #tpu.memory_space<any>>
    %3 = tpu.memref_squeeze %2 : memref<1x8x16x128xf32, #tpu.memory_space<any>> -> memref<8x16x128xf32, #tpu.memory_space<any>>
    %c1_i32 = arith.constant 1 : i32
    %c0_i32_2 = arith.constant 0 : i32
    %c0_i32_3 = arith.constant 0 : i32
    %4 = tpu.memref_slice %arg8[%c1_i32, %c0_i32_2, %c0_i32_3] : memref<10x16x128xf32, #tpu.memory_space<vmem>> -> memref<8x16x128xf32, #tpu.memory_space<vmem>>
    %5 = tpu.memref_slice %arg9[%c0_i32] : memref<3x!tpu.dma_semaphore, #tpu.memory_space<semaphore_mem>> -> memref<1x!tpu.dma_semaphore, #tpu.memory_space<semaphore_mem>>
    %6 = tpu.memref_squeeze %5 : memref<1x!tpu.dma_semaphore, #tpu.memory_space<semaphore_mem>> -> memref<!tpu.dma_semaphore, #tpu.memory_space<semaphore_mem>>
    tpu.enqueue_dma source(%3 : memref<8x16x128xf32, #tpu.memory_space<any>>) target(%4 : memref<8x16x128xf32, #tpu.memory_space<vmem>>) target_semaphore(%6 : memref<!tpu.dma_semaphore, #tpu.memory_space<semaphore_mem>>)
    %c0_i32_4 = arith.constant 0 : i32
    %7 = arith.cmpi sgt, %arg1, %c0_i32_4 : i32
    %8 = arith.extui %7 : i1 to i32
    %c0_i32_5 = arith.constant 0 : i32
    %9 = arith.cmpi ne, %8, %c0_i32_5 : i32
    scf.if %9 {
      %c1_i32_51 = arith.constant 1 : i32
      %85 = arith.subi %1, %c1_i32_51 : i32
      %c1_i32_52 = arith.constant 1 : i32
      %c0_i32_53 = arith.constant 0 : i32
      %c0_i32_54 = arith.constant 0 : i32
      %86 = tpu.memref_slice %arg2[%arg0, %85, %c0_i32_53, %c0_i32_54] : memref<2x16x16x128xf32, #tpu.memory_space<any>> -> memref<1x1x16x128xf32, #tpu.memory_space<any>>
      %87 = tpu.memref_squeeze %86 : memref<1x1x16x128xf32, #tpu.memory_space<any>> -> memref<1x16x128xf32, #tpu.memory_space<any>>
      %c0_i32_55 = arith.constant 0 : i32
      %c0_i32_56 = arith.constant 0 : i32
      %c0_i32_57 = arith.constant 0 : i32
      %88 = tpu.memref_slice %arg8[%c0_i32_55, %c0_i32_56, %c0_i32_57] : memref<10x16x128xf32, #tpu.memory_space<vmem>> -> memref<1x16x128xf32, #tpu.memory_space<vmem>>
      %89 = tpu.memref_slice %arg9[%c1_i32_52] : memref<3x!tpu.dma_semaphore, #tpu.memory_space<semaphore_mem>> -> memref<1x!tpu.dma_semaphore, #tpu.memory_space<semaphore_mem>>
      %90 = tpu.memref_squeeze %89 : memref<1x!tpu.dma_semaphore, #tpu.memory_space<semaphore_mem>> -> memref<!tpu.dma_semaphore, #tpu.memory_space<semaphore_mem>>
      tpu.enqueue_dma source(%87 : memref<1x16x128xf32, #tpu.memory_space<any>>) target(%88 : memref<1x16x128xf32, #tpu.memory_space<vmem>>) target_semaphore(%90 : memref<!tpu.dma_semaphore, #tpu.memory_space<semaphore_mem>>)
      %c1_i32_58 = arith.constant 1 : i32
      %c0_i32_59 = arith.constant 0 : i32
      %c0_i32_60 = arith.constant 0 : i32
      %91 = tpu.memref_slice %arg2[%arg0, %85, %c0_i32_59, %c0_i32_60] : memref<2x16x16x128xf32, #tpu.memory_space<any>> -> memref<1x1x16x128xf32, #tpu.memory_space<any>>
      %92 = tpu.memref_squeeze %91 : memref<1x1x16x128xf32, #tpu.memory_space<any>> -> memref<1x16x128xf32, #tpu.memory_space<any>>
      %c0_i32_61 = arith.constant 0 : i32
      %c0_i32_62 = arith.constant 0 : i32
      %c0_i32_63 = arith.constant 0 : i32
      %93 = tpu.memref_slice %arg8[%c0_i32_61, %c0_i32_62, %c0_i32_63] : memref<10x16x128xf32, #tpu.memory_space<vmem>> -> memref<1x16x128xf32, #tpu.memory_space<vmem>>
      %94 = tpu.memref_slice %arg9[%c1_i32_58] : memref<3x!tpu.dma_semaphore, #tpu.memory_space<semaphore_mem>> -> memref<1x!tpu.dma_semaphore, #tpu.memory_space<semaphore_mem>>
      %95 = tpu.memref_squeeze %94 : memref<1x!tpu.dma_semaphore, #tpu.memory_space<semaphore_mem>> -> memref<!tpu.dma_semaphore, #tpu.memory_space<semaphore_mem>>
      tpu.wait_dma2 semaphore(%95 : memref<!tpu.dma_semaphore, #tpu.memory_space<semaphore_mem>>) src(%92 : memref<1x16x128xf32, #tpu.memory_space<any>>) dst(%93 : memref<1x16x128xf32, #tpu.memory_space<vmem>>)
    } else {
    }
    %c0_i32_6 = arith.constant 0 : i32
    %10 = arith.cmpi eq, %arg1, %c0_i32_6 : i32
    %11 = arith.extui %10 : i1 to i32
    %c0_i32_7 = arith.constant 0 : i32
    %12 = arith.cmpi ne, %11, %c0_i32_7 : i32
    scf.if %12 {
      %cst_51 = arith.constant 0.000000e+00 : f32
      %85 = vector.broadcast %cst_51 : f32 to vector<1x16x128xf32>
      %c0_52 = arith.constant 0 : index
      %c0_53 = arith.constant 0 : index
      %c0_54 = arith.constant 0 : index
      %86 = vector.load %arg8[%c0_52, %c0_53, %c0_54] : memref<10x16x128xf32, #tpu.memory_space<vmem>>, vector<1x16x128xf32>
      tpu.vector_store %arg8[%c0_52, %c0_53, %c0_54], %85 {strides = array<i32>} : memref<10x16x128xf32, #tpu.memory_space<vmem>>, vector<1x16x128xf32>,
    } else {
    }
    %c1_i32_8 = arith.constant 1 : i32
    %13 = arith.cmpi slt, %arg1, %c1_i32_8 : i32
    %14 = arith.extui %13 : i1 to i32
    %c0_i32_9 = arith.constant 0 : i32
    %15 = arith.cmpi ne, %14, %c0_i32_9 : i32
    scf.if %15 {
      %c8_i32_51 = arith.constant 8 : i32
      %85 = arith.addi %1, %c8_i32_51 : i32
      %c2_i32 = arith.constant 2 : i32
      %c0_i32_52 = arith.constant 0 : i32
      %c0_i32_53 = arith.constant 0 : i32
      %86 = tpu.memref_slice %arg2[%arg0, %85, %c0_i32_52, %c0_i32_53] : memref<2x16x16x128xf32, #tpu.memory_space<any>> -> memref<1x1x16x128xf32, #tpu.memory_space<any>>
      %87 = tpu.memref_squeeze %86 : memref<1x1x16x128xf32, #tpu.memory_space<any>> -> memref<1x16x128xf32, #tpu.memory_space<any>>
      %c9_i32 = arith.constant 9 : i32
      %c0_i32_54 = arith.constant 0 : i32
      %c0_i32_55 = arith.constant 0 : i32
      %88 = tpu.memref_slice %arg8[%c9_i32, %c0_i32_54, %c0_i32_55] : memref<10x16x128xf32, #tpu.memory_space<vmem>> -> memref<1x16x128xf32, #tpu.memory_space<vmem>>
      %89 = tpu.memref_slice %arg9[%c2_i32] : memref<3x!tpu.dma_semaphore, #tpu.memory_space<semaphore_mem>> -> memref<1x!tpu.dma_semaphore, #tpu.memory_space<semaphore_mem>>
      %90 = tpu.memref_squeeze %89 : memref<1x!tpu.dma_semaphore, #tpu.memory_space<semaphore_mem>> -> memref<!tpu.dma_semaphore, #tpu.memory_space<semaphore_mem>>
      tpu.enqueue_dma source(%87 : memref<1x16x128xf32, #tpu.memory_space<any>>) target(%88 : memref<1x16x128xf32, #tpu.memory_space<vmem>>) target_semaphore(%90 : memref<!tpu.dma_semaphore, #tpu.memory_space<semaphore_mem>>)
      %c2_i32_56 = arith.constant 2 : i32
      %c0_i32_57 = arith.constant 0 : i32
      %c0_i32_58 = arith.constant 0 : i32
      %91 = tpu.memref_slice %arg2[%arg0, %85, %c0_i32_57, %c0_i32_58] : memref<2x16x16x128xf32, #tpu.memory_space<any>> -> memref<1x1x16x128xf32, #tpu.memory_space<any>>
      %92 = tpu.memref_squeeze %91 : memref<1x1x16x128xf32, #tpu.memory_space<any>> -> memref<1x16x128xf32, #tpu.memory_space<any>>
      %c9_i32_59 = arith.constant 9 : i32
      %c0_i32_60 = arith.constant 0 : i32
      %c0_i32_61 = arith.constant 0 : i32
      %93 = tpu.memref_slice %arg8[%c9_i32_59, %c0_i32_60, %c0_i32_61] : memref<10x16x128xf32, #tpu.memory_space<vmem>> -> memref<1x16x128xf32, #tpu.memory_space<vmem>>
      %94 = tpu.memref_slice %arg9[%c2_i32_56] : memref<3x!tpu.dma_semaphore, #tpu.memory_space<semaphore_mem>> -> memref<1x!tpu.dma_semaphore, #tpu.memory_space<semaphore_mem>>
      %95 = tpu.memref_squeeze %94 : memref<1x!tpu.dma_semaphore, #tpu.memory_space<semaphore_mem>> -> memref<!tpu.dma_semaphore, #tpu.memory_space<semaphore_mem>>
      tpu.wait_dma2 semaphore(%95 : memref<!tpu.dma_semaphore, #tpu.memory_space<semaphore_mem>>) src(%92 : memref<1x16x128xf32, #tpu.memory_space<any>>) dst(%93 : memref<1x16x128xf32, #tpu.memory_space<vmem>>)
    } else {
    }
    %c1_i32_10 = arith.constant 1 : i32
    %16 = arith.cmpi eq, %arg1, %c1_i32_10 : i32
    %17 = arith.extui %16 : i1 to i32
    %c0_i32_11 = arith.constant 0 : i32
    %18 = arith.cmpi ne, %17, %c0_i32_11 : i32
    scf.if %18 {
      %cst_51 = arith.constant 0.000000e+00 : f32
      %85 = vector.broadcast %cst_51 : f32 to vector<1x16x128xf32>
      %c9 = arith.constant 9 : index
      %c0_52 = arith.constant 0 : index
      %c0_53 = arith.constant 0 : index
      %86 = vector.load %arg8[%c9, %c0_52, %c0_53] : memref<10x16x128xf32, #tpu.memory_space<vmem>>, vector<1x16x128xf32>
      tpu.vector_store %arg8[%c9, %c0_52, %c0_53], %85 {strides = array<i32>} : memref<10x16x128xf32, #tpu.memory_space<vmem>>, vector<1x16x128xf32>,
    } else {
    }
    %c0_i32_12 = arith.constant 0 : i32
    %c0_i32_13 = arith.constant 0 : i32
    %c0_i32_14 = arith.constant 0 : i32
    %19 = tpu.memref_slice %arg2[%arg0, %1, %c0_i32_13, %c0_i32_14] : memref<2x16x16x128xf32, #tpu.memory_space<any>> -> memref<1x8x16x128xf32, #tpu.memory_space<any>>
    %20 = tpu.memref_squeeze %19 : memref<1x8x16x128xf32, #tpu.memory_space<any>> -> memref<8x16x128xf32, #tpu.memory_space<any>>
    %c1_i32_15 = arith.constant 1 : i32
    %c0_i32_16 = arith.constant 0 : i32
    %c0_i32_17 = arith.constant 0 : i32
    %21 = tpu.memref_slice %arg8[%c1_i32_15, %c0_i32_16, %c0_i32_17] : memref<10x16x128xf32, #tpu.memory_space<vmem>> -> memref<8x16x128xf32, #tpu.memory_space<vmem>>
    %22 = tpu.memref_slice %arg9[%c0_i32_12] : memref<3x!tpu.dma_semaphore, #tpu.memory_space<semaphore_mem>> -> memref<1x!tpu.dma_semaphore, #tpu.memory_space<semaphore_mem>>
    %23 = tpu.memref_squeeze %22 : memref<1x!tpu.dma_semaphore, #tpu.memory_space<semaphore_mem>> -> memref<!tpu.dma_semaphore, #tpu.memory_space<semaphore_mem>>
    tpu.wait_dma2 semaphore(%23 : memref<!tpu.dma_semaphore, #tpu.memory_space<semaphore_mem>>) src(%20 : memref<8x16x128xf32, #tpu.memory_space<any>>) dst(%21 : memref<8x16x128xf32, #tpu.memory_space<vmem>>)
    %c0 = arith.constant 0 : index
    %c0_18 = arith.constant 0 : index
    %c0_19 = arith.constant 0 : index
    %24 = vector.load %arg8[%c0, %c0_18, %c0_19] : memref<10x16x128xf32, #tpu.memory_space<vmem>>, vector<10x16x128xf32>
    %c0_20 = arith.constant 0 : index
    %c0_21 = arith.constant 0 : index
    %25 = vector.load %arg4[%c0_20, %c0_21] : memref<1x128xf32, #tpu.memory_space<vmem>>, vector<1x128xf32>
    %26 = vector.shape_cast %25 : vector<1x128xf32> to vector<1x1x128xf32>
    %27 = vector.broadcast %26 : vector<1x1x128xf32> to vector<10x16x128xf32>
    %28 = arith.mulf %24, %27 : vector<10x16x128xf32>
    %c0_22 = arith.constant 0 : index
    %c0_23 = arith.constant 0 : index
    %29 = vector.load %arg5[%c0_22, %c0_23] : memref<1x128xf32, #tpu.memory_space<vmem>>, vector<1x128xf32>
    %30 = vector.shape_cast %29 : vector<1x128xf32> to vector<1x1x128xf32>
    %31 = vector.broadcast %30 : vector<1x1x128xf32> to vector<10x16x128xf32>
    %32 = arith.addf %28, %31 : vector<10x16x128xf32>
    %cst = arith.constant 0.000000e+00 : f32
    %33 = vector.broadcast %cst : f32 to vector<10x16x128xf32>
    %34 = arith.maximumf %32, %33 : vector<10x16x128xf32>
    %35 = tpu.iota {dimensions = array<i32: 0>} : vector<10x1x1xi32>
    %c1_i32_24 = arith.constant 1 : i32
    %36 = vector.broadcast %c1_i32_24 : i32 to vector<10x1x1xi32>
    %37 = arith.cmpi sge, %35, %36 : vector<10x1x1xi32>
    %c0_i32_25 = arith.constant 0 : i32
    %38 = arith.cmpi sgt, %arg1, %c0_i32_25 : i32
    %39 = vector.broadcast %38 : i1 to vector<10x1x1xi1>
    %40 = arith.ori %37, %39 : vector<10x1x1xi1>
    %c8_i32_26 = arith.constant 8 : i32
    %41 = vector.broadcast %c8_i32_26 : i32 to vector<10x1x1xi32>
    %42 = arith.cmpi sle, %35, %41 : vector<10x1x1xi32>
    %c1_i32_27 = arith.constant 1 : i32
    %43 = arith.cmpi slt, %arg1, %c1_i32_27 : i32
    %44 = vector.broadcast %43 : i1 to vector<10x1x1xi1>
    %45 = arith.ori %42, %44 : vector<10x1x1xi1>
    %46 = arith.andi %40, %45 : vector<10x1x1xi1>
    %cst_28 = arith.constant 0.000000e+00 : f32
    %47 = vector.shape_cast %46 : vector<10x1x1xi1> to vector<10x1x1xi1>
    %48 = vector.broadcast %47 : vector<10x1x1xi1> to vector<10x16x128xi1>
    %49 = vector.broadcast %cst_28 : f32 to vector<10x16x128xf32>
    %50 = arith.select %48, %34, %49 : vector<10x16x128xi1>, vector<10x16x128xf32>
    %51 = arith.truncf %50 : vector<10x16x128xf32> to vector<10x16x128xbf16>
    %cst_29 = arith.constant 0.000000e+00 : bf16
    %52 = vector.broadcast %cst_29 : bf16 to vector<10x1x128xbf16>
    %53 = tpu.concatenate %52, %51, %52 in 1 : vector<10x1x128xbf16>, vector<10x16x128xbf16>, vector<10x1x128xbf16> -> vector<10x18x128xbf16>
    %54 = vector.extract_strided_slice %53 {offsets = [0, 0, 0], sizes = [8, 18, 128], strides = [1, 1, 1]} : vector<10x18x128xbf16> to vector<8x18x128xbf16>
    %55 = vector.extract_strided_slice %53 {offsets = [1, 0, 0], sizes = [8, 18, 128], strides = [1, 1, 1]} : vector<10x18x128xbf16> to vector<8x18x128xbf16>
    %56 = vector.extract_strided_slice %53 {offsets = [2, 0, 0], sizes = [8, 18, 128], strides = [1, 1, 1]} : vector<10x18x128xbf16> to vector<8x18x128xbf16>
    %57 = tpu.concatenate %54, %55, %56 in 2 : vector<8x18x128xbf16>, vector<8x18x128xbf16>, vector<8x18x128xbf16> -> vector<8x18x384xbf16>
    %cst_30 = arith.constant 0.000000e+00 : f32
    %58 = vector.broadcast %cst_30 : f32 to vector<8x16x128xf32>
    %59 = vector.extract_strided_slice %57 {offsets = [0, 0, 0], sizes = [8, 16, 384], strides = [1, 1, 1]} : vector<8x18x384xbf16> to vector<8x16x384xbf16>
    %c0_31 = arith.constant 0 : index
    %c0_32 = arith.constant 0 : index
    %c0_33 = arith.constant 0 : index
    %60 = vector.load %arg3[%c0_31, %c0_32, %c0_33] : memref<3x384x128xbf16, #tpu.memory_space<vmem>>, vector<1x384x128xbf16>
    %61 = vector.shape_cast %60 : vector<1x384x128xbf16> to vector<384x128xbf16>
    %cst_34 = arith.constant dense<0.000000e+00> : vector<8x16x128xf32>
    %62 = tpu.matmul %59, %61, %cst_34 {dimension_numbers = #tpu.dot_dimension_numbers<[2], [0], [0, 1], [1], [0, 0, 0, 1, 1, 1], [], []>} : vector<8x16x384xbf16>, vector<384x128xbf16>, vector<8x16x128xf32> -> vector<8x16x128xf32>
    %63 = arith.addf %58, %62 : vector<8x16x128xf32>
    %64 = vector.extract_strided_slice %57 {offsets = [0, 1, 0], sizes = [8, 16, 384], strides = [1, 1, 1]} : vector<8x18x384xbf16> to vector<8x16x384xbf16>
    %c1 = arith.constant 1 : index
    %c0_35 = arith.constant 0 : index
    %c0_36 = arith.constant 0 : index
    %65 = vector.load %arg3[%c1, %c0_35, %c0_36] : memref<3x384x128xbf16, #tpu.memory_space<vmem>>, vector<1x384x128xbf16>
    %66 = vector.shape_cast %65 : vector<1x384x128xbf16> to vector<384x128xbf16>
    %cst_37 = arith.constant dense<0.000000e+00> : vector<8x16x128xf32>
    %67 = tpu.matmul %64, %66, %cst_37 {dimension_numbers = #tpu.dot_dimension_numbers<[2], [0], [0, 1], [1], [0, 0, 0, 1, 1, 1], [], []>} : vector<8x16x384xbf16>, vector<384x128xbf16>, vector<8x16x128xf32> -> vector<8x16x128xf32>
    %68 = arith.addf %63, %67 : vector<8x16x128xf32>
    %69 = vector.extract_strided_slice %57 {offsets = [0, 2, 0], sizes = [8, 16, 384], strides = [1, 1, 1]} : vector<8x18x384xbf16> to vector<8x16x384xbf16>
    %c2 = arith.constant 2 : index
    %c0_38 = arith.constant 0 : index
    %c0_39 = arith.constant 0 : index
    %70 = vector.load %arg3[%c2, %c0_38, %c0_39] : memref<3x384x128xbf16, #tpu.memory_space<vmem>>, vector<1x384x128xbf16>
    %71 = vector.shape_cast %70 : vector<1x384x128xbf16> to vector<384x128xbf16>
    %cst_40 = arith.constant dense<0.000000e+00> : vector<8x16x128xf32>
    %72 = tpu.matmul %69, %71, %cst_40 {dimension_numbers = #tpu.dot_dimension_numbers<[2], [0], [0, 1], [1], [0, 0, 0, 1, 1, 1], [], []>} : vector<8x16x384xbf16>, vector<384x128xbf16>, vector<8x16x128xf32> -> vector<8x16x128xf32>
    %73 = arith.addf %68, %72 : vector<8x16x128xf32>
    %c0_41 = arith.constant 0 : index
    %c0_42 = arith.constant 0 : index
    %c0_43 = arith.constant 0 : index
    %c0_44 = arith.constant 0 : index
    %74 = vector.load %arg6[%c0_41, %c0_42, %c0_43, %c0_44] : memref<1x8x16x128xf32, #tpu.memory_space<vmem>>, vector<1x8x16x128xf32>
    %75 = vector.shape_cast %74 : vector<1x8x16x128xf32> to vector<8x16x128xf32>
    %76 = vector.shape_cast %73 : vector<8x16x128xf32> to vector<1x8x16x128xf32>
    tpu.vector_store %arg6[%c0_41, %c0_42, %c0_43, %c0_44], %76 {strides = array<i32>} : memref<1x8x16x128xf32, #tpu.memory_space<vmem>>, vector<1x8x16x128xf32>,
    %cst_45 = arith.constant dense<0.000000e+00> : vector<128xf32>
    %77 = vector.multi_reduction <add>, %73, %cst_45 [0, 1] : vector<8x16x128xf32> to vector<128xf32>
    %78 = vector.shape_cast %77 : vector<128xf32> to vector<1x1x128xf32>
    %79 = arith.mulf %73, %73 : vector<8x16x128xf32>
    %cst_46 = arith.constant dense<0.000000e+00> : vector<128xf32>
    %80 = vector.multi_reduction <add>, %79, %cst_46 [0, 1] : vector<8x16x128xf32> to vector<128xf32>
    %81 = vector.shape_cast %80 : vector<128xf32> to vector<1x1x128xf32>
    %82 = tpu.concatenate %78, %81 in 1 : vector<1x1x128xf32>, vector<1x1x128xf32> -> vector<1x2x128xf32>
    %83 = vector.shape_cast %82 : vector<1x2x128xf32> to vector<1x1x2x128xf32>
    %c0_47 = arith.constant 0 : index
    %c0_48 = arith.constant 0 : index
    %c0_49 = arith.constant 0 : index
    %c0_50 = arith.constant 0 : index
    %84 = vector.load %arg7[%c0_47, %c0_48, %c0_49, %c0_50] : memref<1x1x2x128xf32, #tpu.memory_space<vmem>>, vector<1x1x2x128xf32>
    tpu.vector_store %arg7[%c0_47, %c0_48, %c0_49, %c0_50], %83 {strides = array<i32>} : memref<1x1x2x128xf32, #tpu.memory_space<vmem>>, vector<1x1x2x128xf32>,
    return
  }
  func.func @transform_1(%arg0: i32, %arg1: i32) -> (i32, i32, i32) {
    %c0_i32 = arith.constant 0 : i32
    %c0_i32_0 = arith.constant 0 : i32
    %c0_i32_1 = arith.constant 0 : i32
    %c0_i32_2 = arith.constant 0 : i32
    return %c0_i32, %c0_i32_0, %c0_i32_1 : i32, i32, i32
  }
  func.func @transform_2(%arg0: i32, %arg1: i32) -> (i32, i32) {
    %c0_i32 = arith.constant 0 : i32
    %c0_i32_0 = arith.constant 0 : i32
    %c0_i32_1 = arith.constant 0 : i32
    return %c0_i32, %c0_i32_0 : i32, i32
  }
  func.func @transform_3(%arg0: i32, %arg1: i32) -> (i32, i32) {
    %c0_i32 = arith.constant 0 : i32
    %c0_i32_0 = arith.constant 0 : i32
    %c0_i32_1 = arith.constant 0 : i32
    return %c0_i32, %c0_i32_0 : i32, i32
  }
  func.func @transform_4(%arg0: i32, %arg1: i32) -> (i32, i32, i32, i32) {
    %c0_i32 = arith.constant 0 : i32
    %c0_i32_0 = arith.constant 0 : i32
    %c0_i32_1 = arith.constant 0 : i32
    return %arg0, %arg1, %c0_i32, %c0_i32_0 : i32, i32, i32, i32
  }
  func.func @transform_5(%arg0: i32, %arg1: i32) -> (i32, i32, i32, i32) {
    %c0_i32 = arith.constant 0 : i32
    %c0_i32_0 = arith.constant 0 : i32
    %c0_i32_1 = arith.constant 0 : i32
    return %arg0, %arg1, %c0_i32, %c0_i32_0 : i32, i32, i32, i32
  }
}

module attributes {stable_mosaic.version = 11 : i64} {
  func.func @_conv_stats_kernel(%arg0: i32, %arg1: i32, %arg2: memref<2x16x16x128xf32, #tpu.memory_space<any>>, %arg3: memref<3x384x128xbf16, #tpu.memory_space<vmem>>, %arg4: memref<1x128xf32, #tpu.memory_space<vmem>>, %arg5: memref<1x128xf32, #tpu.memory_space<vmem>>, %arg6: memref<1x8x16x128xf32, #tpu.memory_space<vmem>>, %arg7: memref<1x1x2x128xf32, #tpu.memory_space<vmem>>, %arg8: memref<10x16x128xf32, #tpu.memory_space<vmem>>, %arg9: memref<3x!tpu.dma_semaphore, #tpu.memory_space<semaphore_mem>>) attributes {dimension_semantics = [#tpu.dimension_semantics<parallel>, #tpu.dimension_semantics<parallel>], iteration_bounds = array<i64: 2, 2>, scalar_prefetch = 0 : i64, scratch_operands = 2 : i64, tpu.core_type = #tpu.core_type<tc>, window_params = [{}, {pipeline_mode = #tpu.pipeline_mode<synchronous>, transform_indices = @transform_1, window_bounds = array<i64: 3, 384, 128>}, {pipeline_mode = #tpu.pipeline_mode<synchronous>, transform_indices = @transform_2, window_bounds = array<i64: 1, 128>}, {pipeline_mode = #tpu.pipeline_mode<synchronous>, transform_indices = @transform_3, window_bounds = array<i64: 1, 128>}, {transform_indices = @transform_4, window_bounds = array<i64: 1, 8, 16, 128>}, {transform_indices = @transform_5, window_bounds = array<i64: 1, 1, 2, 128>}]} {
    %c8_i32 = arith.constant 8 : i32
    %0 = arith.muli %arg1, %c8_i32 : i32
    %1 = tpu.assume_multiple %0, 8 : i32
    %c0_i32 = arith.constant 0 : i32
    %c0_i32_0 = arith.constant 0 : i32
    %c0_i32_1 = arith.constant 0 : i32
    %2 = tpu.memref_slice %arg2[%arg0, %1, %c0_i32_0, %c0_i32_1] : memref<2x16x16x128xf32, #tpu.memory_space<any>> -> memref<1x8x16x128xf32, #tpu.memory_space<any>>
    %3 = tpu.memref_squeeze %2 : memref<1x8x16x128xf32, #tpu.memory_space<any>> -> memref<8x16x128xf32, #tpu.memory_space<any>>
    %c1_i32 = arith.constant 1 : i32
    %c0_i32_2 = arith.constant 0 : i32
    %c0_i32_3 = arith.constant 0 : i32
    %4 = tpu.memref_slice %arg8[%c1_i32, %c0_i32_2, %c0_i32_3] : memref<10x16x128xf32, #tpu.memory_space<vmem>> -> memref<8x16x128xf32, #tpu.memory_space<vmem>>
    %5 = tpu.memref_slice %arg9[%c0_i32] : memref<3x!tpu.dma_semaphore, #tpu.memory_space<semaphore_mem>> -> memref<1x!tpu.dma_semaphore, #tpu.memory_space<semaphore_mem>>
    %6 = tpu.memref_squeeze %5 : memref<1x!tpu.dma_semaphore, #tpu.memory_space<semaphore_mem>> -> memref<!tpu.dma_semaphore, #tpu.memory_space<semaphore_mem>>
    tpu.enqueue_dma source(%3 : memref<8x16x128xf32, #tpu.memory_space<any>>) target(%4 : memref<8x16x128xf32, #tpu.memory_space<vmem>>) target_semaphore(%6 : memref<!tpu.dma_semaphore, #tpu.memory_space<semaphore_mem>>)
    %c0_i32_4 = arith.constant 0 : i32
    %7 = arith.cmpi sgt, %arg1, %c0_i32_4 : i32
    %8 = arith.extui %7 : i1 to i32
    %c0_i32_5 = arith.constant 0 : i32
    %9 = arith.cmpi ne, %8, %c0_i32_5 : i32
    scf.if %9 {
      %c1_i32_41 = arith.constant 1 : i32
      %59 = arith.subi %1, %c1_i32_41 : i32
      %c1_i32_42 = arith.constant 1 : i32
      %c0_i32_43 = arith.constant 0 : i32
      %c0_i32_44 = arith.constant 0 : i32
      %60 = tpu.memref_slice %arg2[%arg0, %59, %c0_i32_43, %c0_i32_44] : memref<2x16x16x128xf32, #tpu.memory_space<any>> -> memref<1x1x16x128xf32, #tpu.memory_space<any>>
      %61 = tpu.memref_squeeze %60 : memref<1x1x16x128xf32, #tpu.memory_space<any>> -> memref<1x16x128xf32, #tpu.memory_space<any>>
      %c0_i32_45 = arith.constant 0 : i32
      %c0_i32_46 = arith.constant 0 : i32
      %c0_i32_47 = arith.constant 0 : i32
      %62 = tpu.memref_slice %arg8[%c0_i32_45, %c0_i32_46, %c0_i32_47] : memref<10x16x128xf32, #tpu.memory_space<vmem>> -> memref<1x16x128xf32, #tpu.memory_space<vmem>>
      %63 = tpu.memref_slice %arg9[%c1_i32_42] : memref<3x!tpu.dma_semaphore, #tpu.memory_space<semaphore_mem>> -> memref<1x!tpu.dma_semaphore, #tpu.memory_space<semaphore_mem>>
      %64 = tpu.memref_squeeze %63 : memref<1x!tpu.dma_semaphore, #tpu.memory_space<semaphore_mem>> -> memref<!tpu.dma_semaphore, #tpu.memory_space<semaphore_mem>>
      tpu.enqueue_dma source(%61 : memref<1x16x128xf32, #tpu.memory_space<any>>) target(%62 : memref<1x16x128xf32, #tpu.memory_space<vmem>>) target_semaphore(%64 : memref<!tpu.dma_semaphore, #tpu.memory_space<semaphore_mem>>)
      %c1_i32_48 = arith.constant 1 : i32
      %c0_i32_49 = arith.constant 0 : i32
      %c0_i32_50 = arith.constant 0 : i32
      %65 = tpu.memref_slice %arg2[%arg0, %59, %c0_i32_49, %c0_i32_50] : memref<2x16x16x128xf32, #tpu.memory_space<any>> -> memref<1x1x16x128xf32, #tpu.memory_space<any>>
      %66 = tpu.memref_squeeze %65 : memref<1x1x16x128xf32, #tpu.memory_space<any>> -> memref<1x16x128xf32, #tpu.memory_space<any>>
      %c0_i32_51 = arith.constant 0 : i32
      %c0_i32_52 = arith.constant 0 : i32
      %c0_i32_53 = arith.constant 0 : i32
      %67 = tpu.memref_slice %arg8[%c0_i32_51, %c0_i32_52, %c0_i32_53] : memref<10x16x128xf32, #tpu.memory_space<vmem>> -> memref<1x16x128xf32, #tpu.memory_space<vmem>>
      %68 = tpu.memref_slice %arg9[%c1_i32_48] : memref<3x!tpu.dma_semaphore, #tpu.memory_space<semaphore_mem>> -> memref<1x!tpu.dma_semaphore, #tpu.memory_space<semaphore_mem>>
      %69 = tpu.memref_squeeze %68 : memref<1x!tpu.dma_semaphore, #tpu.memory_space<semaphore_mem>> -> memref<!tpu.dma_semaphore, #tpu.memory_space<semaphore_mem>>
      tpu.wait_dma2 semaphore(%69 : memref<!tpu.dma_semaphore, #tpu.memory_space<semaphore_mem>>) src(%66 : memref<1x16x128xf32, #tpu.memory_space<any>>) dst(%67 : memref<1x16x128xf32, #tpu.memory_space<vmem>>)
    } else {
    }
    %c0_i32_6 = arith.constant 0 : i32
    %10 = arith.cmpi eq, %arg1, %c0_i32_6 : i32
    %11 = arith.extui %10 : i1 to i32
    %c0_i32_7 = arith.constant 0 : i32
    %12 = arith.cmpi ne, %11, %c0_i32_7 : i32
    scf.if %12 {
      %cst_41 = arith.constant 0.000000e+00 : f32
      %59 = vector.broadcast %cst_41 : f32 to vector<1x16x128xf32>
      %c0_42 = arith.constant 0 : index
      %c0_43 = arith.constant 0 : index
      %c0_44 = arith.constant 0 : index
      %60 = vector.load %arg8[%c0_42, %c0_43, %c0_44] : memref<10x16x128xf32, #tpu.memory_space<vmem>>, vector<1x16x128xf32>
      tpu.vector_store %arg8[%c0_42, %c0_43, %c0_44], %59 {strides = array<i32>} : memref<10x16x128xf32, #tpu.memory_space<vmem>>, vector<1x16x128xf32>,
    } else {
    }
    %c1_i32_8 = arith.constant 1 : i32
    %13 = arith.cmpi slt, %arg1, %c1_i32_8 : i32
    %14 = arith.extui %13 : i1 to i32
    %c0_i32_9 = arith.constant 0 : i32
    %15 = arith.cmpi ne, %14, %c0_i32_9 : i32
    scf.if %15 {
      %c8_i32_41 = arith.constant 8 : i32
      %59 = arith.addi %1, %c8_i32_41 : i32
      %c2_i32 = arith.constant 2 : i32
      %c0_i32_42 = arith.constant 0 : i32
      %c0_i32_43 = arith.constant 0 : i32
      %60 = tpu.memref_slice %arg2[%arg0, %59, %c0_i32_42, %c0_i32_43] : memref<2x16x16x128xf32, #tpu.memory_space<any>> -> memref<1x1x16x128xf32, #tpu.memory_space<any>>
      %61 = tpu.memref_squeeze %60 : memref<1x1x16x128xf32, #tpu.memory_space<any>> -> memref<1x16x128xf32, #tpu.memory_space<any>>
      %c9_i32 = arith.constant 9 : i32
      %c0_i32_44 = arith.constant 0 : i32
      %c0_i32_45 = arith.constant 0 : i32
      %62 = tpu.memref_slice %arg8[%c9_i32, %c0_i32_44, %c0_i32_45] : memref<10x16x128xf32, #tpu.memory_space<vmem>> -> memref<1x16x128xf32, #tpu.memory_space<vmem>>
      %63 = tpu.memref_slice %arg9[%c2_i32] : memref<3x!tpu.dma_semaphore, #tpu.memory_space<semaphore_mem>> -> memref<1x!tpu.dma_semaphore, #tpu.memory_space<semaphore_mem>>
      %64 = tpu.memref_squeeze %63 : memref<1x!tpu.dma_semaphore, #tpu.memory_space<semaphore_mem>> -> memref<!tpu.dma_semaphore, #tpu.memory_space<semaphore_mem>>
      tpu.enqueue_dma source(%61 : memref<1x16x128xf32, #tpu.memory_space<any>>) target(%62 : memref<1x16x128xf32, #tpu.memory_space<vmem>>) target_semaphore(%64 : memref<!tpu.dma_semaphore, #tpu.memory_space<semaphore_mem>>)
      %c2_i32_46 = arith.constant 2 : i32
      %c0_i32_47 = arith.constant 0 : i32
      %c0_i32_48 = arith.constant 0 : i32
      %65 = tpu.memref_slice %arg2[%arg0, %59, %c0_i32_47, %c0_i32_48] : memref<2x16x16x128xf32, #tpu.memory_space<any>> -> memref<1x1x16x128xf32, #tpu.memory_space<any>>
      %66 = tpu.memref_squeeze %65 : memref<1x1x16x128xf32, #tpu.memory_space<any>> -> memref<1x16x128xf32, #tpu.memory_space<any>>
      %c9_i32_49 = arith.constant 9 : i32
      %c0_i32_50 = arith.constant 0 : i32
      %c0_i32_51 = arith.constant 0 : i32
      %67 = tpu.memref_slice %arg8[%c9_i32_49, %c0_i32_50, %c0_i32_51] : memref<10x16x128xf32, #tpu.memory_space<vmem>> -> memref<1x16x128xf32, #tpu.memory_space<vmem>>
      %68 = tpu.memref_slice %arg9[%c2_i32_46] : memref<3x!tpu.dma_semaphore, #tpu.memory_space<semaphore_mem>> -> memref<1x!tpu.dma_semaphore, #tpu.memory_space<semaphore_mem>>
      %69 = tpu.memref_squeeze %68 : memref<1x!tpu.dma_semaphore, #tpu.memory_space<semaphore_mem>> -> memref<!tpu.dma_semaphore, #tpu.memory_space<semaphore_mem>>
      tpu.wait_dma2 semaphore(%69 : memref<!tpu.dma_semaphore, #tpu.memory_space<semaphore_mem>>) src(%66 : memref<1x16x128xf32, #tpu.memory_space<any>>) dst(%67 : memref<1x16x128xf32, #tpu.memory_space<vmem>>)
    } else {
    }
    %c1_i32_10 = arith.constant 1 : i32
    %16 = arith.cmpi eq, %arg1, %c1_i32_10 : i32
    %17 = arith.extui %16 : i1 to i32
    %c0_i32_11 = arith.constant 0 : i32
    %18 = arith.cmpi ne, %17, %c0_i32_11 : i32
    scf.if %18 {
      %cst_41 = arith.constant 0.000000e+00 : f32
      %59 = vector.broadcast %cst_41 : f32 to vector<1x16x128xf32>
      %c9 = arith.constant 9 : index
      %c0_42 = arith.constant 0 : index
      %c0_43 = arith.constant 0 : index
      %60 = vector.load %arg8[%c9, %c0_42, %c0_43] : memref<10x16x128xf32, #tpu.memory_space<vmem>>, vector<1x16x128xf32>
      tpu.vector_store %arg8[%c9, %c0_42, %c0_43], %59 {strides = array<i32>} : memref<10x16x128xf32, #tpu.memory_space<vmem>>, vector<1x16x128xf32>,
    } else {
    }
    %c0_i32_12 = arith.constant 0 : i32
    %c0_i32_13 = arith.constant 0 : i32
    %c0_i32_14 = arith.constant 0 : i32
    %19 = tpu.memref_slice %arg2[%arg0, %1, %c0_i32_13, %c0_i32_14] : memref<2x16x16x128xf32, #tpu.memory_space<any>> -> memref<1x8x16x128xf32, #tpu.memory_space<any>>
    %20 = tpu.memref_squeeze %19 : memref<1x8x16x128xf32, #tpu.memory_space<any>> -> memref<8x16x128xf32, #tpu.memory_space<any>>
    %c1_i32_15 = arith.constant 1 : i32
    %c0_i32_16 = arith.constant 0 : i32
    %c0_i32_17 = arith.constant 0 : i32
    %21 = tpu.memref_slice %arg8[%c1_i32_15, %c0_i32_16, %c0_i32_17] : memref<10x16x128xf32, #tpu.memory_space<vmem>> -> memref<8x16x128xf32, #tpu.memory_space<vmem>>
    %22 = tpu.memref_slice %arg9[%c0_i32_12] : memref<3x!tpu.dma_semaphore, #tpu.memory_space<semaphore_mem>> -> memref<1x!tpu.dma_semaphore, #tpu.memory_space<semaphore_mem>>
    %23 = tpu.memref_squeeze %22 : memref<1x!tpu.dma_semaphore, #tpu.memory_space<semaphore_mem>> -> memref<!tpu.dma_semaphore, #tpu.memory_space<semaphore_mem>>
    tpu.wait_dma2 semaphore(%23 : memref<!tpu.dma_semaphore, #tpu.memory_space<semaphore_mem>>) src(%20 : memref<8x16x128xf32, #tpu.memory_space<any>>) dst(%21 : memref<8x16x128xf32, #tpu.memory_space<vmem>>)
    %c0 = arith.constant 0 : index
    %c0_18 = arith.constant 0 : index
    %c0_19 = arith.constant 0 : index
    %24 = vector.load %arg8[%c0, %c0_18, %c0_19] : memref<10x16x128xf32, #tpu.memory_space<vmem>>, vector<10x16x128xf32>
    %25 = arith.truncf %24 : vector<10x16x128xf32> to vector<10x16x128xbf16>
    %cst = arith.constant 0.000000e+00 : bf16
    %26 = vector.broadcast %cst : bf16 to vector<10x1x128xbf16>
    %27 = tpu.concatenate %26, %25, %26 in 1 : vector<10x1x128xbf16>, vector<10x16x128xbf16>, vector<10x1x128xbf16> -> vector<10x18x128xbf16>
    %28 = vector.extract_strided_slice %27 {offsets = [0, 0, 0], sizes = [8, 18, 128], strides = [1, 1, 1]} : vector<10x18x128xbf16> to vector<8x18x128xbf16>
    %29 = vector.extract_strided_slice %27 {offsets = [1, 0, 0], sizes = [8, 18, 128], strides = [1, 1, 1]} : vector<10x18x128xbf16> to vector<8x18x128xbf16>
    %30 = vector.extract_strided_slice %27 {offsets = [2, 0, 0], sizes = [8, 18, 128], strides = [1, 1, 1]} : vector<10x18x128xbf16> to vector<8x18x128xbf16>
    %31 = tpu.concatenate %28, %29, %30 in 2 : vector<8x18x128xbf16>, vector<8x18x128xbf16>, vector<8x18x128xbf16> -> vector<8x18x384xbf16>
    %cst_20 = arith.constant 0.000000e+00 : f32
    %32 = vector.broadcast %cst_20 : f32 to vector<8x16x128xf32>
    %33 = vector.extract_strided_slice %31 {offsets = [0, 0, 0], sizes = [8, 16, 384], strides = [1, 1, 1]} : vector<8x18x384xbf16> to vector<8x16x384xbf16>
    %c0_21 = arith.constant 0 : index
    %c0_22 = arith.constant 0 : index
    %c0_23 = arith.constant 0 : index
    %34 = vector.load %arg3[%c0_21, %c0_22, %c0_23] : memref<3x384x128xbf16, #tpu.memory_space<vmem>>, vector<1x384x128xbf16>
    %35 = vector.shape_cast %34 : vector<1x384x128xbf16> to vector<384x128xbf16>
    %cst_24 = arith.constant dense<0.000000e+00> : vector<8x16x128xf32>
    %36 = tpu.matmul %33, %35, %cst_24 {dimension_numbers = #tpu.dot_dimension_numbers<[2], [0], [0, 1], [1], [0, 0, 0, 1, 1, 1], [], []>} : vector<8x16x384xbf16>, vector<384x128xbf16>, vector<8x16x128xf32> -> vector<8x16x128xf32>
    %37 = arith.addf %32, %36 : vector<8x16x128xf32>
    %38 = vector.extract_strided_slice %31 {offsets = [0, 1, 0], sizes = [8, 16, 384], strides = [1, 1, 1]} : vector<8x18x384xbf16> to vector<8x16x384xbf16>
    %c1 = arith.constant 1 : index
    %c0_25 = arith.constant 0 : index
    %c0_26 = arith.constant 0 : index
    %39 = vector.load %arg3[%c1, %c0_25, %c0_26] : memref<3x384x128xbf16, #tpu.memory_space<vmem>>, vector<1x384x128xbf16>
    %40 = vector.shape_cast %39 : vector<1x384x128xbf16> to vector<384x128xbf16>
    %cst_27 = arith.constant dense<0.000000e+00> : vector<8x16x128xf32>
    %41 = tpu.matmul %38, %40, %cst_27 {dimension_numbers = #tpu.dot_dimension_numbers<[2], [0], [0, 1], [1], [0, 0, 0, 1, 1, 1], [], []>} : vector<8x16x384xbf16>, vector<384x128xbf16>, vector<8x16x128xf32> -> vector<8x16x128xf32>
    %42 = arith.addf %37, %41 : vector<8x16x128xf32>
    %43 = vector.extract_strided_slice %31 {offsets = [0, 2, 0], sizes = [8, 16, 384], strides = [1, 1, 1]} : vector<8x18x384xbf16> to vector<8x16x384xbf16>
    %c2 = arith.constant 2 : index
    %c0_28 = arith.constant 0 : index
    %c0_29 = arith.constant 0 : index
    %44 = vector.load %arg3[%c2, %c0_28, %c0_29] : memref<3x384x128xbf16, #tpu.memory_space<vmem>>, vector<1x384x128xbf16>
    %45 = vector.shape_cast %44 : vector<1x384x128xbf16> to vector<384x128xbf16>
    %cst_30 = arith.constant dense<0.000000e+00> : vector<8x16x128xf32>
    %46 = tpu.matmul %43, %45, %cst_30 {dimension_numbers = #tpu.dot_dimension_numbers<[2], [0], [0, 1], [1], [0, 0, 0, 1, 1, 1], [], []>} : vector<8x16x384xbf16>, vector<384x128xbf16>, vector<8x16x128xf32> -> vector<8x16x128xf32>
    %47 = arith.addf %42, %46 : vector<8x16x128xf32>
    %c0_31 = arith.constant 0 : index
    %c0_32 = arith.constant 0 : index
    %c0_33 = arith.constant 0 : index
    %c0_34 = arith.constant 0 : index
    %48 = vector.load %arg6[%c0_31, %c0_32, %c0_33, %c0_34] : memref<1x8x16x128xf32, #tpu.memory_space<vmem>>, vector<1x8x16x128xf32>
    %49 = vector.shape_cast %48 : vector<1x8x16x128xf32> to vector<8x16x128xf32>
    %50 = vector.shape_cast %47 : vector<8x16x128xf32> to vector<1x8x16x128xf32>
    tpu.vector_store %arg6[%c0_31, %c0_32, %c0_33, %c0_34], %50 {strides = array<i32>} : memref<1x8x16x128xf32, #tpu.memory_space<vmem>>, vector<1x8x16x128xf32>,
    %cst_35 = arith.constant dense<0.000000e+00> : vector<128xf32>
    %51 = vector.multi_reduction <add>, %47, %cst_35 [0, 1] : vector<8x16x128xf32> to vector<128xf32>
    %52 = vector.shape_cast %51 : vector<128xf32> to vector<1x1x128xf32>
    %53 = arith.mulf %47, %47 : vector<8x16x128xf32>
    %cst_36 = arith.constant dense<0.000000e+00> : vector<128xf32>
    %54 = vector.multi_reduction <add>, %53, %cst_36 [0, 1] : vector<8x16x128xf32> to vector<128xf32>
    %55 = vector.shape_cast %54 : vector<128xf32> to vector<1x1x128xf32>
    %56 = tpu.concatenate %52, %55 in 1 : vector<1x1x128xf32>, vector<1x1x128xf32> -> vector<1x2x128xf32>
    %57 = vector.shape_cast %56 : vector<1x2x128xf32> to vector<1x1x2x128xf32>
    %c0_37 = arith.constant 0 : index
    %c0_38 = arith.constant 0 : index
    %c0_39 = arith.constant 0 : index
    %c0_40 = arith.constant 0 : index
    %58 = vector.load %arg7[%c0_37, %c0_38, %c0_39, %c0_40] : memref<1x1x2x128xf32, #tpu.memory_space<vmem>>, vector<1x1x2x128xf32>
    tpu.vector_store %arg7[%c0_37, %c0_38, %c0_39, %c0_40], %57 {strides = array<i32>} : memref<1x1x2x128xf32, #tpu.memory_space<vmem>>, vector<1x1x2x128xf32>,
    return
  }
  func.func @transform_1(%arg0: i32, %arg1: i32) -> (i32, i32, i32) {
    %c0_i32 = arith.constant 0 : i32
    %c0_i32_0 = arith.constant 0 : i32
    %c0_i32_1 = arith.constant 0 : i32
    %c0_i32_2 = arith.constant 0 : i32
    return %c0_i32, %c0_i32_0, %c0_i32_1 : i32, i32, i32
  }
  func.func @transform_2(%arg0: i32, %arg1: i32) -> (i32, i32) {
    %c0_i32 = arith.constant 0 : i32
    %c0_i32_0 = arith.constant 0 : i32
    %c0_i32_1 = arith.constant 0 : i32
    return %c0_i32, %c0_i32_0 : i32, i32
  }
  func.func @transform_3(%arg0: i32, %arg1: i32) -> (i32, i32) {
    %c0_i32 = arith.constant 0 : i32
    %c0_i32_0 = arith.constant 0 : i32
    %c0_i32_1 = arith.constant 0 : i32
    return %c0_i32, %c0_i32_0 : i32, i32
  }
  func.func @transform_4(%arg0: i32, %arg1: i32) -> (i32, i32, i32, i32) {
    %c0_i32 = arith.constant 0 : i32
    %c0_i32_0 = arith.constant 0 : i32
    %c0_i32_1 = arith.constant 0 : i32
    return %arg0, %arg1, %c0_i32, %c0_i32_0 : i32, i32, i32, i32
  }
  func.func @transform_5(%arg0: i32, %arg1: i32) -> (i32, i32, i32, i32) {
    %c0_i32 = arith.constant 0 : i32
    %c0_i32_0 = arith.constant 0 : i32
    %c0_i32_1 = arith.constant 0 : i32
    return %arg0, %arg1, %c0_i32, %c0_i32_0 : i32, i32, i32, i32
  }
}

</mosaic_0001>

<llo_original>
// kernel: unet_block_forward.5
$region0: #{unet_block_forward.5}
  #allocation0 [shape = 'u32[]', space=smem, size = 0x4, offset = 0x4, fixed_abs, tag = 'smem constant byte address 0x4 - core index']
  #allocation1 [shape = 'u32[144,128]{1,0:T(1,128)}', space=vmem, size = 0x12000, scoped, tag = 'internal scratch']
  %s0 = inlined_call_operand.vmem [shape: f32[2,16,16,128], index: 0, kind: input, shape index: {}]
  %s1 = inlined_call_operand.vmem [shape: f32[1,128], index: 1, kind: input, shape index: {}]
  %s2 = inlined_call_operand.vmem [shape: f32[1,128], index: 2, kind: input, shape index: {}]
  %s3 = inlined_call_operand.vmem [shape: f32[2,16,16,128], index: 3, kind: output, shape index: {}]
  %s4 = sld [smem:[#allocation0]]
  $region45: #{unet_block_forward.5} parent=0
    _
  %s6 = ssub.s32 1, %s4
  %s7 = scalar_select 0, %s6, %s4
  loop: start=0, step=1, limit=6
  $region2: #{unet_block_forward.5} parent=0 // loop_pre_header
    _
  $region3: #{unet_block_forward.5} parent=0 // loop_header
    %s9 = sphi 0, %s13
    %p10 = scmp.ge.s32.totalorder %s9, 6
    %s16 = sphi 0, %s28
    %s17 = sphi 0, %s24
    %s18 = sphi 0, %s16
    %s19 = sphi 0, %s17
    %s20 = sphi 0, %s18
    %s21 = sphi 0, %s19
    %s33 = sphi 0, %s35
    %s36 = sphi 0, %s33
    %s37 = sphi 0, %s36
    %s53 = sphi 0, %s37
    %s57 = sphi 0, %s57
    %s59 = sphi 0, %s57
    %s60 = sphi 0, %s59
    %s74 = sphi 0, %s60
    %s78 = sphi 0, %s78
    %s80 = sphi 0, %s78
    %s81 = sphi 0, %s80
    %s95 = sphi 0, %s81
    %s103 = sphi 0, %s105
    %s106 = sphi 0, %s103
    %s107 = sphi 0, %s106
    %s123 = sphi 0, %s107
  $region4: #{unet_block_forward.5} parent=0 // loop_header_branch
    %12 = sbr.rel (%p10) target = $region8
  $region5: #{unet_block_forward.5} parent=0 // loop_body
    %s14 = ssub.s32 %s9, 1
    %s15 = ssub.s32 %s9, 2
    %s22 = sadd.s32 1, %s17
    %p23 = scmp.ge.s32.totalorder %s22, 2
    %s24 = scalar_select %p23, 0, %s22
    %s25 = sadd.s32 1, %s16
    %s26 = scalar_select %p23, %s25, %s16
    %p27 = scmp.ge.s32.totalorder %s26, 2
    %s28 = scalar_select %p27, 0, %s26
    %s29 = ssub.s32 %s16, %s28
    %s30 = ssub.s32 %s17, %s24
    %s31 = sor.u32 %s29, %s30
    %p32 = scmp.eq.s32.totalorder %s31, 0
    %s34 = sadd.s32 %s33, 1
    %s35 = scalar_select %p32, %s33, %s34
    %p38 = pneg %p32
    %p39 = scmp.eq.s32.totalorder %s9, 3
    %p40 = por %p38, %p39
    %p41 = scmp.ne.s32.totalorder %s33, %s36
    %p42 = scmp.eq.s32.totalorder %s9, 0
    %p43 = por %p41, %p42
    %p44 = scmp.ne.s32.totalorder %s33, %s36
    %p45 = scmp.eq.s32.totalorder %s14, 3
    %p46 = por %p44, %p45
    %p47 = scmp.ne.s32.totalorder %s36, %s37
    %p48 = scmp.eq.s32.totalorder %s14, 0
    %p49 = por %p47, %p48
    %p50 = scmp.ne.s32.totalorder %s36, %s37
    %p51 = scmp.eq.s32.totalorder %s15, 3
    %p52 = por %p50, %p51
    %p54 = scmp.ne.s32.totalorder %s37, %s53
    %p55 = scmp.eq.s32.totalorder %s15, 0
    %p56 = por %p54, %p55
    %s58 = sadd.s32 %s57, 1
    %p61 = scmp.eq.s32.totalorder %s9, 3
    %p62 = scmp.ne.s32.totalorder %s57, %s59
    %p63 = scmp.eq.s32.totalorder %s9, 0
    %p64 = por %p62, %p63
    %p65 = scmp.ne.s32.totalorder %s57, %s59
    %p66 = scmp.eq.s32.totalorder %s14, 3
    %p67 = por %p65, %p66
    %p68 = scmp.ne.s32.totalorder %s59, %s60
    %p69 = scmp.eq.s32.totalorder %s14, 0
    %p70 = por %p68, %p69
    %p71 = scmp.ne.s32.totalorder %s59, %s60
    %p72 = scmp.eq.s32.totalorder %s15, 3
    %p73 = por %p71, %p72
    %p75 = scmp.ne.s32.totalorder %s60, %s74
    %p76 = scmp.eq.s32.totalorder %s15, 0
    %p77 = por %p75, %p76
    %s79 = sadd.s32 %s78, 1
    %p82 = scmp.eq.s32.totalorder %s9, 3
    %p83 = scmp.ne.s32.totalorder %s78, %s80
    %p84 = scmp.eq.s32.totalorder %s9, 0
    %p85 = por %p83, %p84
    %p86 = scmp.ne.s32.totalorder %s78, %s80
    %p87 = scmp.eq.s32.totalorder %s14, 3
    %p88 = por %p86, %p87
    %p89 = scmp.ne.s32.totalorder %s80, %s81
    %p90 = scmp.eq.s32.totalorder %s14, 0
    %p91 = por %p89, %p90
    %p92 = scmp.ne.s32.totalorder %s80, %s81
    %p93 = scmp.eq.s32.totalorder %s15, 3
    %p94 = por %p92, %p93
    %p96 = scmp.ne.s32.totalorder %s81, %s95
    %p97 = scmp.eq.s32.totalorder %s15, 0
    %p98 = por %p96, %p97
    %s99 = ssub.s32 %s16, %s28
    %s100 = ssub.s32 %s17, %s24
    %s101 = sor.u32 %s99, %s100
    %p102 = scmp.eq.s32.totalorder %s101, 0
    %s104 = sadd.s32 %s103, 1
    %s105 = scalar_select %p102, %s103, %s104
    %p108 = pneg %p102
    %p109 = scmp.eq.s32.totalorder %s9, 3
    %p110 = por %p108, %p109
    %p111 = scmp.ne.s32.totalorder %s103, %s106
    %p112 = scmp.eq.s32.totalorder %s9, 0
    %p113 = por %p111, %p112
    %p114 = scmp.ne.s32.totalorder %s103, %s106
    %p115 = scmp.eq.s32.totalorder %s14, 3
    %p116 = por %p114, %p115
    %p117 = scmp.ne.s32.totalorder %s106, %s107
    %p118 = scmp.eq.s32.totalorder %s14, 0
    %p119 = por %p117, %p118
    %p120 = scmp.ne.s32.totalorder %s106, %s107
    %p121 = scmp.eq.s32.totalorder %s15, 3
    %p122 = por %p120, %p121
    %p124 = scmp.ne.s32.totalorder %s107, %s123
    %p125 = scmp.eq.s32.totalorder %s15, 0
    %p126 = por %p124, %p125
    %p127 = scmp.le.s32.totalorder 1, %s9
    %p128 = scmp.lt.s32.totalorder %s9, 5
    %p129 = pnand %p127, %p128
    %p130 = pneg %p129
    // Predicated region
    $region9: #{unet_block_forward.5} parent=5 // pred_check
      _
    $region10: #{unet_block_forward.5} parent=5 // pred_check_branch
      %132 = sbr.rel (%p129) target = $region12
    $region11: #{unet_block_forward.5} parent=5 // pred_region
      %s133 = ssub.s32 %s9, 1
      // Predicated region
      $region13: #{unet_block_forward.5} parent=11 // pred_check
        %p134 = pneg %p70
      $region14: #{unet_block_forward.5} parent=11 // pred_check_branch
        %136 = sbr.rel (%p134) target = $region16
      $region15: #{unet_block_forward.5} parent=11 // pred_region
        _
      $region16: #{unet_block_forward.5} parent=11 // pred_fallthru
        _
      // Predicated region
      $region17: #{unet_block_forward.5} parent=11 // pred_check
        %p137 = pneg %p91
      $region18: #{unet_block_forward.5} parent=11 // pred_check_branch
        %139 = sbr.rel (%p137) target = $region20
      $region19: #{unet_block_forward.5} parent=11 // pred_region
        _
      $region20: #{unet_block_forward.5} parent=11 // pred_fallthru
        _
    $region12: #{unet_block_forward.5} parent=5 // pred_fallthru
      _
    %p140 = scmp.lt.s32.totalorder %s9, 4
    // Predicated region
    $region21: #{unet_block_forward.5} parent=5 // pred_check
      %p141 = pneg %p140
    $region22: #{unet_block_forward.5} parent=5 // pred_check_branch
      %143 = sbr.rel (%p141) target = $region24
    $region23: #{unet_block_forward.5} parent=5 // pred_region
      // Predicated region
      $region25: #{unet_block_forward.5} parent=23 // pred_check
        %p144 = pneg %p43
      $region26: #{unet_block_forward.5} parent=23 // pred_check_branch
        %146 = sbr.rel (%p144) target = $region28
      $region27: #{unet_block_forward.5} parent=23 // pred_region
        %s147 = smul.u32 8, %s17
        %p148 = scmp.lt.s32.totalorder %s16, 1
        %s149 = scalar_select %p148, %s16, 1
        %p150 = scmp.lt.s32.totalorder %s147, 15
        %s151 = scalar_select %p150, %s147, 15
        %s152 = smul.addr %s151, 2
        %s153 = smul.addr %s149, 32
        %s154 = sadd.s32 %s152, %s153
        %s155 = smul.addr %s154, 8
        %s156 = scalar_lea.vmem %s0, %s155
        %s157 = smul.u32 8, %s17
      $region28: #{unet_block_forward.5} parent=23 // pred_fallthru
        _
    $region24: #{unet_block_forward.5} parent=5 // pred_fallthru
      _
    %p158 = scmp.le.s32.totalorder 1, %s9
    %p159 = scmp.lt.s32.totalorder %s9, 5
    %p160 = pnand %p158, %p159
    %p161 = pneg %p160
    // Predicated region
    $region29: #{unet_block_forward.5} parent=5 // pred_check
      _
    $region30: #{unet_block_forward.5} parent=5 // pred_check_branch
      %163 = sbr.rel (%p160) target = $region32
    $region31: #{unet_block_forward.5} parent=5 // pred_region
      %s164 = ssub.s32 %s9, 1
      %s165 = smul.u32 8, %s19
      %p166 = scmp.lt.s32.totalorder %s18, 1
      %s167 = scalar_select %p166, %s18, 1
      %p168 = scmp.lt.s32.totalorder %s165, 15
      %s169 = scalar_select %p168, %s165, 15
      %s170 = smul.addr %s169, 2
      %s171 = smul.addr %s167, 32
      %s172 = sadd.s32 %s170, %s171
      %s173 = smul.addr %s172, 8
      %s174 = scalar_lea.vmem %s0, %s173
      %p175 = pneg %p49
      %p176 = pneg %p46
      %p177 = pneg %p70
      %p178 = pneg %p67
      %p179 = pneg %p91
      %p180 = pneg %p88
      %p181 = pneg %p119
      %p182 = pneg %p116
      %s183 = smul.u32 8, %s19
      %p184 = scmp.lt.s32.totalorder %s18, 1
      %s185 = scalar_select %p184, %s18, 1
      %p186 = scmp.lt.s32.totalorder %s183, 15
      %s187 = scalar_select %p186, %s183, 15
      %s188 = smul.addr %s187, 2
      %s189 = smul.addr %s185, 32
      %s190 = sadd.s32 %s188, %s189
      %s191 = smul.addr %s190, 8
      %s192 = scalar_lea.vmem %s3, %s191
      %s193 = smul.u32 8, %s19
      %p194 = scmp.lt.s32.totalorder %s18, 1
      %s195 = scalar_select %p194, %s18, 1
      %p196 = scmp.lt.s32.totalorder %s193, 15
      %s197 = scalar_select %p196, %s193, 15
      %s198 = smul.addr %s197, 2
      %s199 = smul.addr %s195, 32
      %s200 = sadd.s32 %s198, %s199
      %s201 = smul.addr %s200, 8
      %s202 = scalar_lea.vmem %s0, %s201
      %s203 = smul.u32 8, %s19
      %s204 = smul.u32 8, %s19
      %p205 = scmp.lt.s32.totalorder %s18, 1
      %s206 = scalar_select %p205, %s18, 1
      %p207 = scmp.lt.s32.totalorder %s204, 15
      %s208 = scalar_select %p207, %s204, 15
      %s209 = smul.addr %s208, 2
      %s210 = smul.addr %s206, 32
      %s211 = sadd.s32 %s209, %s210
      %s212 = smul.addr %s211, 8
      %s213 = scalar_lea.vmem %s3, %s212
      %s214 = smul.u32 8, %s19
      %v215 = vld [vmem:[%s202] sm:$0xff]
      %v216 = vld [vmem:[%s202 + $0x8] sm:$0xff]
      %v217 = vld [vmem:[%s202 + $0x10] sm:$0xff]
      %v218 = vld [vmem:[%s202 + $0x18] sm:$0xff]
      %v219 = vld [vmem:[%s202 + $0x20] sm:$0xff]
      %v220 = vld [vmem:[%s202 + $0x28] sm:$0xff]
      %v221 = vld [vmem:[%s202 + $0x30] sm:$0xff]
      %v222 = vld [vmem:[%s202 + $0x38] sm:$0xff]
      %v223 = vld [vmem:[%s202 + $0x40] sm:$0xff]
      %v224 = vld [vmem:[%s202 + $0x48] sm:$0xff]
      %v225 = vld [vmem:[%s202 + $0x50] sm:$0xff]
      %v226 = vld [vmem:[%s202 + $0x58] sm:$0xff]
      %v227 = vld [vmem:[%s202 + $0x60] sm:$0xff]
      %v228 = vld [vmem:[%s202 + $0x68] sm:$0xff]
      %v229 = vld [vmem:[%s202 + $0x70] sm:$0xff]
      %v230 = vld [vmem:[%s202 + $0x78] sm:$0xff]
      %v231 = vld [vmem:[%s1] sm:$0x1]
      %v233 = vlaneseq
      %v234 = vshrl.u32 %v233, 7
      %v235 = vsub.s32 0, %v234
      %v236 = vrot.slane %v231, %v235
      %v238 = vmul.f32 %v215, %v236
      %v239 = vmul.f32 %v216, %v236
      %v240 = vmul.f32 %v217, %v236
      %v241 = vmul.f32 %v218, %v236
      %v242 = vmul.f32 %v219, %v236
      %v243 = vmul.f32 %v220, %v236
      %v244 = vmul.f32 %v221, %v236
      %v245 = vmul.f32 %v222, %v236
      %v246 = vmul.f32 %v223, %v236
      %v247 = vmul.f32 %v224, %v236
      %v248 = vmul.f32 %v225, %v236
      %v249 = vmul.f32 %v226, %v236
      %v250 = vmul.f32 %v227, %v236
      %v251 = vmul.f32 %v228, %v236
      %v252 = vmul.f32 %v229, %v236
      %v253 = vmul.f32 %v230, %v236
      %v254 = vld [vmem:[%s2] sm:$0x1]
      %v256 = vlaneseq
      %v257 = vshrl.u32 %v256, 7
      %v258 = vsub.s32 0, %v257
      %v259 = vrot.slane %v254, %v258
      %v261 = vadd.f32 %v238, %v259
      %v262 = vadd.f32 %v239, %v259
      %v263 = vadd.f32 %v240, %v259
      %v264 = vadd.f32 %v241, %v259
      %v265 = vadd.f32 %v242, %v259
      %v266 = vadd.f32 %v243, %v259
      %v267 = vadd.f32 %v244, %v259
      %v268 = vadd.f32 %v245, %v259
      %v269 = vadd.f32 %v246, %v259
      %v270 = vadd.f32 %v247, %v259
      %v271 = vadd.f32 %v248, %v259
      %v272 = vadd.f32 %v249, %v259
      %v273 = vadd.f32 %v250, %v259
      %v274 = vadd.f32 %v251, %v259
      %v275 = vadd.f32 %v252, %v259
      %v276 = vadd.f32 %v253, %v259
      %v277 = vmax.f32 %v261, 0.0
      %v278 = vmax.f32 %v262, 0.0
      %v279 = vmax.f32 %v263, 0.0
      %v280 = vmax.f32 %v264, 0.0
      %v281 = vmax.f32 %v265, 0.0
      %v282 = vmax.f32 %v266, 0.0
      %v283 = vmax.f32 %v267, 0.0
      %v284 = vmax.f32 %v268, 0.0
      %v285 = vmax.f32 %v269, 0.0
      %v286 = vmax.f32 %v270, 0.0
      %v287 = vmax.f32 %v271, 0.0
      %v288 = vmax.f32 %v272, 0.0
      %v289 = vmax.f32 %v273, 0.0
      %v290 = vmax.f32 %v274, 0.0
      %v291 = vmax.f32 %v275, 0.0
      %v292 = vmax.f32 %v276, 0.0
      %293 = vst [vmem:[%s213] sm:$0xff] %v277
      %294 = vst [vmem:[%s213 + $0x8] sm:$0xff] %v278
      %295 = vst [vmem:[%s213 + $0x10] sm:$0xff] %v279
      %296 = vst [vmem:[%s213 + $0x18] sm:$0xff] %v280
      %297 = vst [vmem:[%s213 + $0x20] sm:$0xff] %v281
      %298 = vst [vmem:[%s213 + $0x28] sm:$0xff] %v282
      %299 = vst [vmem:[%s213 + $0x30] sm:$0xff] %v283
      %300 = vst [vmem:[%s213 + $0x38] sm:$0xff] %v284
      %301 = vst [vmem:[%s213 + $0x40] sm:$0xff] %v285
      %302 = vst [vmem:[%s213 + $0x48] sm:$0xff] %v286
      %303 = vst [vmem:[%s213 + $0x50] sm:$0xff] %v287
      %304 = vst [vmem:[%s213 + $0x58] sm:$0xff] %v288
      %305 = vst [vmem:[%s213 + $0x60] sm:$0xff] %v289
      %306 = vst [vmem:[%s213 + $0x68] sm:$0xff] %v290
      %307 = vst [vmem:[%s213 + $0x70] sm:$0xff] %v291
      %308 = vst [vmem:[%s213 + $0x78] sm:$0xff] %v292
      %s309 = smul.u32 8, %s19
      %p310 = scmp.lt.s32.totalorder %s18, 1
      %s311 = scalar_select %p310, %s18, 1
      %p312 = scmp.lt.s32.totalorder %s309, 15
      %s313 = scalar_select %p312, %s309, 15
      %s314 = smul.addr %s313, 2
      %s315 = smul.addr %s311, 32
      %s316 = sadd.s32 %s314, %s315
      %s317 = smul.addr %s316, 8
      %s318 = scalar_lea.vmem %s3, %s317
      // Predicated region
      $region33: #{unet_block_forward.5} parent=31 // pred_check
        %p319 = pneg %p116
      $region34: #{unet_block_forward.5} parent=31 // pred_check_branch
        %321 = sbr.rel (%p319) target = $region36
      $region35: #{unet_block_forward.5} parent=31 // pred_region
        %s322 = smul.u32 8, %s19
      $region36: #{unet_block_forward.5} parent=31 // pred_fallthru
        _
    $region32: #{unet_block_forward.5} parent=5 // pred_fallthru
      _
    %p323 = scmp.le.s32.totalorder 2, %s9
    // Predicated region
    $region37: #{unet_block_forward.5} parent=5 // pred_check
      %p324 = pneg %p323
    $region38: #{unet_block_forward.5} parent=5 // pred_check_branch
      %326 = sbr.rel (%p324) target = $region40
    $region39: #{unet_block_forward.5} parent=5 // pred_region
      %s327 = ssub.s32 %s9, 2
      // Predicated region
      $region41: #{unet_block_forward.5} parent=39 // pred_check
        %p328 = pneg %p122
      $region42: #{unet_block_forward.5} parent=39 // pred_check_branch
        %330 = sbr.rel (%p328) target = $region44
      $region43: #{unet_block_forward.5} parent=39 // pred_region
        %s331 = smul.u32 8, %s21
        %p332 = scmp.lt.s32.totalorder %s20, 1
        %s333 = scalar_select %p332, %s20, 1
        %p334 = scmp.lt.s32.totalorder %s331, 15
        %s335 = scalar_select %p334, %s331, 15
        %s336 = smul.addr %s335, 2
        %s337 = smul.addr %s333, 32
        %s338 = sadd.s32 %s336, %s337
        %s339 = smul.addr %s338, 8
        %s340 = scalar_lea.vmem %s3, %s339
      $region44: #{unet_block_forward.5} parent=39 // pred_fallthru
        _
    $region40: #{unet_block_forward.5} parent=5 // pred_fallthru
      _
  $region6: #{unet_block_forward.5} parent=0 // loop_footer
    %s13 = sadd.s32 1, %s9
  $region7: #{unet_block_forward.5} parent=0 // loop_footer_branch
    %8 = sbr.rel target = $region3
  $region8: #{unet_block_forward.5} parent=0 // loop_exit
    _

// kernel: unet_block_forward.3
$region0: #{unet_block_forward.3}
  #allocation0 [shape = 'u32[]', space=smem, size = 0x4, offset = 0x4, fixed_abs, tag = 'smem constant byte address 0x4 - core index']
  #allocation1 [shape = 'u32[144,128]{1,0:T(1,128)}', space=vmem, size = 0x12000, scoped, tag = 'internal scratch']
  #allocation2 [shape = 'f32[10,16,128]{2,1,0:T(8,128)}', space=vmem, size = 0x14000, scoped, tag = 'scratch operand']
  #allocation3 [shape = 's32[3]{0}', space=sflag, size = 0xc, scoped, tag = 'scratch operand']
  #allocation4 [shape = 's32[]', space=sflag, size = 0x4, offset = 0, fixed_abs, tag = 'sflag constant byte address 0x0 - dummy sync flag']
  #allocation5 [shape = 's32[]', space=sflag, size = 0x4, offset = 0, fixed_abs, tag = 'sflag constant byte address 0x0 - dummy sync flag']
  #allocation6 [shape = 's32[]', space=sflag, size = 0x4, offset = 0, fixed_abs, tag = 'sflag constant byte address 0x0 - dummy sync flag']
  %s0 = inlined_call_operand.vmem [shape: f32[2,16,16,128], index: 0, kind: input, shape index: {}]
  %s1 = inlined_call_operand.vmem [shape: bf16[3,384,128], index: 1, kind: input, shape index: {}]
  %s2 = inlined_call_operand.vmem [shape: f32[1,128], index: 2, kind: input, shape index: {}]
  %s3 = inlined_call_operand.vmem [shape: f32[1,128], index: 3, kind: input, shape index: {}]
  %s4 = inlined_call_operand.vmem [shape: f32[2,16,16,128], index: 4, kind: output, shape index: {0}]
  %s5 = inlined_call_operand.vmem [shape: f32[2,2,2,128], index: 5, kind: output, shape index: {1}]
  %6 = xla_tuple %s4, %s5
  %s7 = sld [smem:[#allocation0]]
  $region171: #{unet_block_forward.3} parent=0
    _
  %s9 = ssub.s32 1, %s7
  %s10 = scalar_select 0, %s9, %s7
  loop: start=0, step=1, limit=6
  $region2: #{unet_block_forward.3} parent=0 // loop_pre_header
    _
  $region3: #{unet_block_forward.3} parent=0 // loop_header
    %s12 = sphi 0, %s16
    %p13 = scmp.ge.s32.totalorder %s12, 6
    %s19 = sphi 0, %s31
    %s20 = sphi 0, %s27
    %s21 = sphi 0, %s19
    %s22 = sphi 0, %s20
    %s23 = sphi 0, %s21
    %s24 = sphi 0, %s22
    %s32 = sphi 0, %s32
    %s34 = sphi 0, %s32
    %s35 = sphi 0, %s34
    %s49 = sphi 0, %s35
    %s53 = sphi 0, %s53
    %s55 = sphi 0, %s53
    %s56 = sphi 0, %s55
    %s70 = sphi 0, %s56
    %s74 = sphi 0, %s74
    %s76 = sphi 0, %s74
    %s77 = sphi 0, %s76
    %s91 = sphi 0, %s77
    %s99 = sphi 0, %s101
    %s102 = sphi 0, %s99
    %s103 = sphi 0, %s102
    %s119 = sphi 0, %s103
    %s127 = sphi 0, %s129
    %s130 = sphi 0, %s127
    %s131 = sphi 0, %s130
    %s147 = sphi 0, %s131
  $region4: #{unet_block_forward.3} parent=0 // loop_header_branch
    %15 = sbr.rel (%p13) target = $region8
  $region5: #{unet_block_forward.3} parent=0 // loop_body
    %s17 = ssub.s32 %s12, 1
    %s18 = ssub.s32 %s12, 2
    %s25 = sadd.s32 1, %s20
    %p26 = scmp.ge.s32.totalorder %s25, 2
    %s27 = scalar_select %p26, 0, %s25
    %s28 = sadd.s32 1, %s19
    %s29 = scalar_select %p26, %s28, %s19
    %p30 = scmp.ge.s32.totalorder %s29, 2
    %s31 = scalar_select %p30, 0, %s29
    %s33 = sadd.s32 %s32, 1
    %p36 = scmp.eq.s32.totalorder %s12, 3
    %p37 = scmp.ne.s32.totalorder %s32, %s34
    %p38 = scmp.eq.s32.totalorder %s12, 0
    %p39 = por %p37, %p38
    %p40 = scmp.ne.s32.totalorder %s32, %s34
    %p41 = scmp.eq.s32.totalorder %s17, 3
    %p42 = por %p40, %p41
    %p43 = scmp.ne.s32.totalorder %s34, %s35
    %p44 = scmp.eq.s32.totalorder %s17, 0
    %p45 = por %p43, %p44
    %p46 = scmp.ne.s32.totalorder %s34, %s35
    %p47 = scmp.eq.s32.totalorder %s18, 3
    %p48 = por %p46, %p47
    %p50 = scmp.ne.s32.totalorder %s35, %s49
    %p51 = scmp.eq.s32.totalorder %s18, 0
    %p52 = por %p50, %p51
    %s54 = sadd.s32 %s53, 1
    %p57 = scmp.eq.s32.totalorder %s12, 3
    %p58 = scmp.ne.s32.totalorder %s53, %s55
    %p59 = scmp.eq.s32.totalorder %s12, 0
    %p60 = por %p58, %p59
    %p61 = scmp.ne.s32.totalorder %s53, %s55
    %p62 = scmp.eq.s32.totalorder %s17, 3
    %p63 = por %p61, %p62
    %p64 = scmp.ne.s32.totalorder %s55, %s56
    %p65 = scmp.eq.s32.totalorder %s17, 0
    %p66 = por %p64, %p65
    %p67 = scmp.ne.s32.totalorder %s55, %s56
    %p68 = scmp.eq.s32.totalorder %s18, 3
    %p69 = por %p67, %p68
    %p71 = scmp.ne.s32.totalorder %s56, %s70
    %p72 = scmp.eq.s32.totalorder %s18, 0
    %p73 = por %p71, %p72
    %s75 = sadd.s32 %s74, 1
    %p78 = scmp.eq.s32.totalorder %s12, 3
    %p79 = scmp.ne.s32.totalorder %s74, %s76
    %p80 = scmp.eq.s32.totalorder %s12, 0
    %p81 = por %p79, %p80
    %p82 = scmp.ne.s32.totalorder %s74, %s76
    %p83 = scmp.eq.s32.totalorder %s17, 3
    %p84 = por %p82, %p83
    %p85 = scmp.ne.s32.totalorder %s76, %s77
    %p86 = scmp.eq.s32.totalorder %s17, 0
    %p87 = por %p85, %p86
    %p88 = scmp.ne.s32.totalorder %s76, %s77
    %p89 = scmp.eq.s32.totalorder %s18, 3
    %p90 = por %p88, %p89
    %p92 = scmp.ne.s32.totalorder %s77, %s91
    %p93 = scmp.eq.s32.totalorder %s18, 0
    %p94 = por %p92, %p93
    %s95 = ssub.s32 %s19, %s31
    %s96 = ssub.s32 %s20, %s27
    %s97 = sor.u32 %s95, %s96
    %p98 = scmp.eq.s32.totalorder %s97, 0
    %s100 = sadd.s32 %s99, 1
    %s101 = scalar_select %p98, %s99, %s100
    %p104 = pneg %p98
    %p105 = scmp.eq.s32.totalorder %s12, 3
    %p106 = por %p104, %p105
    %p107 = scmp.ne.s32.totalorder %s99, %s102
    %p108 = scmp.eq.s32.totalorder %s12, 0
    %p109 = por %p107, %p108
    %p110 = scmp.ne.s32.totalorder %s99, %s102
    %p111 = scmp.eq.s32.totalorder %s17, 3
    %p112 = por %p110, %p111
    %p113 = scmp.ne.s32.totalorder %s102, %s103
    %p114 = scmp.eq.s32.totalorder %s17, 0
    %p115 = por %p113, %p114
    %p116 = scmp.ne.s32.totalorder %s102, %s103
    %p117 = scmp.eq.s32.totalorder %s18, 3
    %p118 = por %p116, %p117
    %p120 = scmp.ne.s32.totalorder %s103, %s119
    %p121 = scmp.eq.s32.totalorder %s18, 0
    %p122 = por %p120, %p121
    %s123 = ssub.s32 %s19, %s31
    %s124 = ssub.s32 %s20, %s27
    %s125 = sor.u32 %s123, %s124
    %p126 = scmp.eq.s32.totalorder %s125, 0
    %s128 = sadd.s32 %s127, 1
    %s129 = scalar_select %p126, %s127, %s128
    %p132 = pneg %p126
    %p133 = scmp.eq.s32.totalorder %s12, 3
    %p134 = por %p132, %p133
    %p135 = scmp.ne.s32.totalorder %s127, %s130
    %p136 = scmp.eq.s32.totalorder %s12, 0
    %p137 = por %p135, %p136
    %p138 = scmp.ne.s32.totalorder %s127, %s130
    %p139 = scmp.eq.s32.totalorder %s17, 3
    %p140 = por %p138, %p139
    %p141 = scmp.ne.s32.totalorder %s130, %s131
    %p142 = scmp.eq.s32.totalorder %s17, 0
    %p143 = por %p141, %p142
    %p144 = scmp.ne.s32.totalorder %s130, %s131
    %p145 = scmp.eq.s32.totalorder %s18, 3
    %p146 = por %p144, %p145
    %p148 = scmp.ne.s32.totalorder %s131, %s147
    %p149 = scmp.eq.s32.totalorder %s18, 0
    %p150 = por %p148, %p149
    %p151 = scmp.le.s32.totalorder 1, %s12
    %p152 = scmp.lt.s32.totalorder %s12, 5
    %p153 = pnand %p151, %p152
    %p154 = pneg %p153
    // Predicated region
    $region9: #{unet_block_forward.3} parent=5 // pred_check
      _
    $region10: #{unet_block_forward.3} parent=5 // pred_check_branch
      %156 = sbr.rel (%p153) target = $region12
    $region11: #{unet_block_forward.3} parent=5 // pred_region
      %s157 = ssub.s32 %s12, 1
      // Predicated region
      $region13: #{unet_block_forward.3} parent=11 // pred_check
        %p158 = pneg %p45
      $region14: #{unet_block_forward.3} parent=11 // pred_check_branch
        %160 = sbr.rel (%p158) target = $region16
      $region15: #{unet_block_forward.3} parent=11 // pred_region
        _
      $region16: #{unet_block_forward.3} parent=11 // pred_fallthru
        _
      // Predicated region
      $region17: #{unet_block_forward.3} parent=11 // pred_check
        %p161 = pneg %p66
      $region18: #{unet_block_forward.3} parent=11 // pred_check_branch
        %163 = sbr.rel (%p161) target = $region20
      $region19: #{unet_block_forward.3} parent=11 // pred_region
        _
      $region20: #{unet_block_forward.3} parent=11 // pred_fallthru
        _
      // Predicated region
      $region21: #{unet_block_forward.3} parent=11 // pred_check
        %p164 = pneg %p87
      $region22: #{unet_block_forward.3} parent=11 // pred_check_branch
        %166 = sbr.rel (%p164) target = $region24
      $region23: #{unet_block_forward.3} parent=11 // pred_region
        _
      $region24: #{unet_block_forward.3} parent=11 // pred_fallthru
        _
    $region12: #{unet_block_forward.3} parent=5 // pred_fallthru
      _
    %p167 = scmp.lt.s32.totalorder %s12, 4
    // Predicated region
    $region25: #{unet_block_forward.3} parent=5 // pred_check
      %p168 = pneg %p167
    $region26: #{unet_block_forward.3} parent=5 // pred_check_branch
      %170 = sbr.rel (%p168) target = $region28
    $region27: #{unet_block_forward.3} parent=5 // pred_region
      _
    $region28: #{unet_block_forward.3} parent=5 // pred_fallthru
      _
    %p171 = scmp.le.s32.totalorder 1, %s12
    %p172 = scmp.lt.s32.totalorder %s12, 5
    %p173 = pnand %p171, %p172
    %p174 = pneg %p173
    // Predicated region
    $region29: #{unet_block_forward.3} parent=5 // pred_check
      _
    $region30: #{unet_block_forward.3} parent=5 // pred_check_branch
      %176 = sbr.rel (%p173) target = $region32
    $region31: #{unet_block_forward.3} parent=5 // pred_region
      %s177 = ssub.s32 %s12, 1
      %p178 = pneg %p45
      %p179 = pneg %p42
      %p180 = pneg %p66
      %p181 = pneg %p63
      %p182 = pneg %p87
      %p183 = pneg %p84
      %p184 = pneg %p115
      %p185 = pneg %p112
      %s186 = smul.u32 8, %s22
      %p187 = scmp.lt.s32.totalorder %s21, 1
      %s188 = scalar_select %p187, %s21, 1
      %p189 = scmp.lt.s32.totalorder %s186, 15
      %s190 = scalar_select %p189, %s186, 15
      %s191 = smul.addr %s190, 2
      %s192 = smul.addr %s188, 32
      %s193 = sadd.s32 %s191, %s192
      %s194 = smul.addr %s193, 8
      %s195 = scalar_lea.vmem %s4, %s194
      %p196 = pneg %p143
      %p197 = pneg %p140
      %p198 = scmp.lt.s32.totalorder %s21, 1
      %s199 = scalar_select %p198, %s21, 1
      %p200 = scmp.lt.s32.totalorder %s22, 1
      %s201 = scalar_select %p200, %s22, 1
      %s202 = smul.addr %s199, 2
      %s203 = sadd.s32 %s201, %s202
      %s204 = smul.addr %s203, 2
      %s205 = scalar_lea.vmem %s5, %s204
      %s206 = smul.u32 8, %s22
      %p207 = scmp.lt.s32.totalorder %s21, 1
      %s208 = scalar_select %p207, %s21, 1
      %p209 = scmp.lt.s32.totalorder %s206, 15
      %s210 = scalar_select %p209, %s206, 15
      %s211 = smul.addr %s210, 2
      %s212 = smul.addr %s208, 32
      %s213 = sadd.s32 %s211, %s212
      %s214 = smul.addr %s213, 8
      %s215 = scalar_lea.vmem %s4, %s214
      %s216 = smul.u32 8, %s22
      %p217 = scmp.lt.s32.totalorder %s21, 1
      %s218 = scalar_select %p217, %s21, 1
      %p219 = scmp.lt.s32.totalorder %s22, 1
      %s220 = scalar_select %p219, %s22, 1
      %s221 = smul.addr %s218, 2
      %s222 = sadd.s32 %s220, %s221
      %s223 = smul.addr %s222, 2
      %s224 = scalar_lea.vmem %s5, %s223
      %s226 = smul.u32 %s22, 8
      %s227 = smul.u32 %s226, 16
      %s228 = smul.u32 %s21, 256
      %s229 = sadd.s32 %s227, %s228
      %s230 = scalar_lea.vmem %s0, %s229
      %s231 = scalar_lea.vmem [#allocation2], 16
      %p233 = scmp.lt.u32.totalorder 128, 8
      %p234 = pneg %p233
      // Predicated region
      $region33: #{unet_block_forward.3} parent=31 // pred_check
        _
      $region34: #{unet_block_forward.3} parent=31 // pred_check_branch
        %236 = sbr.rel (%p233) target = $region36
      $region35: #{unet_block_forward.3} parent=31 // pred_region
        %s252 = sand.u32 128, 7
        %p253 = scmp.eq.s32.totalorder %s252, 0
        // Predicated region
        $region48: #{unet_block_forward.3} parent=35 // pred_check
          %p254 = pneg %p253
        $region49: #{unet_block_forward.3} parent=35 // pred_check_branch
          %256 = sbr.rel (%p254) target = $region51
        $region50: #{unet_block_forward.3} parent=35 // pred_region
          loop: start=0, step=1, limit=1
          $region52: #{unet_block_forward.3} parent=50 // loop_pre_header
            _
          $region53: #{unet_block_forward.3} parent=50 // loop_header
            %s258 = sphi 0, %s262
            %p259 = scmp.ge.s32.totalorder %s258, 1
            %s263 = sphi %s230, %s230
            %s264 = sphi %s231, %s231
          $region54: #{unet_block_forward.3} parent=50 // loop_header_branch
            %261 = sbr.rel (%p259) target = $region58
          $region55: #{unet_block_forward.3} parent=50 // loop_body
            %v265 = vld [vmem:[%s263] sm:$0xff]
            %266 = vst [vmem:[%s264] sm:$0xff] %v265
            %v267 = vld [vmem:[%s263 + $0x8] sm:$0xff]
            %268 = vst [vmem:[%s264 + $0x8] sm:$0xff] %v267
            %v269 = vld [vmem:[%s263 + $0x10] sm:$0xff]
            %270 = vst [vmem:[%s264 + $0x10] sm:$0xff] %v269
            %v271 = vld [vmem:[%s263 + $0x18] sm:$0xff]
            %272 = vst [vmem:[%s264 + $0x18] sm:$0xff] %v271
            %v273 = vld [vmem:[%s263 + $0x20] sm:$0xff]
            %274 = vst [vmem:[%s264 + $0x20] sm:$0xff] %v273
            %v275 = vld [vmem:[%s263 + $0x28] sm:$0xff]
            %276 = vst [vmem:[%s264 + $0x28] sm:$0xff] %v275
            %v277 = vld [vmem:[%s263 + $0x30] sm:$0xff]
            %278 = vst [vmem:[%s264 + $0x30] sm:$0xff] %v277
            %v279 = vld [vmem:[%s263 + $0x38] sm:$0xff]
            %280 = vst [vmem:[%s264 + $0x38] sm:$0xff] %v279
            %v281 = vld [vmem:[%s263 + $0x40] sm:$0xff]
            %282 = vst [vmem:[%s264 + $0x40] sm:$0xff] %v281
            %v283 = vld [vmem:[%s263 + $0x48] sm:$0xff]
            %284 = vst [vmem:[%s264 + $0x48] sm:$0xff] %v283
            %v285 = vld [vmem:[%s263 + $0x50] sm:$0xff]
            %286 = vst [vmem:[%s264 + $0x50] sm:$0xff] %v285
            %v287 = vld [vmem:[%s263 + $0x58] sm:$0xff]
            %288 = vst [vmem:[%s264 + $0x58] sm:$0xff] %v287
            %v289 = vld [vmem:[%s263 + $0x60] sm:$0xff]
            %290 = vst [vmem:[%s264 + $0x60] sm:$0xff] %v289
            %v291 = vld [vmem:[%s263 + $0x68] sm:$0xff]
            %292 = vst [vmem:[%s264 + $0x68] sm:$0xff] %v291
            %v293 = vld [vmem:[%s263 + $0x70] sm:$0xff]
            %294 = vst [vmem:[%s264 + $0x70] sm:$0xff] %v293
            %v295 = vld [vmem:[%s263 + $0x78] sm:$0xff]
            %296 = vst [vmem:[%s264 + $0x78] sm:$0xff] %v295
          $region56: #{unet_block_forward.3} parent=50 // loop_footer
            %s262 = sadd.s32 1, %s258
          $region57: #{unet_block_forward.3} parent=50 // loop_footer_branch
            %257 = sbr.rel target = $region53
          $region58: #{unet_block_forward.3} parent=50 // loop_exit
            _
        $region51: #{unet_block_forward.3} parent=35 // pred_fallthru
          _
        %p297 = pneg %p253
        // Predicated region
        $region59: #{unet_block_forward.3} parent=35 // pred_check
          _
        $region60: #{unet_block_forward.3} parent=35 // pred_check_branch
          %299 = sbr.rel (%p253) target = $region62
        $region61: #{unet_block_forward.3} parent=35 // pred_region
          %s300 = sand.u32 128, 7
        $region62: #{unet_block_forward.3} parent=35 // pred_fallthru
          _
      $region36: #{unet_block_forward.3} parent=31 // pred_fallthru
        _
      // Predicated region
      $region37: #{unet_block_forward.3} parent=31 // pred_check
        %p237 = pneg %p233
      $region38: #{unet_block_forward.3} parent=31 // pred_check_branch
        %239 = sbr.rel (%p237) target = $region40
      $region39: #{unet_block_forward.3} parent=31 // pred_region
        %s240 = sshll.u32 1, 128
        %s241 = ssub.s32 %s240, 1
        loop: start=0, step=1, limit=1
        $region41: #{unet_block_forward.3} parent=39 // loop_pre_header
          _
        $region42: #{unet_block_forward.3} parent=39 // loop_header
          %s243 = sphi 0, %s247
          %p244 = scmp.ge.s32.totalorder %s243, 1
          %s248 = sphi %s230, %s230
          %s249 = sphi %s231, %s231
        $region43: #{unet_block_forward.3} parent=39 // loop_header_branch
          %246 = sbr.rel (%p244) target = $region47
        $region44: #{unet_block_forward.3} parent=39 // loop_body
          %v250 = vld [vmem:[%s248] sm:%s241]
          %251 = vst [vmem:[%s249] sm:%s241] %v250
        $region45: #{unet_block_forward.3} parent=39 // loop_footer
          %s247 = sadd.s32 1, %s243
        $region46: #{unet_block_forward.3} parent=39 // loop_footer_branch
          %242 = sbr.rel target = $region42
        $region47: #{unet_block_forward.3} parent=39 // loop_exit
          _
      $region40: #{unet_block_forward.3} parent=31 // pred_fallthru
        _
      // Predicated region
      $region63: #{unet_block_forward.3} parent=31 // pred_check
        _
      $region64: #{unet_block_forward.3} parent=31 // pred_check_branch
        %303 = sbr.rel (0) target = $region66
      $region65: #{unet_block_forward.3} parent=31 // pred_region
        %304 = vsyncadd [#allocation3], 2048
      $region66: #{unet_block_forward.3} parent=31 // pred_fallthru
        _
      %p305 = scmp.gt.s32.totalorder %s22, 0
      // Predicated region
      $region67: #{unet_block_forward.3} parent=31 // pred_check
        %p306 = pneg %p305
      $region68: #{unet_block_forward.3} parent=31 // pred_check_branch
        %308 = sbr.rel (%p306) target = $region70
      $region69: #{unet_block_forward.3} parent=31 // pred_region
        %s309 = ssub.s32 %s226, 1
        %s310 = smul.u32 %s309, 16
        %s311 = sadd.s32 %s310, %s228
        %s312 = scalar_lea.vmem %s0, %s311
        %s313 = scalar_lea.sflag [#allocation3], 1
        %p315 = scmp.lt.u32.totalorder 16, 8
        %p316 = pneg %p315
        // Predicated region
        $region71: #{unet_block_forward.3} parent=69 // pred_check
          _
        $region72: #{unet_block_forward.3} parent=69 // pred_check_branch
          %318 = sbr.rel (%p315) target = $region74
        $region73: #{unet_block_forward.3} parent=69 // pred_region
          %s334 = sand.u32 16, 7
          %p335 = scmp.eq.s32.totalorder %s334, 0
          // Predicated region
          $region86: #{unet_block_forward.3} parent=73 // pred_check
            %p336 = pneg %p335
          $region87: #{unet_block_forward.3} parent=73 // pred_check_branch
            %338 = sbr.rel (%p336) target = $region89
          $region88: #{unet_block_forward.3} parent=73 // pred_region
            loop: start=0, step=1, limit=1
            $region90: #{unet_block_forward.3} parent=88 // loop_pre_header
              _
            $region91: #{unet_block_forward.3} parent=88 // loop_header
              %s340 = sphi 0, %s344
              %p341 = scmp.ge.s32.totalorder %s340, 1
              %s345 = sphi %s312, %s312
              %s346 = sphi [#allocation2], [#allocation2]
            $region92: #{unet_block_forward.3} parent=88 // loop_header_branch
              %343 = sbr.rel (%p341) target = $region96
            $region93: #{unet_block_forward.3} parent=88 // loop_body
              %v347 = vld [vmem:[%s345] sm:$0xff]
              %348 = vst [vmem:[%s346] sm:$0xff] %v347
              %v349 = vld [vmem:[%s345 + $0x8] sm:$0xff]
              %350 = vst [vmem:[%s346 + $0x8] sm:$0xff] %v349
            $region94: #{unet_block_forward.3} parent=88 // loop_footer
              %s344 = sadd.s32 1, %s340
            $region95: #{unet_block_forward.3} parent=88 // loop_footer_branch
              %339 = sbr.rel target = $region91
            $region96: #{unet_block_forward.3} parent=88 // loop_exit
              _
          $region89: #{unet_block_forward.3} parent=73 // pred_fallthru
            _
          %p351 = pneg %p335
          // Predicated region
          $region97: #{unet_block_forward.3} parent=73 // pred_check
            _
          $region98: #{unet_block_forward.3} parent=73 // pred_check_branch
            %353 = sbr.rel (%p335) target = $region100
          $region99: #{unet_block_forward.3} parent=73 // pred_region
            %s354 = sand.u32 16, 7
          $region100: #{unet_block_forward.3} parent=73 // pred_fallthru
            _
        $region74: #{unet_block_forward.3} parent=69 // pred_fallthru
          _
        // Predicated region
        $region75: #{unet_block_forward.3} parent=69 // pred_check
          %p319 = pneg %p315
        $region76: #{unet_block_forward.3} parent=69 // pred_check_branch
          %321 = sbr.rel (%p319) target = $region78
        $region77: #{unet_block_forward.3} parent=69 // pred_region
          %s322 = sshll.u32 1, 16
          %s323 = ssub.s32 %s322, 1
          loop: start=0, step=1, limit=1
          $region79: #{unet_block_forward.3} parent=77 // loop_pre_header
            _
          $region80: #{unet_block_forward.3} parent=77 // loop_header
            %s325 = sphi 0, %s329
            %p326 = scmp.ge.s32.totalorder %s325, 1
            %s330 = sphi %s312, %s312
            %s331 = sphi [#allocation2], [#allocation2]
          $region81: #{unet_block_forward.3} parent=77 // loop_header_branch
            %328 = sbr.rel (%p326) target = $region85
          $region82: #{unet_block_forward.3} parent=77 // loop_body
            %v332 = vld [vmem:[%s330] sm:%s323]
            %333 = vst [vmem:[%s331] sm:%s323] %v332
          $region83: #{unet_block_forward.3} parent=77 // loop_footer
            %s329 = sadd.s32 1, %s325
          $region84: #{unet_block_forward.3} parent=77 // loop_footer_branch
            %324 = sbr.rel target = $region80
          $region85: #{unet_block_forward.3} parent=77 // loop_exit
            _
        $region78: #{unet_block_forward.3} parent=69 // pred_fallthru
          _
        // Predicated region
        $region101: #{unet_block_forward.3} parent=69 // pred_check
          _
        $region102: #{unet_block_forward.3} parent=69 // pred_check_branch
          %357 = sbr.rel (0) target = $region104
        $region103: #{unet_block_forward.3} parent=69 // pred_region
          %358 = vsyncadd %s313, 256
        $region104: #{unet_block_forward.3} parent=69 // pred_fallthru
          _
        %s359 = smul.u32 1, 16
        %s360 = smul.u32 %s359, 1
        %s361 = sshll.u32 %s360, 4
        %362 = dma.done %s313, %s361
      $region70: #{unet_block_forward.3} parent=31 // pred_fallthru
        _
      %p363 = scmp.eq.s32.totalorder %s22, 0
      // Predicated region
      $region105: #{unet_block_forward.3} parent=31 // pred_check
        %p364 = pneg %p363
      $region106: #{unet_block_forward.3} parent=31 // pred_check_branch
        %366 = sbr.rel (%p364) target = $region108
      $region107: #{unet_block_forward.3} parent=31 // pred_region
        %367 = vst [vmem:[#allocation2] sm:$0xff] 0.0
        %368 = vst [vmem:[#allocation2 + $0x8] sm:$0xff] 0.0
      $region108: #{unet_block_forward.3} parent=31 // pred_fallthru
        _
      %p369 = scmp.lt.s32.totalorder %s22, 1
      // Predicated region
      $region109: #{unet_block_forward.3} parent=31 // pred_check
        %p370 = pneg %p369
      $region110: #{unet_block_forward.3} parent=31 // pred_check_branch
        %372 = sbr.rel (%p370) target = $region112
      $region111: #{unet_block_forward.3} parent=31 // pred_region
        %s373 = sadd.s32 %s226, 8
        %s374 = smul.u32 %s373, 16
        %s375 = sadd.s32 %s374, %s228
        %s376 = scalar_lea.vmem %s0, %s375
        %s377 = scalar_lea.vmem [#allocation2], 144
        %s378 = scalar_lea.sflag [#allocation3], 2
        %p380 = scmp.lt.u32.totalorder 16, 8
        %p381 = pneg %p380
        // Predicated region
        $region113: #{unet_block_forward.3} parent=111 // pred_check
          _
        $region114: #{unet_block_forward.3} parent=111 // pred_check_branch
          %383 = sbr.rel (%p380) target = $region116
        $region115: #{unet_block_forward.3} parent=111 // pred_region
          %s399 = sand.u32 16, 7
          %p400 = scmp.eq.s32.totalorder %s399, 0
          // Predicated region
          $region128: #{unet_block_forward.3} parent=115 // pred_check
            %p401 = pneg %p400
          $region129: #{unet_block_forward.3} parent=115 // pred_check_branch
            %403 = sbr.rel (%p401) target = $region131
          $region130: #{unet_block_forward.3} parent=115 // pred_region
            loop: start=0, step=1, limit=1
            $region132: #{unet_block_forward.3} parent=130 // loop_pre_header
              _
            $region133: #{unet_block_forward.3} parent=130 // loop_header
              %s405 = sphi 0, %s409
              %p406 = scmp.ge.s32.totalorder %s405, 1
              %s410 = sphi %s376, %s376
              %s411 = sphi %s377, %s377
            $region134: #{unet_block_forward.3} parent=130 // loop_header_branch
              %408 = sbr.rel (%p406) target = $region138
            $region135: #{unet_block_forward.3} parent=130 // loop_body
              %v412 = vld [vmem:[%s410] sm:$0xff]
              %413 = vst [vmem:[%s411] sm:$0xff] %v412
              %v414 = vld [vmem:[%s410 + $0x8] sm:$0xff]
              %415 = vst [vmem:[%s411 + $0x8] sm:$0xff] %v414
            $region136: #{unet_block_forward.3} parent=130 // loop_footer
              %s409 = sadd.s32 1, %s405
            $region137: #{unet_block_forward.3} parent=130 // loop_footer_branch
              %404 = sbr.rel target = $region133
            $region138: #{unet_block_forward.3} parent=130 // loop_exit
              _
          $region131: #{unet_block_forward.3} parent=115 // pred_fallthru
            _
          %p416 = pneg %p400
          // Predicated region
          $region139: #{unet_block_forward.3} parent=115 // pred_check
            _
          $region140: #{unet_block_forward.3} parent=115 // pred_check_branch
            %418 = sbr.rel (%p400) target = $region142
          $region141: #{unet_block_forward.3} parent=115 // pred_region
            %s419 = sand.u32 16, 7
          $region142: #{unet_block_forward.3} parent=115 // pred_fallthru
            _
        $region116: #{unet_block_forward.3} parent=111 // pred_fallthru
          _
        // Predicated region
        $region117: #{unet_block_forward.3} parent=111 // pred_check
          %p384 = pneg %p380
        $region118: #{unet_block_forward.3} parent=111 // pred_check_branch
          %386 = sbr.rel (%p384) target = $region120
        $region119: #{unet_block_forward.3} parent=111 // pred_region
          %s387 = sshll.u32 1, 16
          %s388 = ssub.s32 %s387, 1
          loop: start=0, step=1, limit=1
          $region121: #{unet_block_forward.3} parent=119 // loop_pre_header
            _
          $region122: #{unet_block_forward.3} parent=119 // loop_header
            %s390 = sphi 0, %s394
            %p391 = scmp.ge.s32.totalorder %s390, 1
            %s395 = sphi %s376, %s376
            %s396 = sphi %s377, %s377
          $region123: #{unet_block_forward.3} parent=119 // loop_header_branch
            %393 = sbr.rel (%p391) target = $region127
          $region124: #{unet_block_forward.3} parent=119 // loop_body
            %v397 = vld [vmem:[%s395] sm:%s388]
            %398 = vst [vmem:[%s396] sm:%s388] %v397
          $region125: #{unet_block_forward.3} parent=119 // loop_footer
            %s394 = sadd.s32 1, %s390
          $region126: #{unet_block_forward.3} parent=119 // loop_footer_branch
            %389 = sbr.rel target = $region122
          $region127: #{unet_block_forward.3} parent=119 // loop_exit
            _
        $region120: #{unet_block_forward.3} parent=111 // pred_fallthru
          _
        // Predicated region
        $region143: #{unet_block_forward.3} parent=111 // pred_check
          _
        $region144: #{unet_block_forward.3} parent=111 // pred_check_branch
          %422 = sbr.rel (0) target = $region146
        $region145: #{unet_block_forward.3} parent=111 // pred_region
          %423 = vsyncadd %s378, 256
        $region146: #{unet_block_forward.3} parent=111 // pred_fallthru
          _
        %s424 = smul.u32 1, 16
        %s425 = smul.u32 %s424, 1
        %s426 = sshll.u32 %s425, 4
        %427 = dma.done %s378, %s426
      $region112: #{unet_block_forward.3} parent=31 // pred_fallthru
        _
      %p428 = scmp.eq.s32.totalorder %s22, 1
      // Predicated region
      $region147: #{unet_block_forward.3} parent=31 // pred_check
        %p429 = pneg %p428
      $region148: #{unet_block_forward.3} parent=31 // pred_check_branch
        %431 = sbr.rel (%p429) target = $region150
      $region149: #{unet_block_forward.3} parent=31 // pred_region
        %s432 = scalar_lea.vmem [#allocation2], 144
        %433 = vst [vmem:[%s432] sm:$0xff] 0.0
        %434 = vst [vmem:[%s432 + $0x8] sm:$0xff] 0.0
      $region150: #{unet_block_forward.3} parent=31 // pred_fallthru
        _
      %s435 = smul.u32 8, 16
      %s436 = smul.u32 %s435, 1
      %s437 = sshll.u32 %s436, 4
      %438 = dma.done [#allocation3], %s437
      %v439 = vld [vmem:[#allocation2] sm:$0xff]
      %v440 = vld [vmem:[#allocation2 + $0x8] sm:$0xff]
      %v441 = vld [vmem:[#allocation2 + $0x10] sm:$0xff]
      %v442 = vld [vmem:[#allocation2 + $0x18] sm:$0xff]
      %v443 = vld [vmem:[#allocation2 + $0x20] sm:$0xff]
      %v444 = vld [vmem:[#allocation2 + $0x28] sm:$0xff]
      %v445 = vld [vmem:[#allocation2 + $0x30] sm:$0xff]
      %v446 = vld [vmem:[#allocation2 + $0x38] sm:$0xff]
      %v447 = vld [vmem:[#allocation2 + $0x40] sm:$0xff]
      %v448 = vld [vmem:[#allocation2 + $0x48] sm:$0xff]
      %v449 = vld [vmem:[#allocation2 + $0x50] sm:$0xff]
      %v450 = vld [vmem:[#allocation2 + $0x58] sm:$0xff]
      %v451 = vld [vmem:[#allocation2 + $0x60] sm:$0xff]
      %v452 = vld [vmem:[#allocation2 + $0x68] sm:$0xff]
      %v453 = vld [vmem:[#allocation2 + $0x70] sm:$0xff]
      %v454 = vld [vmem:[#allocation2 + $0x78] sm:$0xff]
      %v455 = vld [vmem:[#allocation2 + $0x80] sm:$0xff]
      %v456 = vld [vmem:[#allocation2 + $0x88] sm:$0xff]
      %v457 = vld [vmem:[#allocation2 + $0x90] sm:$0xff]
      %v458 = vld [vmem:[#allocation2 + $0x98] sm:$0xff]
      %v459 = vpack.c.bf16 %v440, %v439
      %v460 = vpack.c.bf16 %v442, %v441
      %v461 = vpack.c.bf16 %v444, %v443
      %v462 = vpack.c.bf16 %v446, %v445
      %v463 = vpack.c.bf16 %v448, %v447
      %v464 = vpack.c.bf16 %v450, %v449
      %v465 = vpack.c.bf16 %v452, %v451
      %v466 = vpack.c.bf16 %v454, %v453
      %v467 = vpack.c.bf16 %v456, %v455
      %v468 = vpack.c.bf16 %v458, %v457
      %v470 = vshrl.u32 %v459, 16
      %v472 = vrot.slane %v470, 7
      %v473 = vshll.u32 %v459, 16
      %v475 = vor.u32 %v472, %v473
      %v477 = vshrl.u32 %v460, 16
      %v479 = vrot.slane %v477, 7
      %v480 = vshll.u32 %v460, 16
      %v482 = vor.u32 %v479, %v480
      %v484 = vshrl.u32 %v461, 16
      %v486 = vrot.slane %v484, 7
      %v487 = vshll.u32 %v461, 16
      %v489 = vor.u32 %v486, %v487
      %v491 = vshrl.u32 %v462, 16
      %v493 = vrot.slane %v491, 7
      %v494 = vshll.u32 %v462, 16
      %v496 = vor.u32 %v493, %v494
      %v498 = vshrl.u32 %v463, 16
      %v500 = vrot.slane %v498, 7
      %v501 = vshll.u32 %v463, 16
      %v503 = vor.u32 %v500, %v501
      %v505 = vshrl.u32 %v464, 16
      %v507 = vrot.slane %v505, 7
      %v508 = vshll.u32 %v464, 16
      %v510 = vor.u32 %v507, %v508
      %v512 = vshrl.u32 %v465, 16
      %v514 = vrot.slane %v512, 7
      %v515 = vshll.u32 %v465, 16
      %v517 = vor.u32 %v514, %v515
      %v519 = vshrl.u32 %v466, 16
      %v521 = vrot.slane %v519, 7
      %v522 = vshll.u32 %v466, 16
      %v524 = vor.u32 %v521, %v522
      %v526 = vshrl.u32 %v467, 16
      %v528 = vrot.slane %v526, 7
      %v529 = vshll.u32 %v467, 16
      %v531 = vor.u32 %v528, %v529
      %v533 = vshrl.u32 %v468, 16
      %v535 = vrot.slane %v533, 7
      %v536 = vshll.u32 %v468, 16
      %v538 = vor.u32 %v535, %v536
      %vm559 = vcmask 1040384
      %vm560 = vsmask.f32 256
      %vm561 = vmand %vm559, %vm560
      %v562 = vsel %vm561, 0, %v475
      %v563 = vsel %vm561, 0, %v482
      %v564 = vsel %vm561, 0, %v489
      %v565 = vsel %vm561, 0, %v496
      %v566 = vsel %vm561, 0, %v503
      %v567 = vsel %vm561, 0, %v510
      %v568 = vsel %vm561, 0, %v517
      %v569 = vsel %vm561, 0, %v524
      %v570 = vsel %vm561, 0, %v531
      %v571 = vsel %vm561, 0, %v538
      %v572 = vsel %vm561, %v472, 0
      %v573 = vsel %vm561, %v479, 0
      %v574 = vsel %vm561, %v486, 0
      %v575 = vsel %vm561, %v493, 0
      %v576 = vsel %vm561, %v500, 0
      %v577 = vsel %vm561, %v507, 0
      %v578 = vsel %vm561, %v514, 0
      %v579 = vsel %vm561, %v521, 0
      %v580 = vsel %vm561, %v528, 0
      %v581 = vsel %vm561, %v535, 0
      %v582 = vld [vmem:[%s1] sm:$0xf]
      %v583 = vld [vmem:[%s1 + $0x4] sm:$0xf]
      %v584 = vld [vmem:[%s1 + $0x8] sm:$0xf]
      %v585 = vld [vmem:[%s1 + $0xc] sm:$0xf]
      %v586 = vld [vmem:[%s1 + $0x10] sm:$0xf]
      %v587 = vld [vmem:[%s1 + $0x14] sm:$0xf]
      %v588 = vld [vmem:[%s1 + $0x18] sm:$0xf]
      %v589 = vld [vmem:[%s1 + $0x1c] sm:$0xf]
      %v590 = vld [vmem:[%s1 + $0x20] sm:$0xf]
      %v591 = vld [vmem:[%s1 + $0x24] sm:$0xf]
      %v592 = vld [vmem:[%s1 + $0x28] sm:$0xf]
      %v593 = vld [vmem:[%s1 + $0x2c] sm:$0xf]
      %v594 = vld [vmem:[%s1 + $0x30] sm:$0xf]
      %v595 = vld [vmem:[%s1 + $0x34] sm:$0xf]
      %v596 = vld [vmem:[%s1 + $0x38] sm:$0xf]
      %v597 = vld [vmem:[%s1 + $0x3c] sm:$0xf]
      %v598 = vld [vmem:[%s1 + $0x40] sm:$0xf]
      %v599 = vld [vmem:[%s1 + $0x44] sm:$0xf]
      %v600 = vld [vmem:[%s1 + $0x48] sm:$0xf]
      %v601 = vld [vmem:[%s1 + $0x4c] sm:$0xf]
      %v602 = vld [vmem:[%s1 + $0x50] sm:$0xf]
      %v603 = vld [vmem:[%s1 + $0x54] sm:$0xf]
      %v604 = vld [vmem:[%s1 + $0x58] sm:$0xf]
      %v605 = vld [vmem:[%s1 + $0x5c] sm:$0xf]
      %v606 = vld [vmem:[%s1 + $0x60] sm:$0xf]
      %v607 = vld [vmem:[%s1 + $0x64] sm:$0xf]
      %v608 = vld [vmem:[%s1 + $0x68] sm:$0xf]
      %v609 = vld [vmem:[%s1 + $0x6c] sm:$0xf]
      %v610 = vld [vmem:[%s1 + $0x70] sm:$0xf]
      %v611 = vld [vmem:[%s1 + $0x74] sm:$0xf]
      %v612 = vld [vmem:[%s1 + $0x78] sm:$0xf]
      %v613 = vld [vmem:[%s1 + $0x7c] sm:$0xf]
      %v614 = vld [vmem:[%s1 + $0x80] sm:$0xf]
      %v615 = vld [vmem:[%s1 + $0x84] sm:$0xf]
      %v616 = vld [vmem:[%s1 + $0x88] sm:$0xf]
      %v617 = vld [vmem:[%s1 + $0x8c] sm:$0xf]
      %v618 = vld [vmem:[%s1 + $0x90] sm:$0xf]
      %v619 = vld [vmem:[%s1 + $0x94] sm:$0xf]
      %v620 = vld [vmem:[%s1 + $0x98] sm:$0xf]
      %v621 = vld [vmem:[%s1 + $0x9c] sm:$0xf]
      %v622 = vld [vmem:[%s1 + $0xa0] sm:$0xf]
      %v623 = vld [vmem:[%s1 + $0xa4] sm:$0xf]
      %v624 = vld [vmem:[%s1 + $0xa8] sm:$0xf]
      %v625 = vld [vmem:[%s1 + $0xac] sm:$0xf]
      %v626 = vld [vmem:[%s1 + $0xb0] sm:$0xf]
      %v627 = vld [vmem:[%s1 + $0xb4] sm:$0xf]
      %v628 = vld [vmem:[%s1 + $0xb8] sm:$0xf]
      %v629 = vld [vmem:[%s1 + $0xbc] sm:$0xf]
      %s630 = scalar_lea.vmem %s1, 192
      %v631 = vld [vmem:[%s630] sm:$0xf]
      %v632 = vld [vmem:[%s630 + $0x4] sm:$0xf]
      %v633 = vld [vmem:[%s630 + $0x8] sm:$0xf]
      %v634 = vld [vmem:[%s630 + $0xc] sm:$0xf]
      %v635 = vld [vmem:[%s630 + $0x10] sm:$0xf]
      %v636 = vld [vmem:[%s630 + $0x14] sm:$0xf]
      %v637 = vld [vmem:[%s630 + $0x18] sm:$0xf]
      %v638 = vld [vmem:[%s630 + $0x1c] sm:$0xf]
      %v639 = vld [vmem:[%s630 + $0x20] sm:$0xf]
      %v640 = vld [vmem:[%s630 + $0x24] sm:$0xf]
      %v641 = vld [vmem:[%s630 + $0x28] sm:$0xf]
      %v642 = vld [vmem:[%s630 + $0x2c] sm:$0xf]
      %v643 = vld [vmem:[%s630 + $0x30] sm:$0xf]
      %v644 = vld [vmem:[%s630 + $0x34] sm:$0xf]
      %v645 = vld [vmem:[%s630 + $0x38] sm:$0xf]
      %v646 = vld [vmem:[%s630 + $0x3c] sm:$0xf]
      %v647 = vld [vmem:[%s630 + $0x40] sm:$0xf]
      %v648 = vld [vmem:[%s630 + $0x44] sm:$0xf]
      %v649 = vld [vmem:[%s630 + $0x48] sm:$0xf]
      %v650 = vld [vmem:[%s630 + $0x4c] sm:$0xf]
      %v651 = vld [vmem:[%s630 + $0x50] sm:$0xf]
      %v652 = vld [vmem:[%s630 + $0x54] sm:$0xf]
      %v653 = vld [vmem:[%s630 + $0x58] sm:$0xf]
      %v654 = vld [vmem:[%s630 + $0x5c] sm:$0xf]
      %v655 = vld [vmem:[%s630 + $0x60] sm:$0xf]
      %v656 = vld [vmem:[%s630 + $0x64] sm:$0xf]
      %v657 = vld [vmem:[%s630 + $0x68] sm:$0xf]
      %v658 = vld [vmem:[%s630 + $0x6c] sm:$0xf]
      %v659 = vld [vmem:[%s630 + $0x70] sm:$0xf]
      %v660 = vld [vmem:[%s630 + $0x74] sm:$0xf]
      %v661 = vld [vmem:[%s630 + $0x78] sm:$0xf]
      %v662 = vld [vmem:[%s630 + $0x7c] sm:$0xf]
      %v663 = vld [vmem:[%s630 + $0x80] sm:$0xf]
      %v664 = vld [vmem:[%s630 + $0x84] sm:$0xf]
      %v665 = vld [vmem:[%s630 + $0x88] sm:$0xf]
      %v666 = vld [vmem:[%s630 + $0x8c] sm:$0xf]
      %v667 = vld [vmem:[%s630 + $0x90] sm:$0xf]
      %v668 = vld [vmem:[%s630 + $0x94] sm:$0xf]
      %v669 = vld [vmem:[%s630 + $0x98] sm:$0xf]
      %v670 = vld [vmem:[%s630 + $0x9c] sm:$0xf]
      %v671 = vld [vmem:[%s630 + $0xa0] sm:$0xf]
      %v672 = vld [vmem:[%s630 + $0xa4] sm:$0xf]
      %v673 = vld [vmem:[%s630 + $0xa8] sm:$0xf]
      %v674 = vld [vmem:[%s630 + $0xac] sm:$0xf]
      %v675 = vld [vmem:[%s630 + $0xb0] sm:$0xf]
      %v676 = vld [vmem:[%s630 + $0xb4] sm:$0xf]
      %v677 = vld [vmem:[%s630 + $0xb8] sm:$0xf]
      %v678 = vld [vmem:[%s630 + $0xbc] sm:$0xf]
      %vm679 = vsmask.f32 7424
      %v681 = vshrl.u32 %v562, 16
      %v683 = vshll.u32 %v562, 16
      %v685 = vrot.slane %v683, 1
      %v686 = vor.u32 %v681, %v685
      %v688 = vshll.u32 %v572, 16
      %v690 = vrot.slane %v688, 1
      %v691 = vsel %vm679, %v686, %v690
      %v693 = vshrl.u32 %v563, 16
      %v695 = vshll.u32 %v563, 16
      %v697 = vrot.slane %v695, 1
      %v698 = vor.u32 %v693, %v697
      %v700 = vshll.u32 %v573, 16
      %v702 = vrot.slane %v700, 1
      %v703 = vsel %vm679, %v698, %v702
      %v705 = vshrl.u32 %v564, 16
      %v707 = vshll.u32 %v564, 16
      %v709 = vrot.slane %v707, 1
      %v710 = vor.u32 %v705, %v709
      %v712 = vshll.u32 %v574, 16
      %v714 = vrot.slane %v712, 1
      %v715 = vsel %vm679, %v710, %v714
      %v717 = vshrl.u32 %v565, 16
      %v719 = vshll.u32 %v565, 16
      %v721 = vrot.slane %v719, 1
      %v722 = vor.u32 %v717, %v721
      %v724 = vshll.u32 %v575, 16
      %v726 = vrot.slane %v724, 1
      %v727 = vsel %vm679, %v722, %v726
      %v729 = vshrl.u32 %v566, 16
      %v731 = vshll.u32 %v566, 16
      %v733 = vrot.slane %v731, 1
      %v734 = vor.u32 %v729, %v733
      %v736 = vshll.u32 %v576, 16
      %v738 = vrot.slane %v736, 1
      %v739 = vsel %vm679, %v734, %v738
      %v741 = vshrl.u32 %v567, 16
      %v743 = vshll.u32 %v567, 16
      %v745 = vrot.slane %v743, 1
      %v746 = vor.u32 %v741, %v745
      %v748 = vshll.u32 %v577, 16
      %v750 = vrot.slane %v748, 1
      %v751 = vsel %vm679, %v746, %v750
      %v753 = vshrl.u32 %v568, 16
      %v755 = vshll.u32 %v568, 16
      %v757 = vrot.slane %v755, 1
      %v758 = vor.u32 %v753, %v757
      %v760 = vshll.u32 %v578, 16
      %v762 = vrot.slane %v760, 1
      %v763 = vsel %vm679, %v758, %v762
      %v765 = vshrl.u32 %v569, 16
      %v767 = vshll.u32 %v569, 16
      %v769 = vrot.slane %v767, 1
      %v770 = vor.u32 %v765, %v769
      %v772 = vshll.u32 %v579, 16
      %v774 = vrot.slane %v772, 1
      %v775 = vsel %vm679, %v770, %v774
      %v777 = vshrl.u32 %v570, 16
      %v779 = vshll.u32 %v570, 16
      %v781 = vrot.slane %v779, 1
      %v782 = vor.u32 %v777, %v781
      %v784 = vshll.u32 %v580, 16
      %v786 = vrot.slane %v784, 1
      %v787 = vsel %vm679, %v782, %v786
      %v789 = vshrl.u32 %v571, 16
      %v791 = vshll.u32 %v571, 16
      %v793 = vrot.slane %v791, 1
      %v794 = vor.u32 %v789, %v793
      %v796 = vshll.u32 %v581, 16
      %v798 = vrot.slane %v796, 1
      %v799 = vsel %vm679, %v794, %v798
      %v858 = vunpack.c.l.b16 %v631
      %v859 = vunpack.c.l.b16 %v632
      %v860 = vunpack.c.l.b16 %v633
      %v861 = vunpack.c.l.b16 %v634
      %v862 = vunpack.c.l.b16 %v635
      %v863 = vunpack.c.l.b16 %v636
      %v864 = vunpack.c.l.b16 %v637
      %v865 = vunpack.c.l.b16 %v638
      %v866 = vunpack.c.l.b16 %v639
      %v867 = vunpack.c.l.b16 %v640
      %v868 = vunpack.c.l.b16 %v641
      %v869 = vunpack.c.l.b16 %v642
      %v870 = vunpack.c.l.b16 %v643
      %v871 = vunpack.c.l.b16 %v644
      %v872 = vunpack.c.l.b16 %v645
      %v873 = vunpack.c.l.b16 %v646
      %v874 = vunpack.c.l.b16 %v647
      %v875 = vunpack.c.l.b16 %v648
      %v876 = vunpack.c.l.b16 %v649
      %v877 = vunpack.c.l.b16 %v650
      %v878 = vunpack.c.l.b16 %v651
      %v879 = vunpack.c.l.b16 %v652
      %v880 = vunpack.c.l.b16 %v653
      %v881 = vunpack.c.l.b16 %v654
      %v882 = vunpack.c.l.b16 %v655
      %v883 = vunpack.c.l.b16 %v656
      %v884 = vunpack.c.l.b16 %v657
      %v885 = vunpack.c.l.b16 %v658
      %v886 = vunpack.c.l.b16 %v659
      %v887 = vunpack.c.l.b16 %v660
      %v888 = vunpack.c.l.b16 %v661
      %v889 = vunpack.c.l.b16 %v662
      %v890 = vunpack.c.l.b16 %v663
      %v891 = vunpack.c.l.b16 %v664
      %v892 = vunpack.c.l.b16 %v665
      %v893 = vunpack.c.l.b16 %v666
      %v894 = vunpack.c.l.b16 %v667
      %v895 = vunpack.c.l.b16 %v668
      %v896 = vunpack.c.l.b16 %v669
      %v897 = vunpack.c.l.b16 %v670
      %v898 = vunpack.c.l.b16 %v671
      %v899 = vunpack.c.l.b16 %v672
      %v900 = vunpack.c.l.b16 %v673
      %v901 = vunpack.c.l.b16 %v674
      %v902 = vunpack.c.l.b16 %v675
      %v903 = vunpack.c.l.b16 %v676
      %v904 = vunpack.c.l.b16 %v677
      %v905 = vunpack.c.l.b16 %v678
      %v906 = vpack.c.b16 %v859, %v858
      %v907 = vpack.c.b16 %v861, %v860
      %v908 = vpack.c.b16 %v863, %v862
      %v909 = vpack.c.b16 %v865, %v864
      %v910 = vpack.c.b16 %v867, %v866
      %v911 = vpack.c.b16 %v869, %v868
      %v912 = vpack.c.b16 %v871, %v870
      %v913 = vpack.c.b16 %v873, %v872
      %v914 = vpack.c.b16 %v875, %v874
      %v915 = vpack.c.b16 %v877, %v876
      %v916 = vpack.c.b16 %v879, %v878
      %v917 = vpack.c.b16 %v881, %v880
      %v918 = vpack.c.b16 %v883, %v882
      %v919 = vpack.c.b16 %v885, %v884
      %v920 = vpack.c.b16 %v887, %v886
      %v921 = vpack.c.b16 %v889, %v888
      %v922 = vpack.c.b16 %v891, %v890
      %v923 = vpack.c.b16 %v893, %v892
      %v924 = vpack.c.b16 %v895, %v894
      %v925 = vpack.c.b16 %v897, %v896
      %v926 = vpack.c.b16 %v899, %v898
      %v927 = vpack.c.b16 %v901, %v900
      %v928 = vpack.c.b16 %v903, %v902
      %v929 = vpack.c.b16 %v905, %v904
      %954 = vmatprep.subr.bf16.mxu0 0
      %955 = vmatpush1.bf16.msra.mxu0 %v913
      %956 = vmatprep.subr.bf16.mxu0 0
      %957 = vmatpush1.bf16.msra.mxu0 %v912
      %958 = vmatprep.subr.bf16.mxu0 0
      %959 = vmatpush1.bf16.msra.mxu0 %v911
      %960 = vmatprep.subr.bf16.mxu0 0
      %961 = vmatpush1.bf16.msra.mxu0 %v910
      %962 = vmatprep.subr.bf16.mxu0 0
      %963 = vmatpush1.bf16.msra.mxu0 %v909
      %964 = vmatprep.subr.bf16.mxu0 0
      %965 = vmatpush1.bf16.msra.mxu0 %v908
      %966 = vmatprep.subr.bf16.mxu0 0
      %967 = vmatpush1.bf16.msra.mxu0 %v907
      %968 = vmatprep.subr.bf16.mxu0 0
      %969 = vmatpush1.bf16.msra.mxu0 %v906
      %970 = vmatprep.subr.bf16.mxu0 0
      %971 = vmatpush2.bf16.msra.mxu0 %v921
      %972 = vmatprep.subr.bf16.mxu0 0
      %973 = vmatpush2.bf16.msra.mxu0 %v920
      %974 = vmatprep.subr.bf16.mxu0 0
      %975 = vmatpush2.bf16.msra.mxu0 %v919
      %976 = vmatprep.subr.bf16.mxu0 0
      %977 = vmatpush2.bf16.msra.mxu0 %v918
      %978 = vmatprep.subr.bf16.mxu0 0
      %979 = vmatpush2.bf16.msra.mxu0 %v917
      %980 = vmatprep.subr.bf16.mxu0 0
      %981 = vmatpush2.bf16.msra.mxu0 %v916
      %982 = vmatprep.subr.bf16.mxu0 0
      %983 = vmatpush2.bf16.msra.mxu0 %v915
      %984 = vmatprep.subr.bf16.mxu0 0
      %985 = vmatpush2.bf16.msra.mxu0 %v914
      %986 = vmatprep.mubr.bf16.mxu0 %v703
      %987 = vmatmul.mubr.bf16.gmra.mxu0 %v691
      %v988 = vpop.f32.mrf.mxu0
      %v989 = vadd.f32 0.0, %v988
      %v990 = vpop.f32.mrf.mxu0
      %v991 = vpop.f32.mrf.mxu0
      %v992 = vadd.f32 0.0, %v991
      %v993 = vpop.f32.mrf.mxu0
      %994 = vmatprep.mubr.bf16.mxu0 %v715
      %995 = vmatmul.mubr.bf16.gmra.mxu0 %v703
      %v996 = vpop.f32.mrf.mxu0
      %v997 = vadd.f32 0.0, %v996
      %v998 = vpop.f32.mrf.mxu0
      %v999 = vpop.f32.mrf.mxu0
      %v1000 = vadd.f32 0.0, %v999
      %v1001 = vpop.f32.mrf.mxu0
      %1002 = vmatprep.mubr.bf16.mxu0 %v727
      %1003 = vmatmul.mubr.bf16.gmra.mxu0 %v715
      %v1004 = vpop.f32.mrf.mxu0
      %v1005 = vadd.f32 0.0, %v1004
      %v1006 = vpop.f32.mrf.mxu0
      %v1007 = vpop.f32.mrf.mxu0
      %v1008 = vadd.f32 0.0, %v1007
      %v1009 = vpop.f32.mrf.mxu0
      %1010 = vmatprep.mubr.bf16.mxu0 %v739
      %1011 = vmatmul.mubr.bf16.gmra.mxu0 %v727
      %v1012 = vpop.f32.mrf.mxu0
      %v1013 = vadd.f32 0.0, %v1012
      %v1014 = vpop.f32.mrf.mxu0
      %v1015 = vpop.f32.mrf.mxu0
      %v1016 = vadd.f32 0.0, %v1015
      %v1017 = vpop.f32.mrf.mxu0
      %1018 = vmatprep.mubr.bf16.mxu0 %v751
      %1019 = vmatmul.mubr.bf16.gmra.mxu0 %v739
      %v1020 = vpop.f32.mrf.mxu0
      %v1021 = vadd.f32 0.0, %v1020
      %v1022 = vpop.f32.mrf.mxu0
      %v1023 = vpop.f32.mrf.mxu0
      %v1024 = vadd.f32 0.0, %v1023
      %v1025 = vpop.f32.mrf.mxu0
      %1026 = vmatprep.mubr.bf16.mxu0 %v763
      %1027 = vmatmul.mubr.bf16.gmra.mxu0 %v751
      %v1028 = vpop.f32.mrf.mxu0
      %v1029 = vadd.f32 0.0, %v1028
      %v1030 = vpop.f32.mrf.mxu0
      %v1031 = vpop.f32.mrf.mxu0
      %v1032 = vadd.f32 0.0, %v1031
      %v1033 = vpop.f32.mrf.mxu0
      %1034 = vmatprep.mubr.bf16.mxu0 %v775
      %1035 = vmatmul.mubr.bf16.gmra.mxu0 %v763
      %v1036 = vpop.f32.mrf.mxu0
      %v1037 = vadd.f32 0.0, %v1036
      %v1038 = vpop.f32.mrf.mxu0
      %v1039 = vpop.f32.mrf.mxu0
      %v1040 = vadd.f32 0.0, %v1039
      %v1041 = vpop.f32.mrf.mxu0
      %1042 = vmatprep.mubr.bf16.mxu0 %v787
      %1043 = vmatmul.mubr.bf16.gmra.mxu0 %v775
      %v1044 = vpop.f32.mrf.mxu0
      %v1045 = vadd.f32 0.0, %v1044
      %v1046 = vpop.f32.mrf.mxu0
      %v1047 = vpop.f32.mrf.mxu0
      %v1048 = vadd.f32 0.0, %v1047
      %v1049 = vpop.f32.mrf.mxu0
      %1050 = vdwg.mxu0
      %1051 = vmatprep.subr.bf16.mxu0 0
      %1052 = vmatpush1.bf16.msra.mxu0 %v929
      %1053 = vmatprep.subr.bf16.mxu0 0
      %1054 = vmatpush1.bf16.msra.mxu0 %v928
      %1055 = vmatprep.subr.bf16.mxu0 0
      %1056 = vmatpush1.bf16.msra.mxu0 %v927
      %1057 = vmatprep.subr.bf16.mxu0 0
      %1058 = vmatpush1.bf16.msra.mxu0 %v926
      %1059 = vmatprep.subr.bf16.mxu0 0
      %1060 = vmatpush1.bf16.msra.mxu0 %v925
      %1061 = vmatprep.subr.bf16.mxu0 0
      %1062 = vmatpush1.bf16.msra.mxu0 %v924
      %1063 = vmatprep.subr.bf16.mxu0 0
      %1064 = vmatpush1.bf16.msra.mxu0 %v923
      %1065 = vmatprep.subr.bf16.mxu0 0
      %1066 = vmatpush1.bf16.msra.mxu0 %v922
      %1067 = vmatprep.subr.bf16.mxu0 0
      %1068 = vmatpush2.bf16.msra.mxu0 0
      %1069 = vmatprep.subr.bf16.mxu0 0
      %1070 = vmatpush2.bf16.msra.mxu0 0
      %1071 = vmatprep.subr.bf16.mxu0 0
      %1072 = vmatpush2.bf16.msra.mxu0 0
      %1073 = vmatprep.subr.bf16.mxu0 0
      %1074 = vmatpush2.bf16.msra.mxu0 0
      %1075 = vmatprep.subr.bf16.mxu0 0
      %1076 = vmatpush2.bf16.msra.mxu0 0
      %1077 = vmatprep.subr.bf16.mxu0 0
      %1078 = vmatpush2.bf16.msra.mxu0 0
      %1079 = vmatprep.subr.bf16.mxu0 0
      %1080 = vmatpush2.bf16.msra.mxu0 0
      %1081 = vmatprep.subr.bf16.mxu0 0
      %1082 = vmatpush2.bf16.msra.mxu0 0
      %1083 = vmatprep.mubr.bf16.mxu0 0
      %1084 = vmatmul.mubr.bf16.gmra.mxu0 %v715
      %v1085 = vpop.f32.mrf.mxu0
      %v1086 = vadd.f32 %v989, %v1085
      %v1087 = vpop.f32.mrf.mxu0
      %v1088 = vpop.f32.mrf.mxu0
      %v1089 = vadd.f32 %v992, %v1088
      %v1090 = vpop.f32.mrf.mxu0
      %1091 = vmatprep.mubr.bf16.mxu0 0
      %1092 = vmatmul.mubr.bf16.gmra.mxu0 %v727
      %v1093 = vpop.f32.mrf.mxu0
      %v1094 = vadd.f32 %v997, %v1093
      %v1095 = vpop.f32.mrf.mxu0
      %v1096 = vpop.f32.mrf.mxu0
      %v1097 = vadd.f32 %v1000, %v1096
      %v1098 = vpop.f32.mrf.mxu0
      %1099 = vmatprep.mubr.bf16.mxu0 0
      %1100 = vmatmul.mubr.bf16.gmra.mxu0 %v739
      %v1101 = vpop.f32.mrf.mxu0
      %v1102 = vadd.f32 %v1005, %v1101
      %v1103 = vpop.f32.mrf.mxu0
      %v1104 = vpop.f32.mrf.mxu0
      %v1105 = vadd.f32 %v1008, %v1104
      %v1106 = vpop.f32.mrf.mxu0
      %1107 = vmatprep.mubr.bf16.mxu0 0
      %1108 = vmatmul.mubr.bf16.gmra.mxu0 %v751
      %v1109 = vpop.f32.mrf.mxu0
      %v1110 = vadd.f32 %v1013, %v1109
      %v1111 = vpop.f32.mrf.mxu0
      %v1112 = vpop.f32.mrf.mxu0
      %v1113 = vadd.f32 %v1016, %v1112
      %v1114 = vpop.f32.mrf.mxu0
      %1115 = vmatprep.mubr.bf16.mxu0 0
      %1116 = vmatmul.mubr.bf16.gmra.mxu0 %v763
      %v1117 = vpop.f32.mrf.mxu0
      %v1118 = vadd.f32 %v1021, %v1117
      %v1119 = vpop.f32.mrf.mxu0
      %v1120 = vpop.f32.mrf.mxu0
      %v1121 = vadd.f32 %v1024, %v1120
      %v1122 = vpop.f32.mrf.mxu0
      %1123 = vmatprep.mubr.bf16.mxu0 0
      %1124 = vmatmul.mubr.bf16.gmra.mxu0 %v775
      %v1125 = vpop.f32.mrf.mxu0
      %v1126 = vadd.f32 %v1029, %v1125
      %v1127 = vpop.f32.mrf.mxu0
      %v1128 = vpop.f32.mrf.mxu0
      %v1129 = vadd.f32 %v1032, %v1128
      %v1130 = vpop.f32.mrf.mxu0
      %1131 = vmatprep.mubr.bf16.mxu0 0
      %1132 = vmatmul.mubr.bf16.gmra.mxu0 %v787
      %v1133 = vpop.f32.mrf.mxu0
      %v1134 = vadd.f32 %v1037, %v1133
      %v1135 = vpop.f32.mrf.mxu0
      %v1136 = vpop.f32.mrf.mxu0
      %v1137 = vadd.f32 %v1040, %v1136
      %v1138 = vpop.f32.mrf.mxu0
      %1139 = vmatprep.mubr.bf16.mxu0 0
      %1140 = vmatmul.mubr.bf16.gmra.mxu0 %v799
      %v1141 = vpop.f32.mrf.mxu0
      %v1142 = vadd.f32 %v1045, %v1141
      %v1143 = vpop.f32.mrf.mxu0
      %v1144 = vpop.f32.mrf.mxu0
      %v1145 = vadd.f32 %v1048, %v1144
      %v1146 = vpop.f32.mrf.mxu0
      %1147 = vdwg.mxu0
      %v1196 = vunpack.c.l.b16 %v582
      %v1197 = vunpack.c.l.b16 %v583
      %v1198 = vunpack.c.l.b16 %v584
      %v1199 = vunpack.c.l.b16 %v585
      %v1200 = vunpack.c.l.b16 %v586
      %v1201 = vunpack.c.l.b16 %v587
      %v1202 = vunpack.c.l.b16 %v588
      %v1203 = vunpack.c.l.b16 %v589
      %v1204 = vunpack.c.l.b16 %v590
      %v1205 = vunpack.c.l.b16 %v591
      %v1206 = vunpack.c.l.b16 %v592
      %v1207 = vunpack.c.l.b16 %v593
      %v1208 = vunpack.c.l.b16 %v594
      %v1209 = vunpack.c.l.b16 %v595
      %v1210 = vunpack.c.l.b16 %v596
      %v1211 = vunpack.c.l.b16 %v597
      %v1212 = vunpack.c.l.b16 %v598
      %v1213 = vunpack.c.l.b16 %v599
      %v1214 = vunpack.c.l.b16 %v600
      %v1215 = vunpack.c.l.b16 %v601
      %v1216 = vunpack.c.l.b16 %v602
      %v1217 = vunpack.c.l.b16 %v603
      %v1218 = vunpack.c.l.b16 %v604
      %v1219 = vunpack.c.l.b16 %v605
      %v1220 = vunpack.c.l.b16 %v606
      %v1221 = vunpack.c.l.b16 %v607
      %v1222 = vunpack.c.l.b16 %v608
      %v1223 = vunpack.c.l.b16 %v609
      %v1224 = vunpack.c.l.b16 %v610
      %v1225 = vunpack.c.l.b16 %v611
      %v1226 = vunpack.c.l.b16 %v612
      %v1227 = vunpack.c.l.b16 %v613
      %v1228 = vunpack.c.l.b16 %v614
      %v1229 = vunpack.c.l.b16 %v615
      %v1230 = vunpack.c.l.b16 %v616
      %v1231 = vunpack.c.l.b16 %v617
      %v1232 = vunpack.c.l.b16 %v618
      %v1233 = vunpack.c.l.b16 %v619
      %v1234 = vunpack.c.l.b16 %v620
      %v1235 = vunpack.c.l.b16 %v621
      %v1236 = vunpack.c.l.b16 %v622
      %v1237 = vunpack.c.l.b16 %v623
      %v1238 = vunpack.c.l.b16 %v624
      %v1239 = vunpack.c.l.b16 %v625
      %v1240 = vunpack.c.l.b16 %v626
      %v1241 = vunpack.c.l.b16 %v627
      %v1242 = vunpack.c.l.b16 %v628
      %v1243 = vunpack.c.l.b16 %v629
      %v1244 = vpack.c.b16 %v1197, %v1196
      %v1245 = vpack.c.b16 %v1199, %v1198
      %v1246 = vpack.c.b16 %v1201, %v1200
      %v1247 = vpack.c.b16 %v1203, %v1202
      %v1248 = vpack.c.b16 %v1205, %v1204
      %v1249 = vpack.c.b16 %v1207, %v1206
      %v1250 = vpack.c.b16 %v1209, %v1208
      %v1251 = vpack.c.b16 %v1211, %v1210
      %v1252 = vpack.c.b16 %v1213, %v1212
      %v1253 = vpack.c.b16 %v1215, %v1214
      %v1254 = vpack.c.b16 %v1217, %v1216
      %v1255 = vpack.c.b16 %v1219, %v1218
      %v1256 = vpack.c.b16 %v1221, %v1220
      %v1257 = vpack.c.b16 %v1223, %v1222
      %v1258 = vpack.c.b16 %v1225, %v1224
      %v1259 = vpack.c.b16 %v1227, %v1226
      %v1260 = vpack.c.b16 %v1229, %v1228
      %v1261 = vpack.c.b16 %v1231, %v1230
      %v1262 = vpack.c.b16 %v1233, %v1232
      %v1263 = vpack.c.b16 %v1235, %v1234
      %v1264 = vpack.c.b16 %v1237, %v1236
      %v1265 = vpack.c.b16 %v1239, %v1238
      %v1266 = vpack.c.b16 %v1241, %v1240
      %v1267 = vpack.c.b16 %v1243, %v1242
      %1292 = vmatprep.subr.bf16.mxu0 0
      %1293 = vmatpush1.bf16.msra.mxu0 %v1251
      %1294 = vmatprep.subr.bf16.mxu0 0
      %1295 = vmatpush1.bf16.msra.mxu0 %v1250
      %1296 = vmatprep.subr.bf16.mxu0 0
      %1297 = vmatpush1.bf16.msra.mxu0 %v1249
      %1298 = vmatprep.subr.bf16.mxu0 0
      %1299 = vmatpush1.bf16.msra.mxu0 %v1248
      %1300 = vmatprep.subr.bf16.mxu0 0
      %1301 = vmatpush1.bf16.msra.mxu0 %v1247
      %1302 = vmatprep.subr.bf16.mxu0 0
      %1303 = vmatpush1.bf16.msra.mxu0 %v1246
      %1304 = vmatprep.subr.bf16.mxu0 0
      %1305 = vmatpush1.bf16.msra.mxu0 %v1245
      %1306 = vmatprep.subr.bf16.mxu0 0
      %1307 = vmatpush1.bf16.msra.mxu0 %v1244
      %1308 = vmatprep.subr.bf16.mxu0 0
      %1309 = vmatpush2.bf16.msra.mxu0 %v1259
      %1310 = vmatprep.subr.bf16.mxu0 0
      %1311 = vmatpush2.bf16.msra.mxu0 %v1258
      %1312 = vmatprep.subr.bf16.mxu0 0
      %1313 = vmatpush2.bf16.msra.mxu0 %v1257
      %1314 = vmatprep.subr.bf16.mxu0 0
      %1315 = vmatpush2.bf16.msra.mxu0 %v1256
      %1316 = vmatprep.subr.bf16.mxu0 0
      %1317 = vmatpush2.bf16.msra.mxu0 %v1255
      %1318 = vmatprep.subr.bf16.mxu0 0
      %1319 = vmatpush2.bf16.msra.mxu0 %v1254
      %1320 = vmatprep.subr.bf16.mxu0 0
      %1321 = vmatpush2.bf16.msra.mxu0 %v1253
      %1322 = vmatprep.subr.bf16.mxu0 0
      %1323 = vmatpush2.bf16.msra.mxu0 %v1252
      %1324 = vmatprep.mubr.bf16.mxu0 %v563
      %1325 = vmatmul.mubr.bf16.gmra.mxu0 %v562
      %v1326 = vpop.f32.mrf.mxu0
      %v1327 = vadd.f32 %v1086, %v1326
      %v1328 = vpop.f32.mrf.mxu0
      %v1329 = vpop.f32.mrf.mxu0
      %v1330 = vadd.f32 %v1089, %v1329
      %v1331 = vpop.f32.mrf.mxu0
      %1332 = vmatprep.mubr.bf16.mxu0 %v564
      %1333 = vmatmul.mubr.bf16.gmra.mxu0 %v563
      %v1334 = vpop.f32.mrf.mxu0
      %v1335 = vadd.f32 %v1094, %v1334
      %v1336 = vpop.f32.mrf.mxu0
      %v1337 = vpop.f32.mrf.mxu0
      %v1338 = vadd.f32 %v1097, %v1337
      %v1339 = vpop.f32.mrf.mxu0
      %1340 = vmatprep.mubr.bf16.mxu0 %v565
      %1341 = vmatmul.mubr.bf16.gmra.mxu0 %v564
      %v1342 = vpop.f32.mrf.mxu0
      %v1343 = vadd.f32 %v1102, %v1342
      %v1344 = vpop.f32.mrf.mxu0
      %v1345 = vpop.f32.mrf.mxu0
      %v1346 = vadd.f32 %v1105, %v1345
      %v1347 = vpop.f32.mrf.mxu0
      %1348 = vmatprep.mubr.bf16.mxu0 %v566
      %1349 = vmatmul.mubr.bf16.gmra.mxu0 %v565
      %v1350 = vpop.f32.mrf.mxu0
      %v1351 = vadd.f32 %v1110, %v1350
      %v1352 = vpop.f32.mrf.mxu0
      %v1353 = vpop.f32.mrf.mxu0
      %v1354 = vadd.f32 %v1113, %v1353
      %v1355 = vpop.f32.mrf.mxu0
      %1356 = vmatprep.mubr.bf16.mxu0 %v567
      %1357 = vmatmul.mubr.bf16.gmra.mxu0 %v566
      %v1358 = vpop.f32.mrf.mxu0
      %v1359 = vadd.f32 %v1118, %v1358
      %v1360 = vpop.f32.mrf.mxu0
      %v1361 = vpop.f32.mrf.mxu0
      %v1362 = vadd.f32 %v1121, %v1361
      %v1363 = vpop.f32.mrf.mxu0
      %1364 = vmatprep.mubr.bf16.mxu0 %v568
      %1365 = vmatmul.mubr.bf16.gmra.mxu0 %v567
      %v1366 = vpop.f32.mrf.mxu0
      %v1367 = vadd.f32 %v1126, %v1366
      %v1368 = vpop.f32.mrf.mxu0
      %v1369 = vpop.f32.mrf.mxu0
      %v1370 = vadd.f32 %v1129, %v1369
      %v1371 = vpop.f32.mrf.mxu0
      %1372 = vmatprep.mubr.bf16.mxu0 %v569
      %1373 = vmatmul.mubr.bf16.gmra.mxu0 %v568
      %v1374 = vpop.f32.mrf.mxu0
      %v1375 = vadd.f32 %v1134, %v1374
      %v1376 = vpop.f32.mrf.mxu0
      %v1377 = vpop.f32.mrf.mxu0
      %v1378 = vadd.f32 %v1137, %v1377
      %v1379 = vpop.f32.mrf.mxu0
      %1380 = vmatprep.mubr.bf16.mxu0 %v570
      %1381 = vmatmul.mubr.bf16.gmra.mxu0 %v569
      %v1382 = vpop.f32.mrf.mxu0
      %v1383 = vadd.f32 %v1142, %v1382
      %v1384 = vpop.f32.mrf.mxu0
      %v1385 = vpop.f32.mrf.mxu0
      %v1386 = vadd.f32 %v1145, %v1385
      %v1387 = vpop.f32.mrf.mxu0
      %1388 = vdwg.mxu0
      %1389 = vmatprep.subr.bf16.mxu0 0
      %1390 = vmatpush1.bf16.msra.mxu0 %v1267
      %1391 = vmatprep.subr.bf16.mxu0 0
      %1392 = vmatpush1.bf16.msra.mxu0 %v1266
      %1393 = vmatprep.subr.bf16.mxu0 0
      %1394 = vmatpush1.bf16.msra.mxu0 %v1265
      %1395 = vmatprep.subr.bf16.mxu0 0
      %1396 = vmatpush1.bf16.msra.mxu0 %v1264
      %1397 = vmatprep.subr.bf16.mxu0 0
      %1398 = vmatpush1.bf16.msra.mxu0 %v1263
      %1399 = vmatprep.subr.bf16.mxu0 0
      %1400 = vmatpush1.bf16.msra.mxu0 %v1262
      %1401 = vmatprep.subr.bf16.mxu0 0
      %1402 = vmatpush1.bf16.msra.mxu0 %v1261
      %1403 = vmatprep.subr.bf16.mxu0 0
      %1404 = vmatpush1.bf16.msra.mxu0 %v1260
      %1405 = vmatprep.subr.bf16.mxu0 0
      %1406 = vmatpush2.bf16.msra.mxu0 0
      %1407 = vmatprep.subr.bf16.mxu0 0
      %1408 = vmatpush2.bf16.msra.mxu0 0
      %1409 = vmatprep.subr.bf16.mxu0 0
      %1410 = vmatpush2.bf16.msra.mxu0 0
      %1411 = vmatprep.subr.bf16.mxu0 0
      %1412 = vmatpush2.bf16.msra.mxu0 0
      %1413 = vmatprep.subr.bf16.mxu0 0
      %1414 = vmatpush2.bf16.msra.mxu0 0
      %1415 = vmatprep.subr.bf16.mxu0 0
      %1416 = vmatpush2.bf16.msra.mxu0 0
      %1417 = vmatprep.subr.bf16.mxu0 0
      %1418 = vmatpush2.bf16.msra.mxu0 0
      %1419 = vmatprep.subr.bf16.mxu0 0
      %1420 = vmatpush2.bf16.msra.mxu0 0
      %1421 = vmatprep.mubr.bf16.mxu0 0
      %1422 = vmatmul.mubr.bf16.gmra.mxu0 %v564
      %v1423 = vpop.f32.mrf.mxu0
      %v1424 = vadd.f32 %v1327, %v1423
      %v1425 = vpop.f32.mrf.mxu0
      %v1426 = vpop.f32.mrf.mxu0
      %v1427 = vadd.f32 %v1330, %v1426
      %v1428 = vpop.f32.mrf.mxu0
      %1429 = vmatprep.mubr.bf16.mxu0 0
      %1430 = vmatmul.mubr.bf16.gmra.mxu0 %v565
      %v1431 = vpop.f32.mrf.mxu0
      %v1432 = vadd.f32 %v1335, %v1431
      %v1433 = vpop.f32.mrf.mxu0
      %v1434 = vpop.f32.mrf.mxu0
      %v1435 = vadd.f32 %v1338, %v1434
      %v1436 = vpop.f32.mrf.mxu0
      %1437 = vmatprep.mubr.bf16.mxu0 0
      %1438 = vmatmul.mubr.bf16.gmra.mxu0 %v566
      %v1439 = vpop.f32.mrf.mxu0
      %v1440 = vadd.f32 %v1343, %v1439
      %v1441 = vpop.f32.mrf.mxu0
      %v1442 = vpop.f32.mrf.mxu0
      %v1443 = vadd.f32 %v1346, %v1442
      %v1444 = vpop.f32.mrf.mxu0
      %1445 = vmatprep.mubr.bf16.mxu0 0
      %1446 = vmatmul.mubr.bf16.gmra.mxu0 %v567
      %v1447 = vpop.f32.mrf.mxu0
      %v1448 = vadd.f32 %v1351, %v1447
      %v1449 = vpop.f32.mrf.mxu0
      %v1450 = vpop.f32.mrf.mxu0
      %v1451 = vadd.f32 %v1354, %v1450
      %v1452 = vpop.f32.mrf.mxu0
      %1453 = vmatprep.mubr.bf16.mxu0 0
      %1454 = vmatmul.mubr.bf16.gmra.mxu0 %v568
      %v1455 = vpop.f32.mrf.mxu0
      %v1456 = vadd.f32 %v1359, %v1455
      %v1457 = vpop.f32.mrf.mxu0
      %v1458 = vpop.f32.mrf.mxu0
      %v1459 = vadd.f32 %v1362, %v1458
      %v1460 = vpop.f32.mrf.mxu0
      %1461 = vmatprep.mubr.bf16.mxu0 0
      %1462 = vmatmul.mubr.bf16.gmra.mxu0 %v569
      %v1463 = vpop.f32.mrf.mxu0
      %v1464 = vadd.f32 %v1367, %v1463
      %v1465 = vpop.f32.mrf.mxu0
      %v1466 = vpop.f32.mrf.mxu0
      %v1467 = vadd.f32 %v1370, %v1466
      %v1468 = vpop.f32.mrf.mxu0
      %1469 = vmatprep.mubr.bf16.mxu0 0
      %1470 = vmatmul.mubr.bf16.gmra.mxu0 %v570
      %v1471 = vpop.f32.mrf.mxu0
      %v1472 = vadd.f32 %v1375, %v1471
      %v1473 = vpop.f32.mrf.mxu0
      %v1474 = vpop.f32.mrf.mxu0
      %v1475 = vadd.f32 %v1378, %v1474
      %v1476 = vpop.f32.mrf.mxu0
      %1477 = vmatprep.mubr.bf16.mxu0 0
      %1478 = vmatmul.mubr.bf16.gmra.mxu0 %v571
      %v1479 = vpop.f32.mrf.mxu0
      %v1480 = vadd.f32 %v1383, %v1479
      %v1481 = vpop.f32.mrf.mxu0
      %v1482 = vpop.f32.mrf.mxu0
      %v1483 = vadd.f32 %v1386, %v1482
      %v1484 = vpop.f32.mrf.mxu0
      %1485 = vdwg.mxu0
      %s1486 = scalar_lea.vmem %s1, 384
      %v1487 = vld [vmem:[%s1486] sm:$0xf]
      %v1488 = vld [vmem:[%s1486 + $0x4] sm:$0xf]
      %v1489 = vld [vmem:[%s1486 + $0x8] sm:$0xf]
      %v1490 = vld [vmem:[%s1486 + $0xc] sm:$0xf]
      %v1491 = vld [vmem:[%s1486 + $0x10] sm:$0xf]
      %v1492 = vld [vmem:[%s1486 + $0x14] sm:$0xf]
      %v1493 = vld [vmem:[%s1486 + $0x18] sm:$0xf]
      %v1494 = vld [vmem:[%s1486 + $0x1c] sm:$0xf]
      %v1495 = vld [vmem:[%s1486 + $0x20] sm:$0xf]
      %v1496 = vld [vmem:[%s1486 + $0x24] sm:$0xf]
      %v1497 = vld [vmem:[%s1486 + $0x28] sm:$0xf]
      %v1498 = vld [vmem:[%s1486 + $0x2c] sm:$0xf]
      %v1499 = vld [vmem:[%s1486 + $0x30] sm:$0xf]
      %v1500 = vld [vmem:[%s1486 + $0x34] sm:$0xf]
      %v1501 = vld [vmem:[%s1486 + $0x38] sm:$0xf]
      %v1502 = vld [vmem:[%s1486 + $0x3c] sm:$0xf]
      %v1503 = vld [vmem:[%s1486 + $0x40] sm:$0xf]
      %v1504 = vld [vmem:[%s1486 + $0x44] sm:$0xf]
      %v1505 = vld [vmem:[%s1486 + $0x48] sm:$0xf]
      %v1506 = vld [vmem:[%s1486 + $0x4c] sm:$0xf]
      %v1507 = vld [vmem:[%s1486 + $0x50] sm:$0xf]
      %v1508 = vld [vmem:[%s1486 + $0x54] sm:$0xf]
      %v1509 = vld [vmem:[%s1486 + $0x58] sm:$0xf]
      %v1510 = vld [vmem:[%s1486 + $0x5c] sm:$0xf]
      %v1511 = vld [vmem:[%s1486 + $0x60] sm:$0xf]
      %v1512 = vld [vmem:[%s1486 + $0x64] sm:$0xf]
      %v1513 = vld [vmem:[%s1486 + $0x68] sm:$0xf]
      %v1514 = vld [vmem:[%s1486 + $0x6c] sm:$0xf]
      %v1515 = vld [vmem:[%s1486 + $0x70] sm:$0xf]
      %v1516 = vld [vmem:[%s1486 + $0x74] sm:$0xf]
      %v1517 = vld [vmem:[%s1486 + $0x78] sm:$0xf]
      %v1518 = vld [vmem:[%s1486 + $0x7c] sm:$0xf]
      %v1519 = vld [vmem:[%s1486 + $0x80] sm:$0xf]
      %v1520 = vld [vmem:[%s1486 + $0x84] sm:$0xf]
      %v1521 = vld [vmem:[%s1486 + $0x88] sm:$0xf]
      %v1522 = vld [vmem:[%s1486 + $0x8c] sm:$0xf]
      %v1523 = vld [vmem:[%s1486 + $0x90] sm:$0xf]
      %v1524 = vld [vmem:[%s1486 + $0x94] sm:$0xf]
      %v1525 = vld [vmem:[%s1486 + $0x98] sm:$0xf]
      %v1526 = vld [vmem:[%s1486 + $0x9c] sm:$0xf]
      %v1527 = vld [vmem:[%s1486 + $0xa0] sm:$0xf]
      %v1528 = vld [vmem:[%s1486 + $0xa4] sm:$0xf]
      %v1529 = vld [vmem:[%s1486 + $0xa8] sm:$0xf]
      %v1530 = vld [vmem:[%s1486 + $0xac] sm:$0xf]
      %v1531 = vld [vmem:[%s1486 + $0xb0] sm:$0xf]
      %v1532 = vld [vmem:[%s1486 + $0xb4] sm:$0xf]
      %v1533 = vld [vmem:[%s1486 + $0xb8] sm:$0xf]
      %v1534 = vld [vmem:[%s1486 + $0xbc] sm:$0xf]
      %vm1555 = vcmask 1046528
      %v1556 = vrot.slane %v562, 1
      %v1557 = vrot.slane %v572, 1
      %v1558 = vsel %vm1555, %v1556, %v1557
      %v1559 = vrot.slane %v563, 1
      %v1560 = vrot.slane %v573, 1
      %v1561 = vsel %vm1555, %v1559, %v1560
      %v1562 = vrot.slane %v564, 1
      %v1563 = vrot.slane %v574, 1
      %v1564 = vsel %vm1555, %v1562, %v1563
      %v1565 = vrot.slane %v565, 1
      %v1566 = vrot.slane %v575, 1
      %v1567 = vsel %vm1555, %v1565, %v1566
      %v1568 = vrot.slane %v566, 1
      %v1569 = vrot.slane %v576, 1
      %v1570 = vsel %vm1555, %v1568, %v1569
      %v1571 = vrot.slane %v567, 1
      %v1572 = vrot.slane %v577, 1
      %v1573 = vsel %vm1555, %v1571, %v1572
      %v1574 = vrot.slane %v568, 1
      %v1575 = vrot.slane %v578, 1
      %v1576 = vsel %vm1555, %v1574, %v1575
      %v1577 = vrot.slane %v569, 1
      %v1578 = vrot.slane %v579, 1
      %v1579 = vsel %vm1555, %v1577, %v1578
      %v1580 = vrot.slane %v570, 1
      %v1581 = vrot.slane %v580, 1
      %v1582 = vsel %vm1555, %v1580, %v1581
      %v1583 = vrot.slane %v571, 1
      %v1584 = vrot.slane %v581, 1
      %v1585 = vsel %vm1555, %v1583, %v1584
      %v1644 = vunpack.c.l.b16 %v1487
      %v1645 = vunpack.c.l.b16 %v1488
      %v1646 = vunpack.c.l.b16 %v1489
      %v1647 = vunpack.c.l.b16 %v1490
      %v1648 = vunpack.c.l.b16 %v1491
      %v1649 = vunpack.c.l.b16 %v1492
      %v1650 = vunpack.c.l.b16 %v1493
      %v1651 = vunpack.c.l.b16 %v1494
      %v1652 = vunpack.c.l.b16 %v1495
      %v1653 = vunpack.c.l.b16 %v1496
      %v1654 = vunpack.c.l.b16 %v1497
      %v1655 = vunpack.c.l.b16 %v1498
      %v1656 = vunpack.c.l.b16 %v1499
      %v1657 = vunpack.c.l.b16 %v1500
      %v1658 = vunpack.c.l.b16 %v1501
      %v1659 = vunpack.c.l.b16 %v1502
      %v1660 = vunpack.c.l.b16 %v1503
      %v1661 = vunpack.c.l.b16 %v1504
      %v1662 = vunpack.c.l.b16 %v1505
      %v1663 = vunpack.c.l.b16 %v1506
      %v1664 = vunpack.c.l.b16 %v1507
      %v1665 = vunpack.c.l.b16 %v1508
      %v1666 = vunpack.c.l.b16 %v1509
      %v1667 = vunpack.c.l.b16 %v1510
      %v1668 = vunpack.c.l.b16 %v1511
      %v1669 = vunpack.c.l.b16 %v1512
      %v1670 = vunpack.c.l.b16 %v1513
      %v1671 = vunpack.c.l.b16 %v1514
      %v1672 = vunpack.c.l.b16 %v1515
      %v1673 = vunpack.c.l.b16 %v1516
      %v1674 = vunpack.c.l.b16 %v1517
      %v1675 = vunpack.c.l.b16 %v1518
      %v1676 = vunpack.c.l.b16 %v1519
      %v1677 = vunpack.c.l.b16 %v1520
      %v1678 = vunpack.c.l.b16 %v1521
      %v1679 = vunpack.c.l.b16 %v1522
      %v1680 = vunpack.c.l.b16 %v1523
      %v1681 = vunpack.c.l.b16 %v1524
      %v1682 = vunpack.c.l.b16 %v1525
      %v1683 = vunpack.c.l.b16 %v1526
      %v1684 = vunpack.c.l.b16 %v1527
      %v1685 = vunpack.c.l.b16 %v1528
      %v1686 = vunpack.c.l.b16 %v1529
      %v1687 = vunpack.c.l.b16 %v1530
      %v1688 = vunpack.c.l.b16 %v1531
      %v1689 = vunpack.c.l.b16 %v1532
      %v1690 = vunpack.c.l.b16 %v1533
      %v1691 = vunpack.c.l.b16 %v1534
      %v1692 = vpack.c.b16 %v1645, %v1644
      %v1693 = vpack.c.b16 %v1647, %v1646
      %v1694 = vpack.c.b16 %v1649, %v1648
      %v1695 = vpack.c.b16 %v1651, %v1650
      %v1696 = vpack.c.b16 %v1653, %v1652
      %v1697 = vpack.c.b16 %v1655, %v1654
      %v1698 = vpack.c.b16 %v1657, %v1656
      %v1699 = vpack.c.b16 %v1659, %v1658
      %v1700 = vpack.c.b16 %v1661, %v1660
      %v1701 = vpack.c.b16 %v1663, %v1662
      %v1702 = vpack.c.b16 %v1665, %v1664
      %v1703 = vpack.c.b16 %v1667, %v1666
      %v1704 = vpack.c.b16 %v1669, %v1668
      %v1705 = vpack.c.b16 %v1671, %v1670
      %v1706 = vpack.c.b16 %v1673, %v1672
      %v1707 = vpack.c.b16 %v1675, %v1674
      %v1708 = vpack.c.b16 %v1677, %v1676
      %v1709 = vpack.c.b16 %v1679, %v1678
      %v1710 = vpack.c.b16 %v1681, %v1680
      %v1711 = vpack.c.b16 %v1683, %v1682
      %v1712 = vpack.c.b16 %v1685, %v1684
      %v1713 = vpack.c.b16 %v1687, %v1686
      %v1714 = vpack.c.b16 %v1689, %v1688
      %v1715 = vpack.c.b16 %v1691, %v1690
      %1740 = vmatprep.subr.bf16.mxu0 0
      %1741 = vmatpush1.bf16.msra.mxu0 %v1699
      %1742 = vmatprep.subr.bf16.mxu0 0
      %1743 = vmatpush1.bf16.msra.mxu0 %v1698
      %1744 = vmatprep.subr.bf16.mxu0 0
      %1745 = vmatpush1.bf16.msra.mxu0 %v1697
      %1746 = vmatprep.subr.bf16.mxu0 0
      %1747 = vmatpush1.bf16.msra.mxu0 %v1696
      %1748 = vmatprep.subr.bf16.mxu0 0
      %1749 = vmatpush1.bf16.msra.mxu0 %v1695
      %1750 = vmatprep.subr.bf16.mxu0 0
      %1751 = vmatpush1.bf16.msra.mxu0 %v1694
      %1752 = vmatprep.subr.bf16.mxu0 0
      %1753 = vmatpush1.bf16.msra.mxu0 %v1693
      %1754 = vmatprep.subr.bf16.mxu0 0
      %1755 = vmatpush1.bf16.msra.mxu0 %v1692
      %1756 = vmatprep.subr.bf16.mxu0 0
      %1757 = vmatpush2.bf16.msra.mxu0 %v1707
      %1758 = vmatprep.subr.bf16.mxu0 0
      %1759 = vmatpush2.bf16.msra.mxu0 %v1706
      %1760 = vmatprep.subr.bf16.mxu0 0
      %1761 = vmatpush2.bf16.msra.mxu0 %v1705
      %1762 = vmatprep.subr.bf16.mxu0 0
      %1763 = vmatpush2.bf16.msra.mxu0 %v1704
      %1764 = vmatprep.subr.bf16.mxu0 0
      %1765 = vmatpush2.bf16.msra.mxu0 %v1703
      %1766 = vmatprep.subr.bf16.mxu0 0
      %1767 = vmatpush2.bf16.msra.mxu0 %v1702
      %1768 = vmatprep.subr.bf16.mxu0 0
      %1769 = vmatpush2.bf16.msra.mxu0 %v1701
      %1770 = vmatprep.subr.bf16.mxu0 0
      %1771 = vmatpush2.bf16.msra.mxu0 %v1700
      %1772 = vmatprep.mubr.bf16.mxu0 %v1561
      %1773 = vmatmul.mubr.bf16.gmra.mxu0 %v1558
      %v1774 = vpop.f32.mrf.mxu0
      %v1775 = vadd.f32 0.0, %v1774
      %v1776 = vpop.f32.mrf.mxu0
      %v1777 = vpop.f32.mrf.mxu0
      %v1778 = vadd.f32 0.0, %v1777
      %v1779 = vpop.f32.mrf.mxu0
      %1780 = vmatprep.mubr.bf16.mxu0 %v1564
      %1781 = vmatmul.mubr.bf16.gmra.mxu0 %v1561
      %v1782 = vpop.f32.mrf.mxu0
      %v1783 = vadd.f32 0.0, %v1782
      %v1784 = vpop.f32.mrf.mxu0
      %v1785 = vpop.f32.mrf.mxu0
      %v1786 = vadd.f32 0.0, %v1785
      %v1787 = vpop.f32.mrf.mxu0
      %1788 = vmatprep.mubr.bf16.mxu0 %v1567
      %1789 = vmatmul.mubr.bf16.gmra.mxu0 %v1564
      %v1790 = vpop.f32.mrf.mxu0
      %v1791 = vadd.f32 0.0, %v1790
      %v1792 = vpop.f32.mrf.mxu0
      %v1793 = vpop.f32.mrf.mxu0
      %v1794 = vadd.f32 0.0, %v1793
      %v1795 = vpop.f32.mrf.mxu0
      %1796 = vmatprep.mubr.bf16.mxu0 %v1570
      %1797 = vmatmul.mubr.bf16.gmra.mxu0 %v1567
      %v1798 = vpop.f32.mrf.mxu0
      %v1799 = vadd.f32 0.0, %v1798
      %v1800 = vpop.f32.mrf.mxu0
      %v1801 = vpop.f32.mrf.mxu0
      %v1802 = vadd.f32 0.0, %v1801
      %v1803 = vpop.f32.mrf.mxu0
      %1804 = vmatprep.mubr.bf16.mxu0 %v1573
      %1805 = vmatmul.mubr.bf16.gmra.mxu0 %v1570
      %v1806 = vpop.f32.mrf.mxu0
      %v1807 = vadd.f32 0.0, %v1806
      %v1808 = vpop.f32.mrf.mxu0
      %v1809 = vpop.f32.mrf.mxu0
      %v1810 = vadd.f32 0.0, %v1809
      %v1811 = vpop.f32.mrf.mxu0
      %1812 = vmatprep.mubr.bf16.mxu0 %v1576
      %1813 = vmatmul.mubr.bf16.gmra.mxu0 %v1573
      %v1814 = vpop.f32.mrf.mxu0
      %v1815 = vadd.f32 0.0, %v1814
      %v1816 = vpop.f32.mrf.mxu0
      %v1817 = vpop.f32.mrf.mxu0
      %v1818 = vadd.f32 0.0, %v1817
      %v1819 = vpop.f32.mrf.mxu0
      %1820 = vmatprep.mubr.bf16.mxu0 %v1579
      %1821 = vmatmul.mubr.bf16.gmra.mxu0 %v1576
      %v1822 = vpop.f32.mrf.mxu0
      %v1823 = vadd.f32 0.0, %v1822
      %v1824 = vpop.f32.mrf.mxu0
      %v1825 = vpop.f32.mrf.mxu0
      %v1826 = vadd.f32 0.0, %v1825
      %v1827 = vpop.f32.mrf.mxu0
      %1828 = vmatprep.mubr.bf16.mxu0 %v1582
      %1829 = vmatmul.mubr.bf16.gmra.mxu0 %v1579
      %v1830 = vpop.f32.mrf.mxu0
      %v1831 = vadd.f32 0.0, %v1830
      %v1832 = vpop.f32.mrf.mxu0
      %v1833 = vpop.f32.mrf.mxu0
      %v1834 = vadd.f32 0.0, %v1833
      %v1835 = vpop.f32.mrf.mxu0
      %1836 = vdwg.mxu0
      %1837 = vmatprep.subr.bf16.mxu0 0
      %1838 = vmatpush1.bf16.msra.mxu0 %v1715
      %1839 = vmatprep.subr.bf16.mxu0 0
      %1840 = vmatpush1.bf16.msra.mxu0 %v1714
      %1841 = vmatprep.subr.bf16.mxu0 0
      %1842 = vmatpush1.bf16.msra.mxu0 %v1713
      %1843 = vmatprep.subr.bf16.mxu0 0
      %1844 = vmatpush1.bf16.msra.mxu0 %v1712
      %1845 = vmatprep.subr.bf16.mxu0 0
      %1846 = vmatpush1.bf16.msra.mxu0 %v1711
      %1847 = vmatprep.subr.bf16.mxu0 0
      %1848 = vmatpush1.bf16.msra.mxu0 %v1710
      %1849 = vmatprep.subr.bf16.mxu0 0
      %1850 = vmatpush1.bf16.msra.mxu0 %v1709
      %1851 = vmatprep.subr.bf16.mxu0 0
      %1852 = vmatpush1.bf16.msra.mxu0 %v1708
      %1853 = vmatprep.subr.bf16.mxu0 0
      %1854 = vmatpush2.bf16.msra.mxu0 0
      %1855 = vmatprep.subr.bf16.mxu0 0
      %1856 = vmatpush2.bf16.msra.mxu0 0
      %1857 = vmatprep.subr.bf16.mxu0 0
      %1858 = vmatpush2.bf16.msra.mxu0 0
      %1859 = vmatprep.subr.bf16.mxu0 0
      %1860 = vmatpush2.bf16.msra.mxu0 0
      %1861 = vmatprep.subr.bf16.mxu0 0
      %1862 = vmatpush2.bf16.msra.mxu0 0
      %1863 = vmatprep.subr.bf16.mxu0 0
      %1864 = vmatpush2.bf16.msra.mxu0 0
      %1865 = vmatprep.subr.bf16.mxu0 0
      %1866 = vmatpush2.bf16.msra.mxu0 0
      %1867 = vmatprep.subr.bf16.mxu0 0
      %1868 = vmatpush2.bf16.msra.mxu0 0
      %1869 = vmatprep.mubr.bf16.mxu0 0
      %1870 = vmatmul.mubr.bf16.gmra.mxu0 %v1564
      %v1871 = vpop.f32.mrf.mxu0
      %v1872 = vadd.f32 %v1775, %v1871
      %v1873 = vpop.f32.mrf.mxu0
      %v1874 = vpop.f32.mrf.mxu0
      %v1875 = vadd.f32 %v1778, %v1874
      %v1876 = vpop.f32.mrf.mxu0
      %1877 = vmatprep.mubr.bf16.mxu0 0
      %1878 = vmatmul.mubr.bf16.gmra.mxu0 %v1567
      %v1879 = vpop.f32.mrf.mxu0
      %v1880 = vadd.f32 %v1783, %v1879
      %v1881 = vpop.f32.mrf.mxu0
      %v1882 = vpop.f32.mrf.mxu0
      %v1883 = vadd.f32 %v1786, %v1882
      %v1884 = vpop.f32.mrf.mxu0
      %1885 = vmatprep.mubr.bf16.mxu0 0
      %1886 = vmatmul.mubr.bf16.gmra.mxu0 %v1570
      %v1887 = vpop.f32.mrf.mxu0
      %v1888 = vadd.f32 %v1791, %v1887
      %v1889 = vpop.f32.mrf.mxu0
      %v1890 = vpop.f32.mrf.mxu0
      %v1891 = vadd.f32 %v1794, %v1890
      %v1892 = vpop.f32.mrf.mxu0
      %1893 = vmatprep.mubr.bf16.mxu0 0
      %1894 = vmatmul.mubr.bf16.gmra.mxu0 %v1573
      %v1895 = vpop.f32.mrf.mxu0
      %v1896 = vadd.f32 %v1799, %v1895
      %v1897 = vpop.f32.mrf.mxu0
      %v1898 = vpop.f32.mrf.mxu0
      %v1899 = vadd.f32 %v1802, %v1898
      %v1900 = vpop.f32.mrf.mxu0
      %1901 = vmatprep.mubr.bf16.mxu0 0
      %1902 = vmatmul.mubr.bf16.gmra.mxu0 %v1576
      %v1903 = vpop.f32.mrf.mxu0
      %v1904 = vadd.f32 %v1807, %v1903
      %v1905 = vpop.f32.mrf.mxu0
      %v1906 = vpop.f32.mrf.mxu0
      %v1907 = vadd.f32 %v1810, %v1906
      %v1908 = vpop.f32.mrf.mxu0
      %1909 = vmatprep.mubr.bf16.mxu0 0
      %1910 = vmatmul.mubr.bf16.gmra.mxu0 %v1579
      %v1911 = vpop.f32.mrf.mxu0
      %v1912 = vadd.f32 %v1815, %v1911
      %v1913 = vpop.f32.mrf.mxu0
      %v1914 = vpop.f32.mrf.mxu0
      %v1915 = vadd.f32 %v1818, %v1914
      %v1916 = vpop.f32.mrf.mxu0
      %1917 = vmatprep.mubr.bf16.mxu0 0
      %1918 = vmatmul.mubr.bf16.gmra.mxu0 %v1582
      %v1919 = vpop.f32.mrf.mxu0
      %v1920 = vadd.f32 %v1823, %v1919
      %v1921 = vpop.f32.mrf.mxu0
      %v1922 = vpop.f32.mrf.mxu0
      %v1923 = vadd.f32 %v1826, %v1922
      %v1924 = vpop.f32.mrf.mxu0
      %1925 = vmatprep.mubr.bf16.mxu0 0
      %1926 = vmatmul.mubr.bf16.gmra.mxu0 %v1585
      %v1927 = vpop.f32.mrf.mxu0
      %v1928 = vadd.f32 %v1831, %v1927
      %v1929 = vpop.f32.mrf.mxu0
      %v1930 = vpop.f32.mrf.mxu0
      %v1931 = vadd.f32 %v1834, %v1930
      %v1932 = vpop.f32.mrf.mxu0
      %1933 = vdwg.mxu0
      %v1934 = vadd.f32 %v1424, %v1872
      %v1935 = vadd.f32 %v1427, %v1875
      %v1936 = vadd.f32 %v1432, %v1880
      %v1937 = vadd.f32 %v1435, %v1883
      %v1938 = vadd.f32 %v1440, %v1888
      %v1939 = vadd.f32 %v1443, %v1891
      %v1940 = vadd.f32 %v1448, %v1896
      %v1941 = vadd.f32 %v1451, %v1899
      %v1942 = vadd.f32 %v1456, %v1904
      %v1943 = vadd.f32 %v1459, %v1907
      %v1944 = vadd.f32 %v1464, %v1912
      %v1945 = vadd.f32 %v1467, %v1915
      %v1946 = vadd.f32 %v1472, %v1920
      %v1947 = vadd.f32 %v1475, %v1923
      %v1948 = vadd.f32 %v1480, %v1928
      %v1949 = vadd.f32 %v1483, %v1931
      %1950 = vst [vmem:[%s215] sm:$0xff] %v1934
      %1951 = vst [vmem:[%s215 + $0x8] sm:$0xff] %v1935
      %1952 = vst [vmem:[%s215 + $0x10] sm:$0xff] %v1936
      %1953 = vst [vmem:[%s215 + $0x18] sm:$0xff] %v1937
      %1954 = vst [vmem:[%s215 + $0x20] sm:$0xff] %v1938
      %1955 = vst [vmem:[%s215 + $0x28] sm:$0xff] %v1939
      %1956 = vst [vmem:[%s215 + $0x30] sm:$0xff] %v1940
      %1957 = vst [vmem:[%s215 + $0x38] sm:$0xff] %v1941
      %1958 = vst [vmem:[%s215 + $0x40] sm:$0xff] %v1942
      %1959 = vst [vmem:[%s215 + $0x48] sm:$0xff] %v1943
      %1960 = vst [vmem:[%s215 + $0x50] sm:$0xff] %v1944
      %1961 = vst [vmem:[%s215 + $0x58] sm:$0xff] %v1945
      %1962 = vst [vmem:[%s215 + $0x60] sm:$0xff] %v1946
      %1963 = vst [vmem:[%s215 + $0x68] sm:$0xff] %v1947
      %1964 = vst [vmem:[%s215 + $0x70] sm:$0xff] %v1948
      %1965 = vst [vmem:[%s215 + $0x78] sm:$0xff] %v1949
      %v1966 = vadd.f32 %v1934, %v1935
      %v1967 = vadd.f32 %v1966, %v1936
      %v1968 = vadd.f32 %v1967, %v1937
      %v1969 = vadd.f32 %v1968, %v1938
      %v1970 = vadd.f32 %v1969, %v1939
      %v1971 = vadd.f32 %v1970, %v1940
      %v1972 = vadd.f32 %v1971, %v1941
      %v1973 = vadd.f32 %v1972, %v1942
      %v1974 = vadd.f32 %v1973, %v1943
      %v1975 = vadd.f32 %v1974, %v1944
      %v1976 = vadd.f32 %v1975, %v1945
      %v1977 = vadd.f32 %v1976, %v1946
      %v1978 = vadd.f32 %v1977, %v1947
      %v1979 = vadd.f32 %v1978, %v1948
      %v1980 = vadd.f32 %v1979, %v1949
      %v1981 = vrot.slane %v1980, 4
      %v1982 = vadd.f32 %v1980, %v1981
      %v1983 = vrot.slane %v1982, 2
      %v1984 = vadd.f32 %v1982, %v1983
      %v1985 = vrot.slane %v1984, 1
      %v1986 = vadd.f32 %v1984, %v1985
      %v1987 = vmul.f32 %v1934, %v1934
      %v1988 = vmul.f32 %v1935, %v1935
      %v1989 = vmul.f32 %v1936, %v1936
      %v1990 = vmul.f32 %v1937, %v1937
      %v1991 = vmul.f32 %v1938, %v1938
      %v1992 = vmul.f32 %v1939, %v1939
      %v1993 = vmul.f32 %v1940, %v1940
      %v1994 = vmul.f32 %v1941, %v1941
      %v1995 = vmul.f32 %v1942, %v1942
      %v1996 = vmul.f32 %v1943, %v1943
      %v1997 = vmul.f32 %v1944, %v1944
      %v1998 = vmul.f32 %v1945, %v1945
      %v1999 = vmul.f32 %v1946, %v1946
      %v2000 = vmul.f32 %v1947, %v1947
      %v2001 = vmul.f32 %v1948, %v1948
      %v2002 = vmul.f32 %v1949, %v1949
      %v2003 = vadd.f32 %v1987, %v1988
      %v2004 = vadd.f32 %v2003, %v1989
      %v2005 = vadd.f32 %v2004, %v1990
      %v2006 = vadd.f32 %v2005, %v1991
      %v2007 = vadd.f32 %v2006, %v1992
      %v2008 = vadd.f32 %v2007, %v1993
      %v2009 = vadd.f32 %v2008, %v1994
      %v2010 = vadd.f32 %v2009, %v1995
      %v2011 = vadd.f32 %v2010, %v1996
      %v2012 = vadd.f32 %v2011, %v1997
      %v2013 = vadd.f32 %v2012, %v1998
      %v2014 = vadd.f32 %v2013, %v1999
      %v2015 = vadd.f32 %v2014, %v2000
      %v2016 = vadd.f32 %v2015, %v2001
      %v2017 = vadd.f32 %v2016, %v2002
      %v2018 = vrot.slane %v2017, 4
      %v2019 = vadd.f32 %v2017, %v2018
      %v2020 = vrot.slane %v2019, 2
      %v2021 = vadd.f32 %v2019, %v2020
      %v2022 = vrot.slane %v2021, 1
      %v2023 = vadd.f32 %v2021, %v2022
      %vm2024 = vcmask 1040384
      %v2025 = vsel %vm2024, %v1986, %v2023
      %2026 = vst [vmem:[%s224] sm:$0x3] %v2025
      %s2027 = smul.u32 8, %s22
      %p2028 = scmp.lt.s32.totalorder %s21, 1
      %s2029 = scalar_select %p2028, %s21, 1
      %p2030 = scmp.lt.s32.totalorder %s2027, 15
      %s2031 = scalar_select %p2030, %s2027, 15
      %s2032 = smul.addr %s2031, 2
      %s2033 = smul.addr %s2029, 32
      %s2034 = sadd.s32 %s2032, %s2033
      %s2035 = smul.addr %s2034, 8
      %s2036 = scalar_lea.vmem %s4, %s2035
      %p2037 = scmp.lt.s32.totalorder %s21, 1
      %s2038 = scalar_select %p2037, %s21, 1
      %p2039 = scmp.lt.s32.totalorder %s22, 1
      %s2040 = scalar_select %p2039, %s22, 1
      %s2041 = smul.addr %s2038, 2
      %s2042 = sadd.s32 %s2040, %s2041
      %s2043 = smul.addr %s2042, 2
      %s2044 = scalar_lea.vmem %s5, %s2043
      // Predicated region
      $region151: #{unet_block_forward.3} parent=31 // pred_check
        %p2045 = pneg %p112
      $region152: #{unet_block_forward.3} parent=31 // pred_check_branch
        %2047 = sbr.rel (%p2045) target = $region154
      $region153: #{unet_block_forward.3} parent=31 // pred_region
        %s2048 = smul.u32 8, %s22
      $region154: #{unet_block_forward.3} parent=31 // pred_fallthru
        _
      // Predicated region
      $region155: #{unet_block_forward.3} parent=31 // pred_check
        %p2049 = pneg %p140
      $region156: #{unet_block_forward.3} parent=31 // pred_check_branch
        %2051 = sbr.rel (%p2049) target = $region158
      $region157: #{unet_block_forward.3} parent=31 // pred_region
        _
      $region158: #{unet_block_forward.3} parent=31 // pred_fallthru
        _
    $region32: #{unet_block_forward.3} parent=5 // pred_fallthru
      _
    %p2052 = scmp.le.s32.totalorder 2, %s12
    // Predicated region
    $region159: #{unet_block_forward.3} parent=5 // pred_check
      %p2053 = pneg %p2052
    $region160: #{unet_block_forward.3} parent=5 // pred_check_branch
      %2055 = sbr.rel (%p2053) target = $region162
    $region161: #{unet_block_forward.3} parent=5 // pred_region
      %s2056 = ssub.s32 %s12, 2
      // Predicated region
      $region163: #{unet_block_forward.3} parent=161 // pred_check
        %p2057 = pneg %p118
      $region164: #{unet_block_forward.3} parent=161 // pred_check_branch
        %2059 = sbr.rel (%p2057) target = $region166
      $region165: #{unet_block_forward.3} parent=161 // pred_region
        %s2060 = smul.u32 8, %s24
        %p2061 = scmp.lt.s32.totalorder %s23, 1
        %s2062 = scalar_select %p2061, %s23, 1
        %p2063 = scmp.lt.s32.totalorder %s2060, 15
        %s2064 = scalar_select %p2063, %s2060, 15
        %s2065 = smul.addr %s2064, 2
        %s2066 = smul.addr %s2062, 32
        %s2067 = sadd.s32 %s2065, %s2066
        %s2068 = smul.addr %s2067, 8
        %s2069 = scalar_lea.vmem %s4, %s2068
      $region166: #{unet_block_forward.3} parent=161 // pred_fallthru
        _
      // Predicated region
      $region167: #{unet_block_forward.3} parent=161 // pred_check
        %p2070 = pneg %p146
      $region168: #{unet_block_forward.3} parent=161 // pred_check_branch
        %2072 = sbr.rel (%p2070) target = $region170
      $region169: #{unet_block_forward.3} parent=161 // pred_region
        %p2073 = scmp.lt.s32.totalorder %s23, 1
        %s2074 = scalar_select %p2073, %s23, 1
        %p2075 = scmp.lt.s32.totalorder %s24, 1
        %s2076 = scalar_select %p2075, %s24, 1
        %s2077 = smul.addr %s2074, 2
        %s2078 = sadd.s32 %s2076, %s2077
        %s2079 = smul.addr %s2078, 2
        %s2080 = scalar_lea.vmem %s5, %s2079
      $region170: #{unet_block_forward.3} parent=161 // pred_fallthru
        _
    $region162: #{unet_block_forward.3} parent=5 // pred_fallthru
      _
  $region6: #{unet_block_forward.3} parent=0 // loop_footer
    %s16 = sadd.s32 1, %s12
  $region7: #{unet_block_forward.3} parent=0 // loop_footer_branch
    %11 = sbr.rel target = $region3
  $region8: #{unet_block_forward.3} parent=0 // loop_exit
    _
  %2081 = vsyncmov [#allocation3]
  %s2082 = vpop.sfrf %2081
  %p2083 = scmp.eq.s32.totalorder %s2082, 0
  %p2084 = pneg %p2083
  %2086 = shalt.err (%p2084)
  %s2087 = scalar_lea.sflag [#allocation3], 1
  %2088 = vsyncmov %s2087
  %s2089 = vpop.sfrf %2088
  %p2090 = scmp.eq.s32.totalorder %s2089, 0
  %p2091 = pneg %p2090
  %2093 = shalt.err (%p2091)
  %s2094 = scalar_lea.sflag [#allocation3], 2
  %2095 = vsyncmov %s2094
  %s2096 = vpop.sfrf %2095
  %p2097 = scmp.eq.s32.totalorder %s2096, 0
  %p2098 = pneg %p2097
  %2100 = shalt.err (%p2098)

// kernel: unet_block_forward.4
$region0: #{unet_block_forward.4}
  #allocation0 [shape = 'u32[]', space=smem, size = 0x4, offset = 0x4, fixed_abs, tag = 'smem constant byte address 0x4 - core index']
  #allocation1 [shape = 'u32[144,128]{1,0:T(1,128)}', space=vmem, size = 0x12000, scoped, tag = 'internal scratch']
  #allocation2 [shape = 'f32[10,16,128]{2,1,0:T(8,128)}', space=vmem, size = 0x14000, scoped, tag = 'scratch operand']
  #allocation3 [shape = 's32[3]{0}', space=sflag, size = 0xc, scoped, tag = 'scratch operand']
  #allocation4 [shape = 's32[]', space=sflag, size = 0x4, offset = 0, fixed_abs, tag = 'sflag constant byte address 0x0 - dummy sync flag']
  #allocation5 [shape = 's32[]', space=sflag, size = 0x4, offset = 0, fixed_abs, tag = 'sflag constant byte address 0x0 - dummy sync flag']
  #allocation6 [shape = 's32[]', space=sflag, size = 0x4, offset = 0, fixed_abs, tag = 'sflag constant byte address 0x0 - dummy sync flag']
  %s0 = inlined_call_operand.vmem [shape: f32[2,16,16,128], index: 0, kind: input, shape index: {}]
  %s1 = inlined_call_operand.vmem [shape: bf16[3,384,128], index: 1, kind: input, shape index: {}]
  %s2 = inlined_call_operand.vmem [shape: f32[1,128], index: 2, kind: input, shape index: {}]
  %s3 = inlined_call_operand.vmem [shape: f32[1,128], index: 3, kind: input, shape index: {}]
  %s4 = inlined_call_operand.vmem [shape: f32[2,16,16,128], index: 4, kind: output, shape index: {0}]
  %s5 = inlined_call_operand.vmem [shape: f32[2,2,2,128], index: 5, kind: output, shape index: {1}]
  %6 = xla_tuple %s4, %s5
  %s7 = sld [smem:[#allocation0]]
  $region171: #{unet_block_forward.4} parent=0
    _
  %s9 = ssub.s32 1, %s7
  %s10 = scalar_select 0, %s9, %s7
  loop: start=0, step=1, limit=6
  $region2: #{unet_block_forward.4} parent=0 // loop_pre_header
    _
  $region3: #{unet_block_forward.4} parent=0 // loop_header
    %s12 = sphi 0, %s16
    %p13 = scmp.ge.s32.totalorder %s12, 6
    %s19 = sphi 0, %s31
    %s20 = sphi 0, %s27
    %s21 = sphi 0, %s19
    %s22 = sphi 0, %s20
    %s23 = sphi 0, %s21
    %s24 = sphi 0, %s22
    %s32 = sphi 0, %s32
    %s34 = sphi 0, %s32
    %s35 = sphi 0, %s34
    %s49 = sphi 0, %s35
    %s53 = sphi 0, %s53
    %s55 = sphi 0, %s53
    %s56 = sphi 0, %s55
    %s70 = sphi 0, %s56
    %s74 = sphi 0, %s74
    %s76 = sphi 0, %s74
    %s77 = sphi 0, %s76
    %s91 = sphi 0, %s77
    %s99 = sphi 0, %s101
    %s102 = sphi 0, %s99
    %s103 = sphi 0, %s102
    %s119 = sphi 0, %s103
    %s127 = sphi 0, %s129
    %s130 = sphi 0, %s127
    %s131 = sphi 0, %s130
    %s147 = sphi 0, %s131
  $region4: #{unet_block_forward.4} parent=0 // loop_header_branch
    %15 = sbr.rel (%p13) target = $region8
  $region5: #{unet_block_forward.4} parent=0 // loop_body
    %s17 = ssub.s32 %s12, 1
    %s18 = ssub.s32 %s12, 2
    %s25 = sadd.s32 1, %s20
    %p26 = scmp.ge.s32.totalorder %s25, 2
    %s27 = scalar_select %p26, 0, %s25
    %s28 = sadd.s32 1, %s19
    %s29 = scalar_select %p26, %s28, %s19
    %p30 = scmp.ge.s32.totalorder %s29, 2
    %s31 = scalar_select %p30, 0, %s29
    %s33 = sadd.s32 %s32, 1
    %p36 = scmp.eq.s32.totalorder %s12, 3
    %p37 = scmp.ne.s32.totalorder %s32, %s34
    %p38 = scmp.eq.s32.totalorder %s12, 0
    %p39 = por %p37, %p38
    %p40 = scmp.ne.s32.totalorder %s32, %s34
    %p41 = scmp.eq.s32.totalorder %s17, 3
    %p42 = por %p40, %p41
    %p43 = scmp.ne.s32.totalorder %s34, %s35
    %p44 = scmp.eq.s32.totalorder %s17, 0
    %p45 = por %p43, %p44
    %p46 = scmp.ne.s32.totalorder %s34, %s35
    %p47 = scmp.eq.s32.totalorder %s18, 3
    %p48 = por %p46, %p47
    %p50 = scmp.ne.s32.totalorder %s35, %s49
    %p51 = scmp.eq.s32.totalorder %s18, 0
    %p52 = por %p50, %p51
    %s54 = sadd.s32 %s53, 1
    %p57 = scmp.eq.s32.totalorder %s12, 3
    %p58 = scmp.ne.s32.totalorder %s53, %s55
    %p59 = scmp.eq.s32.totalorder %s12, 0
    %p60 = por %p58, %p59
    %p61 = scmp.ne.s32.totalorder %s53, %s55
    %p62 = scmp.eq.s32.totalorder %s17, 3
    %p63 = por %p61, %p62
    %p64 = scmp.ne.s32.totalorder %s55, %s56
    %p65 = scmp.eq.s32.totalorder %s17, 0
    %p66 = por %p64, %p65
    %p67 = scmp.ne.s32.totalorder %s55, %s56
    %p68 = scmp.eq.s32.totalorder %s18, 3
    %p69 = por %p67, %p68
    %p71 = scmp.ne.s32.totalorder %s56, %s70
    %p72 = scmp.eq.s32.totalorder %s18, 0
    %p73 = por %p71, %p72
    %s75 = sadd.s32 %s74, 1
    %p78 = scmp.eq.s32.totalorder %s12, 3
    %p79 = scmp.ne.s32.totalorder %s74, %s76
    %p80 = scmp.eq.s32.totalorder %s12, 0
    %p81 = por %p79, %p80
    %p82 = scmp.ne.s32.totalorder %s74, %s76
    %p83 = scmp.eq.s32.totalorder %s17, 3
    %p84 = por %p82, %p83
    %p85 = scmp.ne.s32.totalorder %s76, %s77
    %p86 = scmp.eq.s32.totalorder %s17, 0
    %p87 = por %p85, %p86
    %p88 = scmp.ne.s32.totalorder %s76, %s77
    %p89 = scmp.eq.s32.totalorder %s18, 3
    %p90 = por %p88, %p89
    %p92 = scmp.ne.s32.totalorder %s77, %s91
    %p93 = scmp.eq.s32.totalorder %s18, 0
    %p94 = por %p92, %p93
    %s95 = ssub.s32 %s19, %s31
    %s96 = ssub.s32 %s20, %s27
    %s97 = sor.u32 %s95, %s96
    %p98 = scmp.eq.s32.totalorder %s97, 0
    %s100 = sadd.s32 %s99, 1
    %s101 = scalar_select %p98, %s99, %s100
    %p104 = pneg %p98
    %p105 = scmp.eq.s32.totalorder %s12, 3
    %p106 = por %p104, %p105
    %p107 = scmp.ne.s32.totalorder %s99, %s102
    %p108 = scmp.eq.s32.totalorder %s12, 0
    %p109 = por %p107, %p108
    %p110 = scmp.ne.s32.totalorder %s99, %s102
    %p111 = scmp.eq.s32.totalorder %s17, 3
    %p112 = por %p110, %p111
    %p113 = scmp.ne.s32.totalorder %s102, %s103
    %p114 = scmp.eq.s32.totalorder %s17, 0
    %p115 = por %p113, %p114
    %p116 = scmp.ne.s32.totalorder %s102, %s103
    %p117 = scmp.eq.s32.totalorder %s18, 3
    %p118 = por %p116, %p117
    %p120 = scmp.ne.s32.totalorder %s103, %s119
    %p121 = scmp.eq.s32.totalorder %s18, 0
    %p122 = por %p120, %p121
    %s123 = ssub.s32 %s19, %s31
    %s124 = ssub.s32 %s20, %s27
    %s125 = sor.u32 %s123, %s124
    %p126 = scmp.eq.s32.totalorder %s125, 0
    %s128 = sadd.s32 %s127, 1
    %s129 = scalar_select %p126, %s127, %s128
    %p132 = pneg %p126
    %p133 = scmp.eq.s32.totalorder %s12, 3
    %p134 = por %p132, %p133
    %p135 = scmp.ne.s32.totalorder %s127, %s130
    %p136 = scmp.eq.s32.totalorder %s12, 0
    %p137 = por %p135, %p136
    %p138 = scmp.ne.s32.totalorder %s127, %s130
    %p139 = scmp.eq.s32.totalorder %s17, 3
    %p140 = por %p138, %p139
    %p141 = scmp.ne.s32.totalorder %s130, %s131
    %p142 = scmp.eq.s32.totalorder %s17, 0
    %p143 = por %p141, %p142
    %p144 = scmp.ne.s32.totalorder %s130, %s131
    %p145 = scmp.eq.s32.totalorder %s18, 3
    %p146 = por %p144, %p145
    %p148 = scmp.ne.s32.totalorder %s131, %s147
    %p149 = scmp.eq.s32.totalorder %s18, 0
    %p150 = por %p148, %p149
    %p151 = scmp.le.s32.totalorder 1, %s12
    %p152 = scmp.lt.s32.totalorder %s12, 5
    %p153 = pnand %p151, %p152
    %p154 = pneg %p153
    // Predicated region
    $region9: #{unet_block_forward.4} parent=5 // pred_check
      _
    $region10: #{unet_block_forward.4} parent=5 // pred_check_branch
      %156 = sbr.rel (%p153) target = $region12
    $region11: #{unet_block_forward.4} parent=5 // pred_region
      %s157 = ssub.s32 %s12, 1
      // Predicated region
      $region13: #{unet_block_forward.4} parent=11 // pred_check
        %p158 = pneg %p45
      $region14: #{unet_block_forward.4} parent=11 // pred_check_branch
        %160 = sbr.rel (%p158) target = $region16
      $region15: #{unet_block_forward.4} parent=11 // pred_region
        _
      $region16: #{unet_block_forward.4} parent=11 // pred_fallthru
        _
      // Predicated region
      $region17: #{unet_block_forward.4} parent=11 // pred_check
        %p161 = pneg %p66
      $region18: #{unet_block_forward.4} parent=11 // pred_check_branch
        %163 = sbr.rel (%p161) target = $region20
      $region19: #{unet_block_forward.4} parent=11 // pred_region
        _
      $region20: #{unet_block_forward.4} parent=11 // pred_fallthru
        _
      // Predicated region
      $region21: #{unet_block_forward.4} parent=11 // pred_check
        %p164 = pneg %p87
      $region22: #{unet_block_forward.4} parent=11 // pred_check_branch
        %166 = sbr.rel (%p164) target = $region24
      $region23: #{unet_block_forward.4} parent=11 // pred_region
        _
      $region24: #{unet_block_forward.4} parent=11 // pred_fallthru
        _
    $region12: #{unet_block_forward.4} parent=5 // pred_fallthru
      _
    %p167 = scmp.lt.s32.totalorder %s12, 4
    // Predicated region
    $region25: #{unet_block_forward.4} parent=5 // pred_check
      %p168 = pneg %p167
    $region26: #{unet_block_forward.4} parent=5 // pred_check_branch
      %170 = sbr.rel (%p168) target = $region28
    $region27: #{unet_block_forward.4} parent=5 // pred_region
      _
    $region28: #{unet_block_forward.4} parent=5 // pred_fallthru
      _
    %p171 = scmp.le.s32.totalorder 1, %s12
    %p172 = scmp.lt.s32.totalorder %s12, 5
    %p173 = pnand %p171, %p172
    %p174 = pneg %p173
    // Predicated region
    $region29: #{unet_block_forward.4} parent=5 // pred_check
      _
    $region30: #{unet_block_forward.4} parent=5 // pred_check_branch
      %176 = sbr.rel (%p173) target = $region32
    $region31: #{unet_block_forward.4} parent=5 // pred_region
      %s177 = ssub.s32 %s12, 1
      %p178 = pneg %p45
      %p179 = pneg %p42
      %p180 = pneg %p66
      %p181 = pneg %p63
      %p182 = pneg %p87
      %p183 = pneg %p84
      %p184 = pneg %p115
      %p185 = pneg %p112
      %s186 = smul.u32 8, %s22
      %p187 = scmp.lt.s32.totalorder %s21, 1
      %s188 = scalar_select %p187, %s21, 1
      %p189 = scmp.lt.s32.totalorder %s186, 15
      %s190 = scalar_select %p189, %s186, 15
      %s191 = smul.addr %s190, 2
      %s192 = smul.addr %s188, 32
      %s193 = sadd.s32 %s191, %s192
      %s194 = smul.addr %s193, 8
      %s195 = scalar_lea.vmem %s4, %s194
      %p196 = pneg %p143
      %p197 = pneg %p140
      %p198 = scmp.lt.s32.totalorder %s21, 1
      %s199 = scalar_select %p198, %s21, 1
      %p200 = scmp.lt.s32.totalorder %s22, 1
      %s201 = scalar_select %p200, %s22, 1
      %s202 = smul.addr %s199, 2
      %s203 = sadd.s32 %s201, %s202
      %s204 = smul.addr %s203, 2
      %s205 = scalar_lea.vmem %s5, %s204
      %s206 = smul.u32 8, %s22
      %p207 = scmp.lt.s32.totalorder %s21, 1
      %s208 = scalar_select %p207, %s21, 1
      %p209 = scmp.lt.s32.totalorder %s206, 15
      %s210 = scalar_select %p209, %s206, 15
      %s211 = smul.addr %s210, 2
      %s212 = smul.addr %s208, 32
      %s213 = sadd.s32 %s211, %s212
      %s214 = smul.addr %s213, 8
      %s215 = scalar_lea.vmem %s4, %s214
      %s216 = smul.u32 8, %s22
      %p217 = scmp.lt.s32.totalorder %s21, 1
      %s218 = scalar_select %p217, %s21, 1
      %p219 = scmp.lt.s32.totalorder %s22, 1
      %s220 = scalar_select %p219, %s22, 1
      %s221 = smul.addr %s218, 2
      %s222 = sadd.s32 %s220, %s221
      %s223 = smul.addr %s222, 2
      %s224 = scalar_lea.vmem %s5, %s223
      %s226 = smul.u32 %s22, 8
      %s227 = smul.u32 %s226, 16
      %s228 = smul.u32 %s21, 256
      %s229 = sadd.s32 %s227, %s228
      %s230 = scalar_lea.vmem %s0, %s229
      %s231 = scalar_lea.vmem [#allocation2], 16
      %p233 = scmp.lt.u32.totalorder 128, 8
      %p234 = pneg %p233
      // Predicated region
      $region33: #{unet_block_forward.4} parent=31 // pred_check
        _
      $region34: #{unet_block_forward.4} parent=31 // pred_check_branch
        %236 = sbr.rel (%p233) target = $region36
      $region35: #{unet_block_forward.4} parent=31 // pred_region
        %s252 = sand.u32 128, 7
        %p253 = scmp.eq.s32.totalorder %s252, 0
        // Predicated region
        $region48: #{unet_block_forward.4} parent=35 // pred_check
          %p254 = pneg %p253
        $region49: #{unet_block_forward.4} parent=35 // pred_check_branch
          %256 = sbr.rel (%p254) target = $region51
        $region50: #{unet_block_forward.4} parent=35 // pred_region
          loop: start=0, step=1, limit=1
          $region52: #{unet_block_forward.4} parent=50 // loop_pre_header
            _
          $region53: #{unet_block_forward.4} parent=50 // loop_header
            %s258 = sphi 0, %s262
            %p259 = scmp.ge.s32.totalorder %s258, 1
            %s263 = sphi %s230, %s230
            %s264 = sphi %s231, %s231
          $region54: #{unet_block_forward.4} parent=50 // loop_header_branch
            %261 = sbr.rel (%p259) target = $region58
          $region55: #{unet_block_forward.4} parent=50 // loop_body
            %v265 = vld [vmem:[%s263] sm:$0xff]
            %266 = vst [vmem:[%s264] sm:$0xff] %v265
            %v267 = vld [vmem:[%s263 + $0x8] sm:$0xff]
            %268 = vst [vmem:[%s264 + $0x8] sm:$0xff] %v267
            %v269 = vld [vmem:[%s263 + $0x10] sm:$0xff]
            %270 = vst [vmem:[%s264 + $0x10] sm:$0xff] %v269
            %v271 = vld [vmem:[%s263 + $0x18] sm:$0xff]
            %272 = vst [vmem:[%s264 + $0x18] sm:$0xff] %v271
            %v273 = vld [vmem:[%s263 + $0x20] sm:$0xff]
            %274 = vst [vmem:[%s264 + $0x20] sm:$0xff] %v273
            %v275 = vld [vmem:[%s263 + $0x28] sm:$0xff]
            %276 = vst [vmem:[%s264 + $0x28] sm:$0xff] %v275
            %v277 = vld [vmem:[%s263 + $0x30] sm:$0xff]
            %278 = vst [vmem:[%s264 + $0x30] sm:$0xff] %v277
            %v279 = vld [vmem:[%s263 + $0x38] sm:$0xff]
            %280 = vst [vmem:[%s264 + $0x38] sm:$0xff] %v279
            %v281 = vld [vmem:[%s263 + $0x40] sm:$0xff]
            %282 = vst [vmem:[%s264 + $0x40] sm:$0xff] %v281
            %v283 = vld [vmem:[%s263 + $0x48] sm:$0xff]
            %284 = vst [vmem:[%s264 + $0x48] sm:$0xff] %v283
            %v285 = vld [vmem:[%s263 + $0x50] sm:$0xff]
            %286 = vst [vmem:[%s264 + $0x50] sm:$0xff] %v285
            %v287 = vld [vmem:[%s263 + $0x58] sm:$0xff]
            %288 = vst [vmem:[%s264 + $0x58] sm:$0xff] %v287
            %v289 = vld [vmem:[%s263 + $0x60] sm:$0xff]
            %290 = vst [vmem:[%s264 + $0x60] sm:$0xff] %v289
            %v291 = vld [vmem:[%s263 + $0x68] sm:$0xff]
            %292 = vst [vmem:[%s264 + $0x68] sm:$0xff] %v291
            %v293 = vld [vmem:[%s263 + $0x70] sm:$0xff]
            %294 = vst [vmem:[%s264 + $0x70] sm:$0xff] %v293
            %v295 = vld [vmem:[%s263 + $0x78] sm:$0xff]
            %296 = vst [vmem:[%s264 + $0x78] sm:$0xff] %v295
          $region56: #{unet_block_forward.4} parent=50 // loop_footer
            %s262 = sadd.s32 1, %s258
          $region57: #{unet_block_forward.4} parent=50 // loop_footer_branch
            %257 = sbr.rel target = $region53
          $region58: #{unet_block_forward.4} parent=50 // loop_exit
            _
        $region51: #{unet_block_forward.4} parent=35 // pred_fallthru
          _
        %p297 = pneg %p253
        // Predicated region
        $region59: #{unet_block_forward.4} parent=35 // pred_check
          _
        $region60: #{unet_block_forward.4} parent=35 // pred_check_branch
          %299 = sbr.rel (%p253) target = $region62
        $region61: #{unet_block_forward.4} parent=35 // pred_region
          %s300 = sand.u32 128, 7
        $region62: #{unet_block_forward.4} parent=35 // pred_fallthru
          _
      $region36: #{unet_block_forward.4} parent=31 // pred_fallthru
        _
      // Predicated region
      $region37: #{unet_block_forward.4} parent=31 // pred_check
        %p237 = pneg %p233
      $region38: #{unet_block_forward.4} parent=31 // pred_check_branch
        %239 = sbr.rel (%p237) target = $region40
      $region39: #{unet_block_forward.4} parent=31 // pred_region
        %s240 = sshll.u32 1, 128
        %s241 = ssub.s32 %s240, 1
        loop: start=0, step=1, limit=1
        $region41: #{unet_block_forward.4} parent=39 // loop_pre_header
          _
        $region42: #{unet_block_forward.4} parent=39 // loop_header
          %s243 = sphi 0, %s247
          %p244 = scmp.ge.s32.totalorder %s243, 1
          %s248 = sphi %s230, %s230
          %s249 = sphi %s231, %s231
        $region43: #{unet_block_forward.4} parent=39 // loop_header_branch
          %246 = sbr.rel (%p244) target = $region47
        $region44: #{unet_block_forward.4} parent=39 // loop_body
          %v250 = vld [vmem:[%s248] sm:%s241]
          %251 = vst [vmem:[%s249] sm:%s241] %v250
        $region45: #{unet_block_forward.4} parent=39 // loop_footer
          %s247 = sadd.s32 1, %s243
        $region46: #{unet_block_forward.4} parent=39 // loop_footer_branch
          %242 = sbr.rel target = $region42
        $region47: #{unet_block_forward.4} parent=39 // loop_exit
          _
      $region40: #{unet_block_forward.4} parent=31 // pred_fallthru
        _
      // Predicated region
      $region63: #{unet_block_forward.4} parent=31 // pred_check
        _
      $region64: #{unet_block_forward.4} parent=31 // pred_check_branch
        %303 = sbr.rel (0) target = $region66
      $region65: #{unet_block_forward.4} parent=31 // pred_region
        %304 = vsyncadd [#allocation3], 2048
      $region66: #{unet_block_forward.4} parent=31 // pred_fallthru
        _
      %p305 = scmp.gt.s32.totalorder %s22, 0
      // Predicated region
      $region67: #{unet_block_forward.4} parent=31 // pred_check
        %p306 = pneg %p305
      $region68: #{unet_block_forward.4} parent=31 // pred_check_branch
        %308 = sbr.rel (%p306) target = $region70
      $region69: #{unet_block_forward.4} parent=31 // pred_region
        %s309 = ssub.s32 %s226, 1
        %s310 = smul.u32 %s309, 16
        %s311 = sadd.s32 %s310, %s228
        %s312 = scalar_lea.vmem %s0, %s311
        %s313 = scalar_lea.sflag [#allocation3], 1
        %p315 = scmp.lt.u32.totalorder 16, 8
        %p316 = pneg %p315
        // Predicated region
        $region71: #{unet_block_forward.4} parent=69 // pred_check
          _
        $region72: #{unet_block_forward.4} parent=69 // pred_check_branch
          %318 = sbr.rel (%p315) target = $region74
        $region73: #{unet_block_forward.4} parent=69 // pred_region
          %s334 = sand.u32 16, 7
          %p335 = scmp.eq.s32.totalorder %s334, 0
          // Predicated region
          $region86: #{unet_block_forward.4} parent=73 // pred_check
            %p336 = pneg %p335
          $region87: #{unet_block_forward.4} parent=73 // pred_check_branch
            %338 = sbr.rel (%p336) target = $region89
          $region88: #{unet_block_forward.4} parent=73 // pred_region
            loop: start=0, step=1, limit=1
            $region90: #{unet_block_forward.4} parent=88 // loop_pre_header
              _
            $region91: #{unet_block_forward.4} parent=88 // loop_header
              %s340 = sphi 0, %s344
              %p341 = scmp.ge.s32.totalorder %s340, 1
              %s345 = sphi %s312, %s312
              %s346 = sphi [#allocation2], [#allocation2]
            $region92: #{unet_block_forward.4} parent=88 // loop_header_branch
              %343 = sbr.rel (%p341) target = $region96
            $region93: #{unet_block_forward.4} parent=88 // loop_body
              %v347 = vld [vmem:[%s345] sm:$0xff]
              %348 = vst [vmem:[%s346] sm:$0xff] %v347
              %v349 = vld [vmem:[%s345 + $0x8] sm:$0xff]
              %350 = vst [vmem:[%s346 + $0x8] sm:$0xff] %v349
            $region94: #{unet_block_forward.4} parent=88 // loop_footer
              %s344 = sadd.s32 1, %s340
            $region95: #{unet_block_forward.4} parent=88 // loop_footer_branch
              %339 = sbr.rel target = $region91
            $region96: #{unet_block_forward.4} parent=88 // loop_exit
              _
          $region89: #{unet_block_forward.4} parent=73 // pred_fallthru
            _
          %p351 = pneg %p335
          // Predicated region
          $region97: #{unet_block_forward.4} parent=73 // pred_check
            _
          $region98: #{unet_block_forward.4} parent=73 // pred_check_branch
            %353 = sbr.rel (%p335) target = $region100
          $region99: #{unet_block_forward.4} parent=73 // pred_region
            %s354 = sand.u32 16, 7
          $region100: #{unet_block_forward.4} parent=73 // pred_fallthru
            _
        $region74: #{unet_block_forward.4} parent=69 // pred_fallthru
          _
        // Predicated region
        $region75: #{unet_block_forward.4} parent=69 // pred_check
          %p319 = pneg %p315
        $region76: #{unet_block_forward.4} parent=69 // pred_check_branch
          %321 = sbr.rel (%p319) target = $region78
        $region77: #{unet_block_forward.4} parent=69 // pred_region
          %s322 = sshll.u32 1, 16
          %s323 = ssub.s32 %s322, 1
          loop: start=0, step=1, limit=1
          $region79: #{unet_block_forward.4} parent=77 // loop_pre_header
            _
          $region80: #{unet_block_forward.4} parent=77 // loop_header
            %s325 = sphi 0, %s329
            %p326 = scmp.ge.s32.totalorder %s325, 1
            %s330 = sphi %s312, %s312
            %s331 = sphi [#allocation2], [#allocation2]
          $region81: #{unet_block_forward.4} parent=77 // loop_header_branch
            %328 = sbr.rel (%p326) target = $region85
          $region82: #{unet_block_forward.4} parent=77 // loop_body
            %v332 = vld [vmem:[%s330] sm:%s323]
            %333 = vst [vmem:[%s331] sm:%s323] %v332
          $region83: #{unet_block_forward.4} parent=77 // loop_footer
            %s329 = sadd.s32 1, %s325
          $region84: #{unet_block_forward.4} parent=77 // loop_footer_branch
            %324 = sbr.rel target = $region80
          $region85: #{unet_block_forward.4} parent=77 // loop_exit
            _
        $region78: #{unet_block_forward.4} parent=69 // pred_fallthru
          _
        // Predicated region
        $region101: #{unet_block_forward.4} parent=69 // pred_check
          _
        $region102: #{unet_block_forward.4} parent=69 // pred_check_branch
          %357 = sbr.rel (0) target = $region104
        $region103: #{unet_block_forward.4} parent=69 // pred_region
          %358 = vsyncadd %s313, 256
        $region104: #{unet_block_forward.4} parent=69 // pred_fallthru
          _
        %s359 = smul.u32 1, 16
        %s360 = smul.u32 %s359, 1
        %s361 = sshll.u32 %s360, 4
        %362 = dma.done %s313, %s361
      $region70: #{unet_block_forward.4} parent=31 // pred_fallthru
        _
      %p363 = scmp.eq.s32.totalorder %s22, 0
      // Predicated region
      $region105: #{unet_block_forward.4} parent=31 // pred_check
        %p364 = pneg %p363
      $region106: #{unet_block_forward.4} parent=31 // pred_check_branch
        %366 = sbr.rel (%p364) target = $region108
      $region107: #{unet_block_forward.4} parent=31 // pred_region
        %367 = vst [vmem:[#allocation2] sm:$0xff] 0.0
        %368 = vst [vmem:[#allocation2 + $0x8] sm:$0xff] 0.0
      $region108: #{unet_block_forward.4} parent=31 // pred_fallthru
        _
      %p369 = scmp.lt.s32.totalorder %s22, 1
      // Predicated region
      $region109: #{unet_block_forward.4} parent=31 // pred_check
        %p370 = pneg %p369
      $region110: #{unet_block_forward.4} parent=31 // pred_check_branch
        %372 = sbr.rel (%p370) target = $region112
      $region111: #{unet_block_forward.4} parent=31 // pred_region
        %s373 = sadd.s32 %s226, 8
        %s374 = smul.u32 %s373, 16
        %s375 = sadd.s32 %s374, %s228
        %s376 = scalar_lea.vmem %s0, %s375
        %s377 = scalar_lea.vmem [#allocation2], 144
        %s378 = scalar_lea.sflag [#allocation3], 2
        %p380 = scmp.lt.u32.totalorder 16, 8
        %p381 = pneg %p380
        // Predicated region
        $region113: #{unet_block_forward.4} parent=111 // pred_check
          _
        $region114: #{unet_block_forward.4} parent=111 // pred_check_branch
          %383 = sbr.rel (%p380) target = $region116
        $region115: #{unet_block_forward.4} parent=111 // pred_region
          %s399 = sand.u32 16, 7
          %p400 = scmp.eq.s32.totalorder %s399, 0
          // Predicated region
          $region128: #{unet_block_forward.4} parent=115 // pred_check
            %p401 = pneg %p400
          $region129: #{unet_block_forward.4} parent=115 // pred_check_branch
            %403 = sbr.rel (%p401) target = $region131
          $region130: #{unet_block_forward.4} parent=115 // pred_region
            loop: start=0, step=1, limit=1
            $region132: #{unet_block_forward.4} parent=130 // loop_pre_header
              _
            $region133: #{unet_block_forward.4} parent=130 // loop_header
              %s405 = sphi 0, %s409
              %p406 = scmp.ge.s32.totalorder %s405, 1
              %s410 = sphi %s376, %s376
              %s411 = sphi %s377, %s377
            $region134: #{unet_block_forward.4} parent=130 // loop_header_branch
              %408 = sbr.rel (%p406) target = $region138
            $region135: #{unet_block_forward.4} parent=130 // loop_body
              %v412 = vld [vmem:[%s410] sm:$0xff]
              %413 = vst [vmem:[%s411] sm:$0xff] %v412
              %v414 = vld [vmem:[%s410 + $0x8] sm:$0xff]
              %415 = vst [vmem:[%s411 + $0x8] sm:$0xff] %v414
            $region136: #{unet_block_forward.4} parent=130 // loop_footer
              %s409 = sadd.s32 1, %s405
            $region137: #{unet_block_forward.4} parent=130 // loop_footer_branch
              %404 = sbr.rel target = $region133
            $region138: #{unet_block_forward.4} parent=130 // loop_exit
              _
          $region131: #{unet_block_forward.4} parent=115 // pred_fallthru
            _
          %p416 = pneg %p400
          // Predicated region
          $region139: #{unet_block_forward.4} parent=115 // pred_check
            _
          $region140: #{unet_block_forward.4} parent=115 // pred_check_branch
            %418 = sbr.rel (%p400) target = $region142
          $region141: #{unet_block_forward.4} parent=115 // pred_region
            %s419 = sand.u32 16, 7
          $region142: #{unet_block_forward.4} parent=115 // pred_fallthru
            _
        $region116: #{unet_block_forward.4} parent=111 // pred_fallthru
          _
        // Predicated region
        $region117: #{unet_block_forward.4} parent=111 // pred_check
          %p384 = pneg %p380
        $region118: #{unet_block_forward.4} parent=111 // pred_check_branch
          %386 = sbr.rel (%p384) target = $region120
        $region119: #{unet_block_forward.4} parent=111 // pred_region
          %s387 = sshll.u32 1, 16
          %s388 = ssub.s32 %s387, 1
          loop: start=0, step=1, limit=1
          $region121: #{unet_block_forward.4} parent=119 // loop_pre_header
            _
          $region122: #{unet_block_forward.4} parent=119 // loop_header
            %s390 = sphi 0, %s394
            %p391 = scmp.ge.s32.totalorder %s390, 1
            %s395 = sphi %s376, %s376
            %s396 = sphi %s377, %s377
          $region123: #{unet_block_forward.4} parent=119 // loop_header_branch
            %393 = sbr.rel (%p391) target = $region127
          $region124: #{unet_block_forward.4} parent=119 // loop_body
            %v397 = vld [vmem:[%s395] sm:%s388]
            %398 = vst [vmem:[%s396] sm:%s388] %v397
          $region125: #{unet_block_forward.4} parent=119 // loop_footer
            %s394 = sadd.s32 1, %s390
          $region126: #{unet_block_forward.4} parent=119 // loop_footer_branch
            %389 = sbr.rel target = $region122
          $region127: #{unet_block_forward.4} parent=119 // loop_exit
            _
        $region120: #{unet_block_forward.4} parent=111 // pred_fallthru
          _
        // Predicated region
        $region143: #{unet_block_forward.4} parent=111 // pred_check
          _
        $region144: #{unet_block_forward.4} parent=111 // pred_check_branch
          %422 = sbr.rel (0) target = $region146
        $region145: #{unet_block_forward.4} parent=111 // pred_region
          %423 = vsyncadd %s378, 256
        $region146: #{unet_block_forward.4} parent=111 // pred_fallthru
          _
        %s424 = smul.u32 1, 16
        %s425 = smul.u32 %s424, 1
        %s426 = sshll.u32 %s425, 4
        %427 = dma.done %s378, %s426
      $region112: #{unet_block_forward.4} parent=31 // pred_fallthru
        _
      %p428 = scmp.eq.s32.totalorder %s22, 1
      // Predicated region
      $region147: #{unet_block_forward.4} parent=31 // pred_check
        %p429 = pneg %p428
      $region148: #{unet_block_forward.4} parent=31 // pred_check_branch
        %431 = sbr.rel (%p429) target = $region150
      $region149: #{unet_block_forward.4} parent=31 // pred_region
        %s432 = scalar_lea.vmem [#allocation2], 144
        %433 = vst [vmem:[%s432] sm:$0xff] 0.0
        %434 = vst [vmem:[%s432 + $0x8] sm:$0xff] 0.0
      $region150: #{unet_block_forward.4} parent=31 // pred_fallthru
        _
      %s435 = smul.u32 8, 16
      %s436 = smul.u32 %s435, 1
      %s437 = sshll.u32 %s436, 4
      %438 = dma.done [#allocation3], %s437
      %v439 = vld [vmem:[#allocation2] sm:$0xff]
      %v440 = vld [vmem:[#allocation2 + $0x8] sm:$0xff]
      %v441 = vld [vmem:[#allocation2 + $0x10] sm:$0xff]
      %v442 = vld [vmem:[#allocation2 + $0x18] sm:$0xff]
      %v443 = vld [vmem:[#allocation2 + $0x20] sm:$0xff]
      %v444 = vld [vmem:[#allocation2 + $0x28] sm:$0xff]
      %v445 = vld [vmem:[#allocation2 + $0x30] sm:$0xff]
      %v446 = vld [vmem:[#allocation2 + $0x38] sm:$0xff]
      %v447 = vld [vmem:[#allocation2 + $0x40] sm:$0xff]
      %v448 = vld [vmem:[#allocation2 + $0x48] sm:$0xff]
      %v449 = vld [vmem:[#allocation2 + $0x50] sm:$0xff]
      %v450 = vld [vmem:[#allocation2 + $0x58] sm:$0xff]
      %v451 = vld [vmem:[#allocation2 + $0x60] sm:$0xff]
      %v452 = vld [vmem:[#allocation2 + $0x68] sm:$0xff]
      %v453 = vld [vmem:[#allocation2 + $0x70] sm:$0xff]
      %v454 = vld [vmem:[#allocation2 + $0x78] sm:$0xff]
      %v455 = vld [vmem:[#allocation2 + $0x80] sm:$0xff]
      %v456 = vld [vmem:[#allocation2 + $0x88] sm:$0xff]
      %v457 = vld [vmem:[#allocation2 + $0x90] sm:$0xff]
      %v458 = vld [vmem:[#allocation2 + $0x98] sm:$0xff]
      %v459 = vld [vmem:[%s2] sm:$0x1]
      %v461 = vlaneseq
      %v462 = vshrl.u32 %v461, 7
      %v463 = vsub.s32 0, %v462
      %v464 = vrot.slane %v459, %v463
      %v466 = vmul.f32 %v439, %v464
      %v467 = vmul.f32 %v440, %v464
      %v468 = vmul.f32 %v441, %v464
      %v469 = vmul.f32 %v442, %v464
      %v470 = vmul.f32 %v443, %v464
      %v471 = vmul.f32 %v444, %v464
      %v472 = vmul.f32 %v445, %v464
      %v473 = vmul.f32 %v446, %v464
      %v474 = vmul.f32 %v447, %v464
      %v475 = vmul.f32 %v448, %v464
      %v476 = vmul.f32 %v449, %v464
      %v477 = vmul.f32 %v450, %v464
      %v478 = vmul.f32 %v451, %v464
      %v479 = vmul.f32 %v452, %v464
      %v480 = vmul.f32 %v453, %v464
      %v481 = vmul.f32 %v454, %v464
      %v482 = vmul.f32 %v455, %v464
      %v483 = vmul.f32 %v456, %v464
      %v484 = vmul.f32 %v457, %v464
      %v485 = vmul.f32 %v458, %v464
      %v486 = vld [vmem:[%s3] sm:$0x1]
      %v488 = vlaneseq
      %v489 = vshrl.u32 %v488, 7
      %v490 = vsub.s32 0, %v489
      %v491 = vrot.slane %v486, %v490
      %v493 = vadd.f32 %v466, %v491
      %v494 = vadd.f32 %v467, %v491
      %v495 = vadd.f32 %v468, %v491
      %v496 = vadd.f32 %v469, %v491
      %v497 = vadd.f32 %v470, %v491
      %v498 = vadd.f32 %v471, %v491
      %v499 = vadd.f32 %v472, %v491
      %v500 = vadd.f32 %v473, %v491
      %v501 = vadd.f32 %v474, %v491
      %v502 = vadd.f32 %v475, %v491
      %v503 = vadd.f32 %v476, %v491
      %v504 = vadd.f32 %v477, %v491
      %v505 = vadd.f32 %v478, %v491
      %v506 = vadd.f32 %v479, %v491
      %v507 = vadd.f32 %v480, %v491
      %v508 = vadd.f32 %v481, %v491
      %v509 = vadd.f32 %v482, %v491
      %v510 = vadd.f32 %v483, %v491
      %v511 = vadd.f32 %v484, %v491
      %v512 = vadd.f32 %v485, %v491
      %v513 = vmax.f32 %v493, 0.0
      %v514 = vmax.f32 %v494, 0.0
      %v515 = vmax.f32 %v495, 0.0
      %v516 = vmax.f32 %v496, 0.0
      %v517 = vmax.f32 %v497, 0.0
      %v518 = vmax.f32 %v498, 0.0
      %v519 = vmax.f32 %v499, 0.0
      %v520 = vmax.f32 %v500, 0.0
      %v521 = vmax.f32 %v501, 0.0
      %v522 = vmax.f32 %v502, 0.0
      %v523 = vmax.f32 %v503, 0.0
      %v524 = vmax.f32 %v504, 0.0
      %v525 = vmax.f32 %v505, 0.0
      %v526 = vmax.f32 %v506, 0.0
      %v527 = vmax.f32 %v507, 0.0
      %v528 = vmax.f32 %v508, 0.0
      %v529 = vmax.f32 %v509, 0.0
      %v530 = vmax.f32 %v510, 0.0
      %v531 = vmax.f32 %v511, 0.0
      %v532 = vmax.f32 %v512, 0.0
      %s533 = scalar_select %p305, 1, 0
      %v534 = vstv %s533
      %vm535 = vcmp.eq.s32.totalorder %v534, 1
      %s536 = scalar_select %p369, 1, 0
      %v537 = vstv %s536
      %vm538 = vcmp.eq.s32.totalorder %v537, 1
      %v539 = vsel %vm535, 1, 0
      %v540 = vsel %vm538, 1, 0
      %vm541 = vcmp.eq.s32.totalorder %v539, 1
      %vm542 = vcmp.eq.s32.totalorder %v540, 1
      %v543 = vsel %vm541, %v513, 0.0
      %v544 = vsel %vm541, %v514, 0.0
      %v545 = vsel 1, %v515, 0.0
      %v546 = vsel 1, %v516, 0.0
      %v547 = vsel 1, %v517, 0.0
      %v548 = vsel 1, %v518, 0.0
      %v549 = vsel 1, %v519, 0.0
      %v550 = vsel 1, %v520, 0.0
      %v551 = vsel 1, %v521, 0.0
      %v552 = vsel 1, %v522, 0.0
      %v553 = vsel 1, %v523, 0.0
      %v554 = vsel 1, %v524, 0.0
      %v555 = vsel 1, %v525, 0.0
      %v556 = vsel 1, %v526, 0.0
      %v557 = vsel 1, %v527, 0.0
      %v558 = vsel 1, %v528, 0.0
      %v559 = vsel 1, %v529, 0.0
      %v560 = vsel 1, %v530, 0.0
      %v561 = vsel %vm542, %v531, 0.0
      %v562 = vsel %vm542, %v532, 0.0
      %v563 = vpack.c.bf16 %v544, %v543
      %v564 = vpack.c.bf16 %v546, %v545
      %v565 = vpack.c.bf16 %v548, %v547
      %v566 = vpack.c.bf16 %v550, %v549
      %v567 = vpack.c.bf16 %v552, %v551
      %v568 = vpack.c.bf16 %v554, %v553
      %v569 = vpack.c.bf16 %v556, %v555
      %v570 = vpack.c.bf16 %v558, %v557
      %v571 = vpack.c.bf16 %v560, %v559
      %v572 = vpack.c.bf16 %v562, %v561
      %v574 = vshrl.u32 %v563, 16
      %v576 = vrot.slane %v574, 7
      %v577 = vshll.u32 %v563, 16
      %v579 = vor.u32 %v576, %v577
      %v581 = vshrl.u32 %v564, 16
      %v583 = vrot.slane %v581, 7
      %v584 = vshll.u32 %v564, 16
      %v586 = vor.u32 %v583, %v584
      %v588 = vshrl.u32 %v565, 16
      %v590 = vrot.slane %v588, 7
      %v591 = vshll.u32 %v565, 16
      %v593 = vor.u32 %v590, %v591
      %v595 = vshrl.u32 %v566, 16
      %v597 = vrot.slane %v595, 7
      %v598 = vshll.u32 %v566, 16
      %v600 = vor.u32 %v597, %v598
      %v602 = vshrl.u32 %v567, 16
      %v604 = vrot.slane %v602, 7
      %v605 = vshll.u32 %v567, 16
      %v607 = vor.u32 %v604, %v605
      %v609 = vshrl.u32 %v568, 16
      %v611 = vrot.slane %v609, 7
      %v612 = vshll.u32 %v568, 16
      %v614 = vor.u32 %v611, %v612
      %v616 = vshrl.u32 %v569, 16
      %v618 = vrot.slane %v616, 7
      %v619 = vshll.u32 %v569, 16
      %v621 = vor.u32 %v618, %v619
      %v623 = vshrl.u32 %v570, 16
      %v625 = vrot.slane %v623, 7
      %v626 = vshll.u32 %v570, 16
      %v628 = vor.u32 %v625, %v626
      %v630 = vshrl.u32 %v571, 16
      %v632 = vrot.slane %v630, 7
      %v633 = vshll.u32 %v571, 16
      %v635 = vor.u32 %v632, %v633
      %v637 = vshrl.u32 %v572, 16
      %v639 = vrot.slane %v637, 7
      %v640 = vshll.u32 %v572, 16
      %v642 = vor.u32 %v639, %v640
      %vm663 = vcmask 1040384
      %vm664 = vsmask.f32 256
      %vm665 = vmand %vm663, %vm664
      %v666 = vsel %vm665, 0, %v579
      %v667 = vsel %vm665, 0, %v586
      %v668 = vsel %vm665, 0, %v593
      %v669 = vsel %vm665, 0, %v600
      %v670 = vsel %vm665, 0, %v607
      %v671 = vsel %vm665, 0, %v614
      %v672 = vsel %vm665, 0, %v621
      %v673 = vsel %vm665, 0, %v628
      %v674 = vsel %vm665, 0, %v635
      %v675 = vsel %vm665, 0, %v642
      %v676 = vsel %vm665, %v576, 0
      %v677 = vsel %vm665, %v583, 0
      %v678 = vsel %vm665, %v590, 0
      %v679 = vsel %vm665, %v597, 0
      %v680 = vsel %vm665, %v604, 0
      %v681 = vsel %vm665, %v611, 0
      %v682 = vsel %vm665, %v618, 0
      %v683 = vsel %vm665, %v625, 0
      %v684 = vsel %vm665, %v632, 0
      %v685 = vsel %vm665, %v639, 0
      %v686 = vld [vmem:[%s1] sm:$0xf]
      %v687 = vld [vmem:[%s1 + $0x4] sm:$0xf]
      %v688 = vld [vmem:[%s1 + $0x8] sm:$0xf]
      %v689 = vld [vmem:[%s1 + $0xc] sm:$0xf]
      %v690 = vld [vmem:[%s1 + $0x10] sm:$0xf]
      %v691 = vld [vmem:[%s1 + $0x14] sm:$0xf]
      %v692 = vld [vmem:[%s1 + $0x18] sm:$0xf]
      %v693 = vld [vmem:[%s1 + $0x1c] sm:$0xf]
      %v694 = vld [vmem:[%s1 + $0x20] sm:$0xf]
      %v695 = vld [vmem:[%s1 + $0x24] sm:$0xf]
      %v696 = vld [vmem:[%s1 + $0x28] sm:$0xf]
      %v697 = vld [vmem:[%s1 + $0x2c] sm:$0xf]
      %v698 = vld [vmem:[%s1 + $0x30] sm:$0xf]
      %v699 = vld [vmem:[%s1 + $0x34] sm:$0xf]
      %v700 = vld [vmem:[%s1 + $0x38] sm:$0xf]
      %v701 = vld [vmem:[%s1 + $0x3c] sm:$0xf]
      %v702 = vld [vmem:[%s1 + $0x40] sm:$0xf]
      %v703 = vld [vmem:[%s1 + $0x44] sm:$0xf]
      %v704 = vld [vmem:[%s1 + $0x48] sm:$0xf]
      %v705 = vld [vmem:[%s1 + $0x4c] sm:$0xf]
      %v706 = vld [vmem:[%s1 + $0x50] sm:$0xf]
      %v707 = vld [vmem:[%s1 + $0x54] sm:$0xf]
      %v708 = vld [vmem:[%s1 + $0x58] sm:$0xf]
      %v709 = vld [vmem:[%s1 + $0x5c] sm:$0xf]
      %v710 = vld [vmem:[%s1 + $0x60] sm:$0xf]
      %v711 = vld [vmem:[%s1 + $0x64] sm:$0xf]
      %v712 = vld [vmem:[%s1 + $0x68] sm:$0xf]
      %v713 = vld [vmem:[%s1 + $0x6c] sm:$0xf]
      %v714 = vld [vmem:[%s1 + $0x70] sm:$0xf]
      %v715 = vld [vmem:[%s1 + $0x74] sm:$0xf]
      %v716 = vld [vmem:[%s1 + $0x78] sm:$0xf]
      %v717 = vld [vmem:[%s1 + $0x7c] sm:$0xf]
      %v718 = vld [vmem:[%s1 + $0x80] sm:$0xf]
      %v719 = vld [vmem:[%s1 + $0x84] sm:$0xf]
      %v720 = vld [vmem:[%s1 + $0x88] sm:$0xf]
      %v721 = vld [vmem:[%s1 + $0x8c] sm:$0xf]
      %v722 = vld [vmem:[%s1 + $0x90] sm:$0xf]
      %v723 = vld [vmem:[%s1 + $0x94] sm:$0xf]
      %v724 = vld [vmem:[%s1 + $0x98] sm:$0xf]
      %v725 = vld [vmem:[%s1 + $0x9c] sm:$0xf]
      %v726 = vld [vmem:[%s1 + $0xa0] sm:$0xf]
      %v727 = vld [vmem:[%s1 + $0xa4] sm:$0xf]
      %v728 = vld [vmem:[%s1 + $0xa8] sm:$0xf]
      %v729 = vld [vmem:[%s1 + $0xac] sm:$0xf]
      %v730 = vld [vmem:[%s1 + $0xb0] sm:$0xf]
      %v731 = vld [vmem:[%s1 + $0xb4] sm:$0xf]
      %v732 = vld [vmem:[%s1 + $0xb8] sm:$0xf]
      %v733 = vld [vmem:[%s1 + $0xbc] sm:$0xf]
      %s734 = scalar_lea.vmem %s1, 192
      %v735 = vld [vmem:[%s734] sm:$0xf]
      %v736 = vld [vmem:[%s734 + $0x4] sm:$0xf]
      %v737 = vld [vmem:[%s734 + $0x8] sm:$0xf]
      %v738 = vld [vmem:[%s734 + $0xc] sm:$0xf]
      %v739 = vld [vmem:[%s734 + $0x10] sm:$0xf]
      %v740 = vld [vmem:[%s734 + $0x14] sm:$0xf]
      %v741 = vld [vmem:[%s734 + $0x18] sm:$0xf]
      %v742 = vld [vmem:[%s734 + $0x1c] sm:$0xf]
      %v743 = vld [vmem:[%s734 + $0x20] sm:$0xf]
      %v744 = vld [vmem:[%s734 + $0x24] sm:$0xf]
      %v745 = vld [vmem:[%s734 + $0x28] sm:$0xf]
      %v746 = vld [vmem:[%s734 + $0x2c] sm:$0xf]
      %v747 = vld [vmem:[%s734 + $0x30] sm:$0xf]
      %v748 = vld [vmem:[%s734 + $0x34] sm:$0xf]
      %v749 = vld [vmem:[%s734 + $0x38] sm:$0xf]
      %v750 = vld [vmem:[%s734 + $0x3c] sm:$0xf]
      %v751 = vld [vmem:[%s734 + $0x40] sm:$0xf]
      %v752 = vld [vmem:[%s734 + $0x44] sm:$0xf]
      %v753 = vld [vmem:[%s734 + $0x48] sm:$0xf]
      %v754 = vld [vmem:[%s734 + $0x4c] sm:$0xf]
      %v755 = vld [vmem:[%s734 + $0x50] sm:$0xf]
      %v756 = vld [vmem:[%s734 + $0x54] sm:$0xf]
      %v757 = vld [vmem:[%s734 + $0x58] sm:$0xf]
      %v758 = vld [vmem:[%s734 + $0x5c] sm:$0xf]
      %v759 = vld [vmem:[%s734 + $0x60] sm:$0xf]
      %v760 = vld [vmem:[%s734 + $0x64] sm:$0xf]
      %v761 = vld [vmem:[%s734 + $0x68] sm:$0xf]
      %v762 = vld [vmem:[%s734 + $0x6c] sm:$0xf]
      %v763 = vld [vmem:[%s734 + $0x70] sm:$0xf]
      %v764 = vld [vmem:[%s734 + $0x74] sm:$0xf]
      %v765 = vld [vmem:[%s734 + $0x78] sm:$0xf]
      %v766 = vld [vmem:[%s734 + $0x7c] sm:$0xf]
      %v767 = vld [vmem:[%s734 + $0x80] sm:$0xf]
      %v768 = vld [vmem:[%s734 + $0x84] sm:$0xf]
      %v769 = vld [vmem:[%s734 + $0x88] sm:$0xf]
      %v770 = vld [vmem:[%s734 + $0x8c] sm:$0xf]
      %v771 = vld [vmem:[%s734 + $0x90] sm:$0xf]
      %v772 = vld [vmem:[%s734 + $0x94] sm:$0xf]
      %v773 = vld [vmem:[%s734 + $0x98] sm:$0xf]
      %v774 = vld [vmem:[%s734 + $0x9c] sm:$0xf]
      %v775 = vld [vmem:[%s734 + $0xa0] sm:$0xf]
      %v776 = vld [vmem:[%s734 + $0xa4] sm:$0xf]
      %v777 = vld [vmem:[%s734 + $0xa8] sm:$0xf]
      %v778 = vld [vmem:[%s734 + $0xac] sm:$0xf]
      %v779 = vld [vmem:[%s734 + $0xb0] sm:$0xf]
      %v780 = vld [vmem:[%s734 + $0xb4] sm:$0xf]
      %v781 = vld [vmem:[%s734 + $0xb8] sm:$0xf]
      %v782 = vld [vmem:[%s734 + $0xbc] sm:$0xf]
      %vm783 = vsmask.f32 7424
      %v785 = vshrl.u32 %v666, 16
      %v787 = vshll.u32 %v666, 16
      %v789 = vrot.slane %v787, 1
      %v790 = vor.u32 %v785, %v789
      %v792 = vshll.u32 %v676, 16
      %v794 = vrot.slane %v792, 1
      %v795 = vsel %vm783, %v790, %v794
      %v797 = vshrl.u32 %v667, 16
      %v799 = vshll.u32 %v667, 16
      %v801 = vrot.slane %v799, 1
      %v802 = vor.u32 %v797, %v801
      %v804 = vshll.u32 %v677, 16
      %v806 = vrot.slane %v804, 1
      %v807 = vsel %vm783, %v802, %v806
      %v809 = vshrl.u32 %v668, 16
      %v811 = vshll.u32 %v668, 16
      %v813 = vrot.slane %v811, 1
      %v814 = vor.u32 %v809, %v813
      %v816 = vshll.u32 %v678, 16
      %v818 = vrot.slane %v816, 1
      %v819 = vsel %vm783, %v814, %v818
      %v821 = vshrl.u32 %v669, 16
      %v823 = vshll.u32 %v669, 16
      %v825 = vrot.slane %v823, 1
      %v826 = vor.u32 %v821, %v825
      %v828 = vshll.u32 %v679, 16
      %v830 = vrot.slane %v828, 1
      %v831 = vsel %vm783, %v826, %v830
      %v833 = vshrl.u32 %v670, 16
      %v835 = vshll.u32 %v670, 16
      %v837 = vrot.slane %v835, 1
      %v838 = vor.u32 %v833, %v837
      %v840 = vshll.u32 %v680, 16
      %v842 = vrot.slane %v840, 1
      %v843 = vsel %vm783, %v838, %v842
      %v845 = vshrl.u32 %v671, 16
      %v847 = vshll.u32 %v671, 16
      %v849 = vrot.slane %v847, 1
      %v850 = vor.u32 %v845, %v849
      %v852 = vshll.u32 %v681, 16
      %v854 = vrot.slane %v852, 1
      %v855 = vsel %vm783, %v850, %v854
      %v857 = vshrl.u32 %v672, 16
      %v859 = vshll.u32 %v672, 16
      %v861 = vrot.slane %v859, 1
      %v862 = vor.u32 %v857, %v861
      %v864 = vshll.u32 %v682, 16
      %v866 = vrot.slane %v864, 1
      %v867 = vsel %vm783, %v862, %v866
      %v869 = vshrl.u32 %v673, 16
      %v871 = vshll.u32 %v673, 16
      %v873 = vrot.slane %v871, 1
      %v874 = vor.u32 %v869, %v873
      %v876 = vshll.u32 %v683, 16
      %v878 = vrot.slane %v876, 1
      %v879 = vsel %vm783, %v874, %v878
      %v881 = vshrl.u32 %v674, 16
      %v883 = vshll.u32 %v674, 16
      %v885 = vrot.slane %v883, 1
      %v886 = vor.u32 %v881, %v885
      %v888 = vshll.u32 %v684, 16
      %v890 = vrot.slane %v888, 1
      %v891 = vsel %vm783, %v886, %v890
      %v893 = vshrl.u32 %v675, 16
      %v895 = vshll.u32 %v675, 16
      %v897 = vrot.slane %v895, 1
      %v898 = vor.u32 %v893, %v897
      %v900 = vshll.u32 %v685, 16
      %v902 = vrot.slane %v900, 1
      %v903 = vsel %vm783, %v898, %v902
      %v962 = vunpack.c.l.b16 %v735
      %v963 = vunpack.c.l.b16 %v736
      %v964 = vunpack.c.l.b16 %v737
      %v965 = vunpack.c.l.b16 %v738
      %v966 = vunpack.c.l.b16 %v739
      %v967 = vunpack.c.l.b16 %v740
      %v968 = vunpack.c.l.b16 %v741
      %v969 = vunpack.c.l.b16 %v742
      %v970 = vunpack.c.l.b16 %v743
      %v971 = vunpack.c.l.b16 %v744
      %v972 = vunpack.c.l.b16 %v745
      %v973 = vunpack.c.l.b16 %v746
      %v974 = vunpack.c.l.b16 %v747
      %v975 = vunpack.c.l.b16 %v748
      %v976 = vunpack.c.l.b16 %v749
      %v977 = vunpack.c.l.b16 %v750
      %v978 = vunpack.c.l.b16 %v751
      %v979 = vunpack.c.l.b16 %v752
      %v980 = vunpack.c.l.b16 %v753
      %v981 = vunpack.c.l.b16 %v754
      %v982 = vunpack.c.l.b16 %v755
      %v983 = vunpack.c.l.b16 %v756
      %v984 = vunpack.c.l.b16 %v757
      %v985 = vunpack.c.l.b16 %v758
      %v986 = vunpack.c.l.b16 %v759
      %v987 = vunpack.c.l.b16 %v760
      %v988 = vunpack.c.l.b16 %v761
      %v989 = vunpack.c.l.b16 %v762
      %v990 = vunpack.c.l.b16 %v763
      %v991 = vunpack.c.l.b16 %v764
      %v992 = vunpack.c.l.b16 %v765
      %v993 = vunpack.c.l.b16 %v766
      %v994 = vunpack.c.l.b16 %v767
      %v995 = vunpack.c.l.b16 %v768
      %v996 = vunpack.c.l.b16 %v769
      %v997 = vunpack.c.l.b16 %v770
      %v998 = vunpack.c.l.b16 %v771
      %v999 = vunpack.c.l.b16 %v772
      %v1000 = vunpack.c.l.b16 %v773
      %v1001 = vunpack.c.l.b16 %v774
      %v1002 = vunpack.c.l.b16 %v775
      %v1003 = vunpack.c.l.b16 %v776
      %v1004 = vunpack.c.l.b16 %v777
      %v1005 = vunpack.c.l.b16 %v778
      %v1006 = vunpack.c.l.b16 %v779
      %v1007 = vunpack.c.l.b16 %v780
      %v1008 = vunpack.c.l.b16 %v781
      %v1009 = vunpack.c.l.b16 %v782
      %v1010 = vpack.c.b16 %v963, %v962
      %v1011 = vpack.c.b16 %v965, %v964
      %v1012 = vpack.c.b16 %v967, %v966
      %v1013 = vpack.c.b16 %v969, %v968
      %v1014 = vpack.c.b16 %v971, %v970
      %v1015 = vpack.c.b16 %v973, %v972
      %v1016 = vpack.c.b16 %v975, %v974
      %v1017 = vpack.c.b16 %v977, %v976
      %v1018 = vpack.c.b16 %v979, %v978
      %v1019 = vpack.c.b16 %v981, %v980
      %v1020 = vpack.c.b16 %v983, %v982
      %v1021 = vpack.c.b16 %v985, %v984
      %v1022 = vpack.c.b16 %v987, %v986
      %v1023 = vpack.c.b16 %v989, %v988
      %v1024 = vpack.c.b16 %v991, %v990
      %v1025 = vpack.c.b16 %v993, %v992
      %v1026 = vpack.c.b16 %v995, %v994
      %v1027 = vpack.c.b16 %v997, %v996
      %v1028 = vpack.c.b16 %v999, %v998
      %v1029 = vpack.c.b16 %v1001, %v1000
      %v1030 = vpack.c.b16 %v1003, %v1002
      %v1031 = vpack.c.b16 %v1005, %v1004
      %v1032 = vpack.c.b16 %v1007, %v1006
      %v1033 = vpack.c.b16 %v1009, %v1008
      %1058 = vmatprep.subr.bf16.mxu0 0
      %1059 = vmatpush1.bf16.msra.mxu0 %v1017
      %1060 = vmatprep.subr.bf16.mxu0 0
      %1061 = vmatpush1.bf16.msra.mxu0 %v1016
      %1062 = vmatprep.subr.bf16.mxu0 0
      %1063 = vmatpush1.bf16.msra.mxu0 %v1015
      %1064 = vmatprep.subr.bf16.mxu0 0
      %1065 = vmatpush1.bf16.msra.mxu0 %v1014
      %1066 = vmatprep.subr.bf16.mxu0 0
      %1067 = vmatpush1.bf16.msra.mxu0 %v1013
      %1068 = vmatprep.subr.bf16.mxu0 0
      %1069 = vmatpush1.bf16.msra.mxu0 %v1012
      %1070 = vmatprep.subr.bf16.mxu0 0
      %1071 = vmatpush1.bf16.msra.mxu0 %v1011
      %1072 = vmatprep.subr.bf16.mxu0 0
      %1073 = vmatpush1.bf16.msra.mxu0 %v1010
      %1074 = vmatprep.subr.bf16.mxu0 0
      %1075 = vmatpush2.bf16.msra.mxu0 %v1025
      %1076 = vmatprep.subr.bf16.mxu0 0
      %1077 = vmatpush2.bf16.msra.mxu0 %v1024
      %1078 = vmatprep.subr.bf16.mxu0 0
      %1079 = vmatpush2.bf16.msra.mxu0 %v1023
      %1080 = vmatprep.subr.bf16.mxu0 0
      %1081 = vmatpush2.bf16.msra.mxu0 %v1022
      %1082 = vmatprep.subr.bf16.mxu0 0
      %1083 = vmatpush2.bf16.msra.mxu0 %v1021
      %1084 = vmatprep.subr.bf16.mxu0 0
      %1085 = vmatpush2.bf16.msra.mxu0 %v1020
      %1086 = vmatprep.subr.bf16.mxu0 0
      %1087 = vmatpush2.bf16.msra.mxu0 %v1019
      %1088 = vmatprep.subr.bf16.mxu0 0
      %1089 = vmatpush2.bf16.msra.mxu0 %v1018
      %1090 = vmatprep.mubr.bf16.mxu0 %v807
      %1091 = vmatmul.mubr.bf16.gmra.mxu0 %v795
      %v1092 = vpop.f32.mrf.mxu0
      %v1093 = vadd.f32 0.0, %v1092
      %v1094 = vpop.f32.mrf.mxu0
      %v1095 = vpop.f32.mrf.mxu0
      %v1096 = vadd.f32 0.0, %v1095
      %v1097 = vpop.f32.mrf.mxu0
      %1098 = vmatprep.mubr.bf16.mxu0 %v819
      %1099 = vmatmul.mubr.bf16.gmra.mxu0 %v807
      %v1100 = vpop.f32.mrf.mxu0
      %v1101 = vadd.f32 0.0, %v1100
      %v1102 = vpop.f32.mrf.mxu0
      %v1103 = vpop.f32.mrf.mxu0
      %v1104 = vadd.f32 0.0, %v1103
      %v1105 = vpop.f32.mrf.mxu0
      %1106 = vmatprep.mubr.bf16.mxu0 %v831
      %1107 = vmatmul.mubr.bf16.gmra.mxu0 %v819
      %v1108 = vpop.f32.mrf.mxu0
      %v1109 = vadd.f32 0.0, %v1108
      %v1110 = vpop.f32.mrf.mxu0
      %v1111 = vpop.f32.mrf.mxu0
      %v1112 = vadd.f32 0.0, %v1111
      %v1113 = vpop.f32.mrf.mxu0
      %1114 = vmatprep.mubr.bf16.mxu0 %v843
      %1115 = vmatmul.mubr.bf16.gmra.mxu0 %v831
      %v1116 = vpop.f32.mrf.mxu0
      %v1117 = vadd.f32 0.0, %v1116
      %v1118 = vpop.f32.mrf.mxu0
      %v1119 = vpop.f32.mrf.mxu0
      %v1120 = vadd.f32 0.0, %v1119
      %v1121 = vpop.f32.mrf.mxu0
      %1122 = vmatprep.mubr.bf16.mxu0 %v855
      %1123 = vmatmul.mubr.bf16.gmra.mxu0 %v843
      %v1124 = vpop.f32.mrf.mxu0
      %v1125 = vadd.f32 0.0, %v1124
      %v1126 = vpop.f32.mrf.mxu0
      %v1127 = vpop.f32.mrf.mxu0
      %v1128 = vadd.f32 0.0, %v1127
      %v1129 = vpop.f32.mrf.mxu0
      %1130 = vmatprep.mubr.bf16.mxu0 %v867
      %1131 = vmatmul.mubr.bf16.gmra.mxu0 %v855
      %v1132 = vpop.f32.mrf.mxu0
      %v1133 = vadd.f32 0.0, %v1132
      %v1134 = vpop.f32.mrf.mxu0
      %v1135 = vpop.f32.mrf.mxu0
      %v1136 = vadd.f32 0.0, %v1135
      %v1137 = vpop.f32.mrf.mxu0
      %1138 = vmatprep.mubr.bf16.mxu0 %v879
      %1139 = vmatmul.mubr.bf16.gmra.mxu0 %v867
      %v1140 = vpop.f32.mrf.mxu0
      %v1141 = vadd.f32 0.0, %v1140
      %v1142 = vpop.f32.mrf.mxu0
      %v1143 = vpop.f32.mrf.mxu0
      %v1144 = vadd.f32 0.0, %v1143
      %v1145 = vpop.f32.mrf.mxu0
      %1146 = vmatprep.mubr.bf16.mxu0 %v891
      %1147 = vmatmul.mubr.bf16.gmra.mxu0 %v879
      %v1148 = vpop.f32.mrf.mxu0
      %v1149 = vadd.f32 0.0, %v1148
      %v1150 = vpop.f32.mrf.mxu0
      %v1151 = vpop.f32.mrf.mxu0
      %v1152 = vadd.f32 0.0, %v1151
      %v1153 = vpop.f32.mrf.mxu0
      %1154 = vdwg.mxu0
      %1155 = vmatprep.subr.bf16.mxu0 0
      %1156 = vmatpush1.bf16.msra.mxu0 %v1033
      %1157 = vmatprep.subr.bf16.mxu0 0
      %1158 = vmatpush1.bf16.msra.mxu0 %v1032
      %1159 = vmatprep.subr.bf16.mxu0 0
      %1160 = vmatpush1.bf16.msra.mxu0 %v1031
      %1161 = vmatprep.subr.bf16.mxu0 0
      %1162 = vmatpush1.bf16.msra.mxu0 %v1030
      %1163 = vmatprep.subr.bf16.mxu0 0
      %1164 = vmatpush1.bf16.msra.mxu0 %v1029
      %1165 = vmatprep.subr.bf16.mxu0 0
      %1166 = vmatpush1.bf16.msra.mxu0 %v1028
      %1167 = vmatprep.subr.bf16.mxu0 0
      %1168 = vmatpush1.bf16.msra.mxu0 %v1027
      %1169 = vmatprep.subr.bf16.mxu0 0
      %1170 = vmatpush1.bf16.msra.mxu0 %v1026
      %1171 = vmatprep.subr.bf16.mxu0 0
      %1172 = vmatpush2.bf16.msra.mxu0 0
      %1173 = vmatprep.subr.bf16.mxu0 0
      %1174 = vmatpush2.bf16.msra.mxu0 0
      %1175 = vmatprep.subr.bf16.mxu0 0
      %1176 = vmatpush2.bf16.msra.mxu0 0
      %1177 = vmatprep.subr.bf16.mxu0 0
      %1178 = vmatpush2.bf16.msra.mxu0 0
      %1179 = vmatprep.subr.bf16.mxu0 0
      %1180 = vmatpush2.bf16.msra.mxu0 0
      %1181 = vmatprep.subr.bf16.mxu0 0
      %1182 = vmatpush2.bf16.msra.mxu0 0
      %1183 = vmatprep.subr.bf16.mxu0 0
      %1184 = vmatpush2.bf16.msra.mxu0 0
      %1185 = vmatprep.subr.bf16.mxu0 0
      %1186 = vmatpush2.bf16.msra.mxu0 0
      %1187 = vmatprep.mubr.bf16.mxu0 0
      %1188 = vmatmul.mubr.bf16.gmra.mxu0 %v819
      %v1189 = vpop.f32.mrf.mxu0
      %v1190 = vadd.f32 %v1093, %v1189
      %v1191 = vpop.f32.mrf.mxu0
      %v1192 = vpop.f32.mrf.mxu0
      %v1193 = vadd.f32 %v1096, %v1192
      %v1194 = vpop.f32.mrf.mxu0
      %1195 = vmatprep.mubr.bf16.mxu0 0
      %1196 = vmatmul.mubr.bf16.gmra.mxu0 %v831
      %v1197 = vpop.f32.mrf.mxu0
      %v1198 = vadd.f32 %v1101, %v1197
      %v1199 = vpop.f32.mrf.mxu0
      %v1200 = vpop.f32.mrf.mxu0
      %v1201 = vadd.f32 %v1104, %v1200
      %v1202 = vpop.f32.mrf.mxu0
      %1203 = vmatprep.mubr.bf16.mxu0 0
      %1204 = vmatmul.mubr.bf16.gmra.mxu0 %v843
      %v1205 = vpop.f32.mrf.mxu0
      %v1206 = vadd.f32 %v1109, %v1205
      %v1207 = vpop.f32.mrf.mxu0
      %v1208 = vpop.f32.mrf.mxu0
      %v1209 = vadd.f32 %v1112, %v1208
      %v1210 = vpop.f32.mrf.mxu0
      %1211 = vmatprep.mubr.bf16.mxu0 0
      %1212 = vmatmul.mubr.bf16.gmra.mxu0 %v855
      %v1213 = vpop.f32.mrf.mxu0
      %v1214 = vadd.f32 %v1117, %v1213
      %v1215 = vpop.f32.mrf.mxu0
      %v1216 = vpop.f32.mrf.mxu0
      %v1217 = vadd.f32 %v1120, %v1216
      %v1218 = vpop.f32.mrf.mxu0
      %1219 = vmatprep.mubr.bf16.mxu0 0
      %1220 = vmatmul.mubr.bf16.gmra.mxu0 %v867
      %v1221 = vpop.f32.mrf.mxu0
      %v1222 = vadd.f32 %v1125, %v1221
      %v1223 = vpop.f32.mrf.mxu0
      %v1224 = vpop.f32.mrf.mxu0
      %v1225 = vadd.f32 %v1128, %v1224
      %v1226 = vpop.f32.mrf.mxu0
      %1227 = vmatprep.mubr.bf16.mxu0 0
      %1228 = vmatmul.mubr.bf16.gmra.mxu0 %v879
      %v1229 = vpop.f32.mrf.mxu0
      %v1230 = vadd.f32 %v1133, %v1229
      %v1231 = vpop.f32.mrf.mxu0
      %v1232 = vpop.f32.mrf.mxu0
      %v1233 = vadd.f32 %v1136, %v1232
      %v1234 = vpop.f32.mrf.mxu0
      %1235 = vmatprep.mubr.bf16.mxu0 0
      %1236 = vmatmul.mubr.bf16.gmra.mxu0 %v891
      %v1237 = vpop.f32.mrf.mxu0
      %v1238 = vadd.f32 %v1141, %v1237
      %v1239 = vpop.f32.mrf.mxu0
      %v1240 = vpop.f32.mrf.mxu0
      %v1241 = vadd.f32 %v1144, %v1240
      %v1242 = vpop.f32.mrf.mxu0
      %1243 = vmatprep.mubr.bf16.mxu0 0
      %1244 = vmatmul.mubr.bf16.gmra.mxu0 %v903
      %v1245 = vpop.f32.mrf.mxu0
      %v1246 = vadd.f32 %v1149, %v1245
      %v1247 = vpop.f32.mrf.mxu0
      %v1248 = vpop.f32.mrf.mxu0
      %v1249 = vadd.f32 %v1152, %v1248
      %v1250 = vpop.f32.mrf.mxu0
      %1251 = vdwg.mxu0
      %v1300 = vunpack.c.l.b16 %v686
      %v1301 = vunpack.c.l.b16 %v687
      %v1302 = vunpack.c.l.b16 %v688
      %v1303 = vunpack.c.l.b16 %v689
      %v1304 = vunpack.c.l.b16 %v690
      %v1305 = vunpack.c.l.b16 %v691
      %v1306 = vunpack.c.l.b16 %v692
      %v1307 = vunpack.c.l.b16 %v693
      %v1308 = vunpack.c.l.b16 %v694
      %v1309 = vunpack.c.l.b16 %v695
      %v1310 = vunpack.c.l.b16 %v696
      %v1311 = vunpack.c.l.b16 %v697
      %v1312 = vunpack.c.l.b16 %v698
      %v1313 = vunpack.c.l.b16 %v699
      %v1314 = vunpack.c.l.b16 %v700
      %v1315 = vunpack.c.l.b16 %v701
      %v1316 = vunpack.c.l.b16 %v702
      %v1317 = vunpack.c.l.b16 %v703
      %v1318 = vunpack.c.l.b16 %v704
      %v1319 = vunpack.c.l.b16 %v705
      %v1320 = vunpack.c.l.b16 %v706
      %v1321 = vunpack.c.l.b16 %v707
      %v1322 = vunpack.c.l.b16 %v708
      %v1323 = vunpack.c.l.b16 %v709
      %v1324 = vunpack.c.l.b16 %v710
      %v1325 = vunpack.c.l.b16 %v711
      %v1326 = vunpack.c.l.b16 %v712
      %v1327 = vunpack.c.l.b16 %v713
      %v1328 = vunpack.c.l.b16 %v714
      %v1329 = vunpack.c.l.b16 %v715
      %v1330 = vunpack.c.l.b16 %v716
      %v1331 = vunpack.c.l.b16 %v717
      %v1332 = vunpack.c.l.b16 %v718
      %v1333 = vunpack.c.l.b16 %v719
      %v1334 = vunpack.c.l.b16 %v720
      %v1335 = vunpack.c.l.b16 %v721
      %v1336 = vunpack.c.l.b16 %v722
      %v1337 = vunpack.c.l.b16 %v723
      %v1338 = vunpack.c.l.b16 %v724
      %v1339 = vunpack.c.l.b16 %v725
      %v1340 = vunpack.c.l.b16 %v726
      %v1341 = vunpack.c.l.b16 %v727
      %v1342 = vunpack.c.l.b16 %v728
      %v1343 = vunpack.c.l.b16 %v729
      %v1344 = vunpack.c.l.b16 %v730
      %v1345 = vunpack.c.l.b16 %v731
      %v1346 = vunpack.c.l.b16 %v732
      %v1347 = vunpack.c.l.b16 %v733
      %v1348 = vpack.c.b16 %v1301, %v1300
      %v1349 = vpack.c.b16 %v1303, %v1302
      %v1350 = vpack.c.b16 %v1305, %v1304
      %v1351 = vpack.c.b16 %v1307, %v1306
      %v1352 = vpack.c.b16 %v1309, %v1308
      %v1353 = vpack.c.b16 %v1311, %v1310
      %v1354 = vpack.c.b16 %v1313, %v1312
      %v1355 = vpack.c.b16 %v1315, %v1314
      %v1356 = vpack.c.b16 %v1317, %v1316
      %v1357 = vpack.c.b16 %v1319, %v1318
      %v1358 = vpack.c.b16 %v1321, %v1320
      %v1359 = vpack.c.b16 %v1323, %v1322
      %v1360 = vpack.c.b16 %v1325, %v1324
      %v1361 = vpack.c.b16 %v1327, %v1326
      %v1362 = vpack.c.b16 %v1329, %v1328
      %v1363 = vpack.c.b16 %v1331, %v1330
      %v1364 = vpack.c.b16 %v1333, %v1332
      %v1365 = vpack.c.b16 %v1335, %v1334
      %v1366 = vpack.c.b16 %v1337, %v1336
      %v1367 = vpack.c.b16 %v1339, %v1338
      %v1368 = vpack.c.b16 %v1341, %v1340
      %v1369 = vpack.c.b16 %v1343, %v1342
      %v1370 = vpack.c.b16 %v1345, %v1344
      %v1371 = vpack.c.b16 %v1347, %v1346
      %1396 = vmatprep.subr.bf16.mxu0 0
      %1397 = vmatpush1.bf16.msra.mxu0 %v1355
      %1398 = vmatprep.subr.bf16.mxu0 0
      %1399 = vmatpush1.bf16.msra.mxu0 %v1354
      %1400 = vmatprep.subr.bf16.mxu0 0
      %1401 = vmatpush1.bf16.msra.mxu0 %v1353
      %1402 = vmatprep.subr.bf16.mxu0 0
      %1403 = vmatpush1.bf16.msra.mxu0 %v1352
      %1404 = vmatprep.subr.bf16.mxu0 0
      %1405 = vmatpush1.bf16.msra.mxu0 %v1351
      %1406 = vmatprep.subr.bf16.mxu0 0
      %1407 = vmatpush1.bf16.msra.mxu0 %v1350
      %1408 = vmatprep.subr.bf16.mxu0 0
      %1409 = vmatpush1.bf16.msra.mxu0 %v1349
      %1410 = vmatprep.subr.bf16.mxu0 0
      %1411 = vmatpush1.bf16.msra.mxu0 %v1348
      %1412 = vmatprep.subr.bf16.mxu0 0
      %1413 = vmatpush2.bf16.msra.mxu0 %v1363
      %1414 = vmatprep.subr.bf16.mxu0 0
      %1415 = vmatpush2.bf16.msra.mxu0 %v1362
      %1416 = vmatprep.subr.bf16.mxu0 0
      %1417 = vmatpush2.bf16.msra.mxu0 %v1361
      %1418 = vmatprep.subr.bf16.mxu0 0
      %1419 = vmatpush2.bf16.msra.mxu0 %v1360
      %1420 = vmatprep.subr.bf16.mxu0 0
      %1421 = vmatpush2.bf16.msra.mxu0 %v1359
      %1422 = vmatprep.subr.bf16.mxu0 0
      %1423 = vmatpush2.bf16.msra.mxu0 %v1358
      %1424 = vmatprep.subr.bf16.mxu0 0
      %1425 = vmatpush2.bf16.msra.mxu0 %v1357
      %1426 = vmatprep.subr.bf16.mxu0 0
      %1427 = vmatpush2.bf16.msra.mxu0 %v1356
      %1428 = vmatprep.mubr.bf16.mxu0 %v667
      %1429 = vmatmul.mubr.bf16.gmra.mxu0 %v666
      %v1430 = vpop.f32.mrf.mxu0
      %v1431 = vadd.f32 %v1190, %v1430
      %v1432 = vpop.f32.mrf.mxu0
      %v1433 = vpop.f32.mrf.mxu0
      %v1434 = vadd.f32 %v1193, %v1433
      %v1435 = vpop.f32.mrf.mxu0
      %1436 = vmatprep.mubr.bf16.mxu0 %v668
      %1437 = vmatmul.mubr.bf16.gmra.mxu0 %v667
      %v1438 = vpop.f32.mrf.mxu0
      %v1439 = vadd.f32 %v1198, %v1438
      %v1440 = vpop.f32.mrf.mxu0
      %v1441 = vpop.f32.mrf.mxu0
      %v1442 = vadd.f32 %v1201, %v1441
      %v1443 = vpop.f32.mrf.mxu0
      %1444 = vmatprep.mubr.bf16.mxu0 %v669
      %1445 = vmatmul.mubr.bf16.gmra.mxu0 %v668
      %v1446 = vpop.f32.mrf.mxu0
      %v1447 = vadd.f32 %v1206, %v1446
      %v1448 = vpop.f32.mrf.mxu0
      %v1449 = vpop.f32.mrf.mxu0
      %v1450 = vadd.f32 %v1209, %v1449
      %v1451 = vpop.f32.mrf.mxu0
      %1452 = vmatprep.mubr.bf16.mxu0 %v670
      %1453 = vmatmul.mubr.bf16.gmra.mxu0 %v669
      %v1454 = vpop.f32.mrf.mxu0
      %v1455 = vadd.f32 %v1214, %v1454
      %v1456 = vpop.f32.mrf.mxu0
      %v1457 = vpop.f32.mrf.mxu0
      %v1458 = vadd.f32 %v1217, %v1457
      %v1459 = vpop.f32.mrf.mxu0
      %1460 = vmatprep.mubr.bf16.mxu0 %v671
      %1461 = vmatmul.mubr.bf16.gmra.mxu0 %v670
      %v1462 = vpop.f32.mrf.mxu0
      %v1463 = vadd.f32 %v1222, %v1462
      %v1464 = vpop.f32.mrf.mxu0
      %v1465 = vpop.f32.mrf.mxu0
      %v1466 = vadd.f32 %v1225, %v1465
      %v1467 = vpop.f32.mrf.mxu0
      %1468 = vmatprep.mubr.bf16.mxu0 %v672
      %1469 = vmatmul.mubr.bf16.gmra.mxu0 %v671
      %v1470 = vpop.f32.mrf.mxu0
      %v1471 = vadd.f32 %v1230, %v1470
      %v1472 = vpop.f32.mrf.mxu0
      %v1473 = vpop.f32.mrf.mxu0
      %v1474 = vadd.f32 %v1233, %v1473
      %v1475 = vpop.f32.mrf.mxu0
      %1476 = vmatprep.mubr.bf16.mxu0 %v673
      %1477 = vmatmul.mubr.bf16.gmra.mxu0 %v672
      %v1478 = vpop.f32.mrf.mxu0
      %v1479 = vadd.f32 %v1238, %v1478
      %v1480 = vpop.f32.mrf.mxu0
      %v1481 = vpop.f32.mrf.mxu0
      %v1482 = vadd.f32 %v1241, %v1481
      %v1483 = vpop.f32.mrf.mxu0
      %1484 = vmatprep.mubr.bf16.mxu0 %v674
      %1485 = vmatmul.mubr.bf16.gmra.mxu0 %v673
      %v1486 = vpop.f32.mrf.mxu0
      %v1487 = vadd.f32 %v1246, %v1486
      %v1488 = vpop.f32.mrf.mxu0
      %v1489 = vpop.f32.mrf.mxu0
      %v1490 = vadd.f32 %v1249, %v1489
      %v1491 = vpop.f32.mrf.mxu0
      %1492 = vdwg.mxu0
      %1493 = vmatprep.subr.bf16.mxu0 0
      %1494 = vmatpush1.bf16.msra.mxu0 %v1371
      %1495 = vmatprep.subr.bf16.mxu0 0
      %1496 = vmatpush1.bf16.msra.mxu0 %v1370
      %1497 = vmatprep.subr.bf16.mxu0 0
      %1498 = vmatpush1.bf16.msra.mxu0 %v1369
      %1499 = vmatprep.subr.bf16.mxu0 0
      %1500 = vmatpush1.bf16.msra.mxu0 %v1368
      %1501 = vmatprep.subr.bf16.mxu0 0
      %1502 = vmatpush1.bf16.msra.mxu0 %v1367
      %1503 = vmatprep.subr.bf16.mxu0 0
      %1504 = vmatpush1.bf16.msra.mxu0 %v1366
      %1505 = vmatprep.subr.bf16.mxu0 0
      %1506 = vmatpush1.bf16.msra.mxu0 %v1365
      %1507 = vmatprep.subr.bf16.mxu0 0
      %1508 = vmatpush1.bf16.msra.mxu0 %v1364
      %1509 = vmatprep.subr.bf16.mxu0 0
      %1510 = vmatpush2.bf16.msra.mxu0 0
      %1511 = vmatprep.subr.bf16.mxu0 0
      %1512 = vmatpush2.bf16.msra.mxu0 0
      %1513 = vmatprep.subr.bf16.mxu0 0
      %1514 = vmatpush2.bf16.msra.mxu0 0
      %1515 = vmatprep.subr.bf16.mxu0 0
      %1516 = vmatpush2.bf16.msra.mxu0 0
      %1517 = vmatprep.subr.bf16.mxu0 0
      %1518 = vmatpush2.bf16.msra.mxu0 0
      %1519 = vmatprep.subr.bf16.mxu0 0
      %1520 = vmatpush2.bf16.msra.mxu0 0
      %1521 = vmatprep.subr.bf16.mxu0 0
      %1522 = vmatpush2.bf16.msra.mxu0 0
      %1523 = vmatprep.subr.bf16.mxu0 0
      %1524 = vmatpush2.bf16.msra.mxu0 0
      %1525 = vmatprep.mubr.bf16.mxu0 0
      %1526 = vmatmul.mubr.bf16.gmra.mxu0 %v668
      %v1527 = vpop.f32.mrf.mxu0
      %v1528 = vadd.f32 %v1431, %v1527
      %v1529 = vpop.f32.mrf.mxu0
      %v1530 = vpop.f32.mrf.mxu0
      %v1531 = vadd.f32 %v1434, %v1530
      %v1532 = vpop.f32.mrf.mxu0
      %1533 = vmatprep.mubr.bf16.mxu0 0
      %1534 = vmatmul.mubr.bf16.gmra.mxu0 %v669
      %v1535 = vpop.f32.mrf.mxu0
      %v1536 = vadd.f32 %v1439, %v1535
      %v1537 = vpop.f32.mrf.mxu0
      %v1538 = vpop.f32.mrf.mxu0
      %v1539 = vadd.f32 %v1442, %v1538
      %v1540 = vpop.f32.mrf.mxu0
      %1541 = vmatprep.mubr.bf16.mxu0 0
      %1542 = vmatmul.mubr.bf16.gmra.mxu0 %v670
      %v1543 = vpop.f32.mrf.mxu0
      %v1544 = vadd.f32 %v1447, %v1543
      %v1545 = vpop.f32.mrf.mxu0
      %v1546 = vpop.f32.mrf.mxu0
      %v1547 = vadd.f32 %v1450, %v1546
      %v1548 = vpop.f32.mrf.mxu0
      %1549 = vmatprep.mubr.bf16.mxu0 0
      %1550 = vmatmul.mubr.bf16.gmra.mxu0 %v671
      %v1551 = vpop.f32.mrf.mxu0
      %v1552 = vadd.f32 %v1455, %v1551
      %v1553 = vpop.f32.mrf.mxu0
      %v1554 = vpop.f32.mrf.mxu0
      %v1555 = vadd.f32 %v1458, %v1554
      %v1556 = vpop.f32.mrf.mxu0
      %1557 = vmatprep.mubr.bf16.mxu0 0
      %1558 = vmatmul.mubr.bf16.gmra.mxu0 %v672
      %v1559 = vpop.f32.mrf.mxu0
      %v1560 = vadd.f32 %v1463, %v1559
      %v1561 = vpop.f32.mrf.mxu0
      %v1562 = vpop.f32.mrf.mxu0
      %v1563 = vadd.f32 %v1466, %v1562
      %v1564 = vpop.f32.mrf.mxu0
      %1565 = vmatprep.mubr.bf16.mxu0 0
      %1566 = vmatmul.mubr.bf16.gmra.mxu0 %v673
      %v1567 = vpop.f32.mrf.mxu0
      %v1568 = vadd.f32 %v1471, %v1567
      %v1569 = vpop.f32.mrf.mxu0
      %v1570 = vpop.f32.mrf.mxu0
      %v1571 = vadd.f32 %v1474, %v1570
      %v1572 = vpop.f32.mrf.mxu0
      %1573 = vmatprep.mubr.bf16.mxu0 0
      %1574 = vmatmul.mubr.bf16.gmra.mxu0 %v674
      %v1575 = vpop.f32.mrf.mxu0
      %v1576 = vadd.f32 %v1479, %v1575
      %v1577 = vpop.f32.mrf.mxu0
      %v1578 = vpop.f32.mrf.mxu0
      %v1579 = vadd.f32 %v1482, %v1578
      %v1580 = vpop.f32.mrf.mxu0
      %1581 = vmatprep.mubr.bf16.mxu0 0
      %1582 = vmatmul.mubr.bf16.gmra.mxu0 %v675
      %v1583 = vpop.f32.mrf.mxu0
      %v1584 = vadd.f32 %v1487, %v1583
      %v1585 = vpop.f32.mrf.mxu0
      %v1586 = vpop.f32.mrf.mxu0
      %v1587 = vadd.f32 %v1490, %v1586
      %v1588 = vpop.f32.mrf.mxu0
      %1589 = vdwg.mxu0
      %s1590 = scalar_lea.vmem %s1, 384
      %v1591 = vld [vmem:[%s1590] sm:$0xf]
      %v1592 = vld [vmem:[%s1590 + $0x4] sm:$0xf]
      %v1593 = vld [vmem:[%s1590 + $0x8] sm:$0xf]
      %v1594 = vld [vmem:[%s1590 + $0xc] sm:$0xf]
      %v1595 = vld [vmem:[%s1590 + $0x10] sm:$0xf]
      %v1596 = vld [vmem:[%s1590 + $0x14] sm:$0xf]
      %v1597 = vld [vmem:[%s1590 + $0x18] sm:$0xf]
      %v1598 = vld [vmem:[%s1590 + $0x1c] sm:$0xf]
      %v1599 = vld [vmem:[%s1590 + $0x20] sm:$0xf]
      %v1600 = vld [vmem:[%s1590 + $0x24] sm:$0xf]
      %v1601 = vld [vmem:[%s1590 + $0x28] sm:$0xf]
      %v1602 = vld [vmem:[%s1590 + $0x2c] sm:$0xf]
      %v1603 = vld [vmem:[%s1590 + $0x30] sm:$0xf]
      %v1604 = vld [vmem:[%s1590 + $0x34] sm:$0xf]
      %v1605 = vld [vmem:[%s1590 + $0x38] sm:$0xf]
      %v1606 = vld [vmem:[%s1590 + $0x3c] sm:$0xf]
      %v1607 = vld [vmem:[%s1590 + $0x40] sm:$0xf]
      %v1608 = vld [vmem:[%s1590 + $0x44] sm:$0xf]
      %v1609 = vld [vmem:[%s1590 + $0x48] sm:$0xf]
      %v1610 = vld [vmem:[%s1590 + $0x4c] sm:$0xf]
      %v1611 = vld [vmem:[%s1590 + $0x50] sm:$0xf]
      %v1612 = vld [vmem:[%s1590 + $0x54] sm:$0xf]
      %v1613 = vld [vmem:[%s1590 + $0x58] sm:$0xf]
      %v1614 = vld [vmem:[%s1590 + $0x5c] sm:$0xf]
      %v1615 = vld [vmem:[%s1590 + $0x60] sm:$0xf]
      %v1616 = vld [vmem:[%s1590 + $0x64] sm:$0xf]
      %v1617 = vld [vmem:[%s1590 + $0x68] sm:$0xf]
      %v1618 = vld [vmem:[%s1590 + $0x6c] sm:$0xf]
      %v1619 = vld [vmem:[%s1590 + $0x70] sm:$0xf]
      %v1620 = vld [vmem:[%s1590 + $0x74] sm:$0xf]
      %v1621 = vld [vmem:[%s1590 + $0x78] sm:$0xf]
      %v1622 = vld [vmem:[%s1590 + $0x7c] sm:$0xf]
      %v1623 = vld [vmem:[%s1590 + $0x80] sm:$0xf]
      %v1624 = vld [vmem:[%s1590 + $0x84] sm:$0xf]
      %v1625 = vld [vmem:[%s1590 + $0x88] sm:$0xf]
      %v1626 = vld [vmem:[%s1590 + $0x8c] sm:$0xf]
      %v1627 = vld [vmem:[%s1590 + $0x90] sm:$0xf]
      %v1628 = vld [vmem:[%s1590 + $0x94] sm:$0xf]
      %v1629 = vld [vmem:[%s1590 + $0x98] sm:$0xf]
      %v1630 = vld [vmem:[%s1590 + $0x9c] sm:$0xf]
      %v1631 = vld [vmem:[%s1590 + $0xa0] sm:$0xf]
      %v1632 = vld [vmem:[%s1590 + $0xa4] sm:$0xf]
      %v1633 = vld [vmem:[%s1590 + $0xa8] sm:$0xf]
      %v1634 = vld [vmem:[%s1590 + $0xac] sm:$0xf]
      %v1635 = vld [vmem:[%s1590 + $0xb0] sm:$0xf]
      %v1636 = vld [vmem:[%s1590 + $0xb4] sm:$0xf]
      %v1637 = vld [vmem:[%s1590 + $0xb8] sm:$0xf]
      %v1638 = vld [vmem:[%s1590 + $0xbc] sm:$0xf]
      %vm1659 = vcmask 1046528
      %v1660 = vrot.slane %v666, 1
      %v1661 = vrot.slane %v676, 1
      %v1662 = vsel %vm1659, %v1660, %v1661
      %v1663 = vrot.slane %v667, 1
      %v1664 = vrot.slane %v677, 1
      %v1665 = vsel %vm1659, %v1663, %v1664
      %v1666 = vrot.slane %v668, 1
      %v1667 = vrot.slane %v678, 1
      %v1668 = vsel %vm1659, %v1666, %v1667
      %v1669 = vrot.slane %v669, 1
      %v1670 = vrot.slane %v679, 1
      %v1671 = vsel %vm1659, %v1669, %v1670
      %v1672 = vrot.slane %v670, 1
      %v1673 = vrot.slane %v680, 1
      %v1674 = vsel %vm1659, %v1672, %v1673
      %v1675 = vrot.slane %v671, 1
      %v1676 = vrot.slane %v681, 1
      %v1677 = vsel %vm1659, %v1675, %v1676
      %v1678 = vrot.slane %v672, 1
      %v1679 = vrot.slane %v682, 1
      %v1680 = vsel %vm1659, %v1678, %v1679
      %v1681 = vrot.slane %v673, 1
      %v1682 = vrot.slane %v683, 1
      %v1683 = vsel %vm1659, %v1681, %v1682
      %v1684 = vrot.slane %v674, 1
      %v1685 = vrot.slane %v684, 1
      %v1686 = vsel %vm1659, %v1684, %v1685
      %v1687 = vrot.slane %v675, 1
      %v1688 = vrot.slane %v685, 1
      %v1689 = vsel %vm1659, %v1687, %v1688
      %v1748 = vunpack.c.l.b16 %v1591
      %v1749 = vunpack.c.l.b16 %v1592
      %v1750 = vunpack.c.l.b16 %v1593
      %v1751 = vunpack.c.l.b16 %v1594
      %v1752 = vunpack.c.l.b16 %v1595
      %v1753 = vunpack.c.l.b16 %v1596
      %v1754 = vunpack.c.l.b16 %v1597
      %v1755 = vunpack.c.l.b16 %v1598
      %v1756 = vunpack.c.l.b16 %v1599
      %v1757 = vunpack.c.l.b16 %v1600
      %v1758 = vunpack.c.l.b16 %v1601
      %v1759 = vunpack.c.l.b16 %v1602
      %v1760 = vunpack.c.l.b16 %v1603
      %v1761 = vunpack.c.l.b16 %v1604
      %v1762 = vunpack.c.l.b16 %v1605
      %v1763 = vunpack.c.l.b16 %v1606
      %v1764 = vunpack.c.l.b16 %v1607
      %v1765 = vunpack.c.l.b16 %v1608
      %v1766 = vunpack.c.l.b16 %v1609
      %v1767 = vunpack.c.l.b16 %v1610
      %v1768 = vunpack.c.l.b16 %v1611
      %v1769 = vunpack.c.l.b16 %v1612
      %v1770 = vunpack.c.l.b16 %v1613
      %v1771 = vunpack.c.l.b16 %v1614
      %v1772 = vunpack.c.l.b16 %v1615
      %v1773 = vunpack.c.l.b16 %v1616
      %v1774 = vunpack.c.l.b16 %v1617
      %v1775 = vunpack.c.l.b16 %v1618
      %v1776 = vunpack.c.l.b16 %v1619
      %v1777 = vunpack.c.l.b16 %v1620
      %v1778 = vunpack.c.l.b16 %v1621
      %v1779 = vunpack.c.l.b16 %v1622
      %v1780 = vunpack.c.l.b16 %v1623
      %v1781 = vunpack.c.l.b16 %v1624
      %v1782 = vunpack.c.l.b16 %v1625
      %v1783 = vunpack.c.l.b16 %v1626
      %v1784 = vunpack.c.l.b16 %v1627
      %v1785 = vunpack.c.l.b16 %v1628
      %v1786 = vunpack.c.l.b16 %v1629
      %v1787 = vunpack.c.l.b16 %v1630
      %v1788 = vunpack.c.l.b16 %v1631
      %v1789 = vunpack.c.l.b16 %v1632
      %v1790 = vunpack.c.l.b16 %v1633
      %v1791 = vunpack.c.l.b16 %v1634
      %v1792 = vunpack.c.l.b16 %v1635
      %v1793 = vunpack.c.l.b16 %v1636
      %v1794 = vunpack.c.l.b16 %v1637
      %v1795 = vunpack.c.l.b16 %v1638
      %v1796 = vpack.c.b16 %v1749, %v1748
      %v1797 = vpack.c.b16 %v1751, %v1750
      %v1798 = vpack.c.b16 %v1753, %v1752
      %v1799 = vpack.c.b16 %v1755, %v1754
      %v1800 = vpack.c.b16 %v1757, %v1756
      %v1801 = vpack.c.b16 %v1759, %v1758
      %v1802 = vpack.c.b16 %v1761, %v1760
      %v1803 = vpack.c.b16 %v1763, %v1762
      %v1804 = vpack.c.b16 %v1765, %v1764
      %v1805 = vpack.c.b16 %v1767, %v1766
      %v1806 = vpack.c.b16 %v1769, %v1768
      %v1807 = vpack.c.b16 %v1771, %v1770
      %v1808 = vpack.c.b16 %v1773, %v1772
      %v1809 = vpack.c.b16 %v1775, %v1774
      %v1810 = vpack.c.b16 %v1777, %v1776
      %v1811 = vpack.c.b16 %v1779, %v1778
      %v1812 = vpack.c.b16 %v1781, %v1780
      %v1813 = vpack.c.b16 %v1783, %v1782
      %v1814 = vpack.c.b16 %v1785, %v1784
      %v1815 = vpack.c.b16 %v1787, %v1786
      %v1816 = vpack.c.b16 %v1789, %v1788
      %v1817 = vpack.c.b16 %v1791, %v1790
      %v1818 = vpack.c.b16 %v1793, %v1792
      %v1819 = vpack.c.b16 %v1795, %v1794
      %1844 = vmatprep.subr.bf16.mxu0 0
      %1845 = vmatpush1.bf16.msra.mxu0 %v1803
      %1846 = vmatprep.subr.bf16.mxu0 0
      %1847 = vmatpush1.bf16.msra.mxu0 %v1802
      %1848 = vmatprep.subr.bf16.mxu0 0
      %1849 = vmatpush1.bf16.msra.mxu0 %v1801
      %1850 = vmatprep.subr.bf16.mxu0 0
      %1851 = vmatpush1.bf16.msra.mxu0 %v1800
      %1852 = vmatprep.subr.bf16.mxu0 0
      %1853 = vmatpush1.bf16.msra.mxu0 %v1799
      %1854 = vmatprep.subr.bf16.mxu0 0
      %1855 = vmatpush1.bf16.msra.mxu0 %v1798
      %1856 = vmatprep.subr.bf16.mxu0 0
      %1857 = vmatpush1.bf16.msra.mxu0 %v1797
      %1858 = vmatprep.subr.bf16.mxu0 0
      %1859 = vmatpush1.bf16.msra.mxu0 %v1796
      %1860 = vmatprep.subr.bf16.mxu0 0
      %1861 = vmatpush2.bf16.msra.mxu0 %v1811
      %1862 = vmatprep.subr.bf16.mxu0 0
      %1863 = vmatpush2.bf16.msra.mxu0 %v1810
      %1864 = vmatprep.subr.bf16.mxu0 0
      %1865 = vmatpush2.bf16.msra.mxu0 %v1809
      %1866 = vmatprep.subr.bf16.mxu0 0
      %1867 = vmatpush2.bf16.msra.mxu0 %v1808
      %1868 = vmatprep.subr.bf16.mxu0 0
      %1869 = vmatpush2.bf16.msra.mxu0 %v1807
      %1870 = vmatprep.subr.bf16.mxu0 0
      %1871 = vmatpush2.bf16.msra.mxu0 %v1806
      %1872 = vmatprep.subr.bf16.mxu0 0
      %1873 = vmatpush2.bf16.msra.mxu0 %v1805
      %1874 = vmatprep.subr.bf16.mxu0 0
      %1875 = vmatpush2.bf16.msra.mxu0 %v1804
      %1876 = vmatprep.mubr.bf16.mxu0 %v1665
      %1877 = vmatmul.mubr.bf16.gmra.mxu0 %v1662
      %v1878 = vpop.f32.mrf.mxu0
      %v1879 = vadd.f32 0.0, %v1878
      %v1880 = vpop.f32.mrf.mxu0
      %v1881 = vpop.f32.mrf.mxu0
      %v1882 = vadd.f32 0.0, %v1881
      %v1883 = vpop.f32.mrf.mxu0
      %1884 = vmatprep.mubr.bf16.mxu0 %v1668
      %1885 = vmatmul.mubr.bf16.gmra.mxu0 %v1665
      %v1886 = vpop.f32.mrf.mxu0
      %v1887 = vadd.f32 0.0, %v1886
      %v1888 = vpop.f32.mrf.mxu0
      %v1889 = vpop.f32.mrf.mxu0
      %v1890 = vadd.f32 0.0, %v1889
      %v1891 = vpop.f32.mrf.mxu0
      %1892 = vmatprep.mubr.bf16.mxu0 %v1671
      %1893 = vmatmul.mubr.bf16.gmra.mxu0 %v1668
      %v1894 = vpop.f32.mrf.mxu0
      %v1895 = vadd.f32 0.0, %v1894
      %v1896 = vpop.f32.mrf.mxu0
      %v1897 = vpop.f32.mrf.mxu0
      %v1898 = vadd.f32 0.0, %v1897
      %v1899 = vpop.f32.mrf.mxu0
      %1900 = vmatprep.mubr.bf16.mxu0 %v1674
      %1901 = vmatmul.mubr.bf16.gmra.mxu0 %v1671
      %v1902 = vpop.f32.mrf.mxu0
      %v1903 = vadd.f32 0.0, %v1902
      %v1904 = vpop.f32.mrf.mxu0
      %v1905 = vpop.f32.mrf.mxu0
      %v1906 = vadd.f32 0.0, %v1905
      %v1907 = vpop.f32.mrf.mxu0
      %1908 = vmatprep.mubr.bf16.mxu0 %v1677
      %1909 = vmatmul.mubr.bf16.gmra.mxu0 %v1674
      %v1910 = vpop.f32.mrf.mxu0
      %v1911 = vadd.f32 0.0, %v1910
      %v1912 = vpop.f32.mrf.mxu0
      %v1913 = vpop.f32.mrf.mxu0
      %v1914 = vadd.f32 0.0, %v1913
      %v1915 = vpop.f32.mrf.mxu0
      %1916 = vmatprep.mubr.bf16.mxu0 %v1680
      %1917 = vmatmul.mubr.bf16.gmra.mxu0 %v1677
      %v1918 = vpop.f32.mrf.mxu0
      %v1919 = vadd.f32 0.0, %v1918
      %v1920 = vpop.f32.mrf.mxu0
      %v1921 = vpop.f32.mrf.mxu0
      %v1922 = vadd.f32 0.0, %v1921
      %v1923 = vpop.f32.mrf.mxu0
      %1924 = vmatprep.mubr.bf16.mxu0 %v1683
      %1925 = vmatmul.mubr.bf16.gmra.mxu0 %v1680
      %v1926 = vpop.f32.mrf.mxu0
      %v1927 = vadd.f32 0.0, %v1926
      %v1928 = vpop.f32.mrf.mxu0
      %v1929 = vpop.f32.mrf.mxu0
      %v1930 = vadd.f32 0.0, %v1929
      %v1931 = vpop.f32.mrf.mxu0
      %1932 = vmatprep.mubr.bf16.mxu0 %v1686
      %1933 = vmatmul.mubr.bf16.gmra.mxu0 %v1683
      %v1934 = vpop.f32.mrf.mxu0
      %v1935 = vadd.f32 0.0, %v1934
      %v1936 = vpop.f32.mrf.mxu0
      %v1937 = vpop.f32.mrf.mxu0
      %v1938 = vadd.f32 0.0, %v1937
      %v1939 = vpop.f32.mrf.mxu0
      %1940 = vdwg.mxu0
      %1941 = vmatprep.subr.bf16.mxu0 0
      %1942 = vmatpush1.bf16.msra.mxu0 %v1819
      %1943 = vmatprep.subr.bf16.mxu0 0
      %1944 = vmatpush1.bf16.msra.mxu0 %v1818
      %1945 = vmatprep.subr.bf16.mxu0 0
      %1946 = vmatpush1.bf16.msra.mxu0 %v1817
      %1947 = vmatprep.subr.bf16.mxu0 0
      %1948 = vmatpush1.bf16.msra.mxu0 %v1816
      %1949 = vmatprep.subr.bf16.mxu0 0
      %1950 = vmatpush1.bf16.msra.mxu0 %v1815
      %1951 = vmatprep.subr.bf16.mxu0 0
      %1952 = vmatpush1.bf16.msra.mxu0 %v1814
      %1953 = vmatprep.subr.bf16.mxu0 0
      %1954 = vmatpush1.bf16.msra.mxu0 %v1813
      %1955 = vmatprep.subr.bf16.mxu0 0
      %1956 = vmatpush1.bf16.msra.mxu0 %v1812
      %1957 = vmatprep.subr.bf16.mxu0 0
      %1958 = vmatpush2.bf16.msra.mxu0 0
      %1959 = vmatprep.subr.bf16.mxu0 0
      %1960 = vmatpush2.bf16.msra.mxu0 0
      %1961 = vmatprep.subr.bf16.mxu0 0
      %1962 = vmatpush2.bf16.msra.mxu0 0
      %1963 = vmatprep.subr.bf16.mxu0 0
      %1964 = vmatpush2.bf16.msra.mxu0 0
      %1965 = vmatprep.subr.bf16.mxu0 0
      %1966 = vmatpush2.bf16.msra.mxu0 0
      %1967 = vmatprep.subr.bf16.mxu0 0
      %1968 = vmatpush2.bf16.msra.mxu0 0
      %1969 = vmatprep.subr.bf16.mxu0 0
      %1970 = vmatpush2.bf16.msra.mxu0 0
      %1971 = vmatprep.subr.bf16.mxu0 0
      %1972 = vmatpush2.bf16.msra.mxu0 0
      %1973 = vmatprep.mubr.bf16.mxu0 0
      %1974 = vmatmul.mubr.bf16.gmra.mxu0 %v1668
      %v1975 = vpop.f32.mrf.mxu0
      %v1976 = vadd.f32 %v1879, %v1975
      %v1977 = vpop.f32.mrf.mxu0
      %v1978 = vpop.f32.mrf.mxu0
      %v1979 = vadd.f32 %v1882, %v1978
      %v1980 = vpop.f32.mrf.mxu0
      %1981 = vmatprep.mubr.bf16.mxu0 0
      %1982 = vmatmul.mubr.bf16.gmra.mxu0 %v1671
      %v1983 = vpop.f32.mrf.mxu0
      %v1984 = vadd.f32 %v1887, %v1983
      %v1985 = vpop.f32.mrf.mxu0
      %v1986 = vpop.f32.mrf.mxu0
      %v1987 = vadd.f32 %v1890, %v1986
      %v1988 = vpop.f32.mrf.mxu0
      %1989 = vmatprep.mubr.bf16.mxu0 0
      %1990 = vmatmul.mubr.bf16.gmra.mxu0 %v1674
      %v1991 = vpop.f32.mrf.mxu0
      %v1992 = vadd.f32 %v1895, %v1991
      %v1993 = vpop.f32.mrf.mxu0
      %v1994 = vpop.f32.mrf.mxu0
      %v1995 = vadd.f32 %v1898, %v1994
      %v1996 = vpop.f32.mrf.mxu0
      %1997 = vmatprep.mubr.bf16.mxu0 0
      %1998 = vmatmul.mubr.bf16.gmra.mxu0 %v1677
      %v1999 = vpop.f32.mrf.mxu0
      %v2000 = vadd.f32 %v1903, %v1999
      %v2001 = vpop.f32.mrf.mxu0
      %v2002 = vpop.f32.mrf.mxu0
      %v2003 = vadd.f32 %v1906, %v2002
      %v2004 = vpop.f32.mrf.mxu0
      %2005 = vmatprep.mubr.bf16.mxu0 0
      %2006 = vmatmul.mubr.bf16.gmra.mxu0 %v1680
      %v2007 = vpop.f32.mrf.mxu0
      %v2008 = vadd.f32 %v1911, %v2007
      %v2009 = vpop.f32.mrf.mxu0
      %v2010 = vpop.f32.mrf.mxu0
      %v2011 = vadd.f32 %v1914, %v2010
      %v2012 = vpop.f32.mrf.mxu0
      %2013 = vmatprep.mubr.bf16.mxu0 0
      %2014 = vmatmul.mubr.bf16.gmra.mxu0 %v1683
      %v2015 = vpop.f32.mrf.mxu0
      %v2016 = vadd.f32 %v1919, %v2015
      %v2017 = vpop.f32.mrf.mxu0
      %v2018 = vpop.f32.mrf.mxu0
      %v2019 = vadd.f32 %v1922, %v2018
      %v2020 = vpop.f32.mrf.mxu0
      %2021 = vmatprep.mubr.bf16.mxu0 0
      %2022 = vmatmul.mubr.bf16.gmra.mxu0 %v1686
      %v2023 = vpop.f32.mrf.mxu0
      %v2024 = vadd.f32 %v1927, %v2023
      %v2025 = vpop.f32.mrf.mxu0
      %v2026 = vpop.f32.mrf.mxu0
      %v2027 = vadd.f32 %v1930, %v2026
      %v2028 = vpop.f32.mrf.mxu0
      %2029 = vmatprep.mubr.bf16.mxu0 0
      %2030 = vmatmul.mubr.bf16.gmra.mxu0 %v1689
      %v2031 = vpop.f32.mrf.mxu0
      %v2032 = vadd.f32 %v1935, %v2031
      %v2033 = vpop.f32.mrf.mxu0
      %v2034 = vpop.f32.mrf.mxu0
      %v2035 = vadd.f32 %v1938, %v2034
      %v2036 = vpop.f32.mrf.mxu0
      %2037 = vdwg.mxu0
      %v2038 = vadd.f32 %v1528, %v1976
      %v2039 = vadd.f32 %v1531, %v1979
      %v2040 = vadd.f32 %v1536, %v1984
      %v2041 = vadd.f32 %v1539, %v1987
      %v2042 = vadd.f32 %v1544, %v1992
      %v2043 = vadd.f32 %v1547, %v1995
      %v2044 = vadd.f32 %v1552, %v2000
      %v2045 = vadd.f32 %v1555, %v2003
      %v2046 = vadd.f32 %v1560, %v2008
      %v2047 = vadd.f32 %v1563, %v2011
      %v2048 = vadd.f32 %v1568, %v2016
      %v2049 = vadd.f32 %v1571, %v2019
      %v2050 = vadd.f32 %v1576, %v2024
      %v2051 = vadd.f32 %v1579, %v2027
      %v2052 = vadd.f32 %v1584, %v2032
      %v2053 = vadd.f32 %v1587, %v2035
      %2054 = vst [vmem:[%s215] sm:$0xff] %v2038
      %2055 = vst [vmem:[%s215 + $0x8] sm:$0xff] %v2039
      %2056 = vst [vmem:[%s215 + $0x10] sm:$0xff] %v2040
      %2057 = vst [vmem:[%s215 + $0x18] sm:$0xff] %v2041
      %2058 = vst [vmem:[%s215 + $0x20] sm:$0xff] %v2042
      %2059 = vst [vmem:[%s215 + $0x28] sm:$0xff] %v2043
      %2060 = vst [vmem:[%s215 + $0x30] sm:$0xff] %v2044
      %2061 = vst [vmem:[%s215 + $0x38] sm:$0xff] %v2045
      %2062 = vst [vmem:[%s215 + $0x40] sm:$0xff] %v2046
      %2063 = vst [vmem:[%s215 + $0x48] sm:$0xff] %v2047
      %2064 = vst [vmem:[%s215 + $0x50] sm:$0xff] %v2048
      %2065 = vst [vmem:[%s215 + $0x58] sm:$0xff] %v2049
      %2066 = vst [vmem:[%s215 + $0x60] sm:$0xff] %v2050
      %2067 = vst [vmem:[%s215 + $0x68] sm:$0xff] %v2051
      %2068 = vst [vmem:[%s215 + $0x70] sm:$0xff] %v2052
      %2069 = vst [vmem:[%s215 + $0x78] sm:$0xff] %v2053
      %v2070 = vadd.f32 %v2038, %v2039
      %v2071 = vadd.f32 %v2070, %v2040
      %v2072 = vadd.f32 %v2071, %v2041
      %v2073 = vadd.f32 %v2072, %v2042
      %v2074 = vadd.f32 %v2073, %v2043
      %v2075 = vadd.f32 %v2074, %v2044
      %v2076 = vadd.f32 %v2075, %v2045
      %v2077 = vadd.f32 %v2076, %v2046
      %v2078 = vadd.f32 %v2077, %v2047
      %v2079 = vadd.f32 %v2078, %v2048
      %v2080 = vadd.f32 %v2079, %v2049
      %v2081 = vadd.f32 %v2080, %v2050
      %v2082 = vadd.f32 %v2081, %v2051
      %v2083 = vadd.f32 %v2082, %v2052
      %v2084 = vadd.f32 %v2083, %v2053
      %v2085 = vrot.slane %v2084, 4
      %v2086 = vadd.f32 %v2084, %v2085
      %v2087 = vrot.slane %v2086, 2
      %v2088 = vadd.f32 %v2086, %v2087
      %v2089 = vrot.slane %v2088, 1
      %v2090 = vadd.f32 %v2088, %v2089
      %v2091 = vmul.f32 %v2038, %v2038
      %v2092 = vmul.f32 %v2039, %v2039
      %v2093 = vmul.f32 %v2040, %v2040
      %v2094 = vmul.f32 %v2041, %v2041
      %v2095 = vmul.f32 %v2042, %v2042
      %v2096 = vmul.f32 %v2043, %v2043
      %v2097 = vmul.f32 %v2044, %v2044
      %v2098 = vmul.f32 %v2045, %v2045
      %v2099 = vmul.f32 %v2046, %v2046
      %v2100 = vmul.f32 %v2047, %v2047
      %v2101 = vmul.f32 %v2048, %v2048
      %v2102 = vmul.f32 %v2049, %v2049
      %v2103 = vmul.f32 %v2050, %v2050
      %v2104 = vmul.f32 %v2051, %v2051
      %v2105 = vmul.f32 %v2052, %v2052
      %v2106 = vmul.f32 %v2053, %v2053
      %v2107 = vadd.f32 %v2091, %v2092
      %v2108 = vadd.f32 %v2107, %v2093
      %v2109 = vadd.f32 %v2108, %v2094
      %v2110 = vadd.f32 %v2109, %v2095
      %v2111 = vadd.f32 %v2110, %v2096
      %v2112 = vadd.f32 %v2111, %v2097
      %v2113 = vadd.f32 %v2112, %v2098
      %v2114 = vadd.f32 %v2113, %v2099
      %v2115 = vadd.f32 %v2114, %v2100
      %v2116 = vadd.f32 %v2115, %v2101
      %v2117 = vadd.f32 %v2116, %v2102
      %v2118 = vadd.f32 %v2117, %v2103
      %v2119 = vadd.f32 %v2118, %v2104
      %v2120 = vadd.f32 %v2119, %v2105
      %v2121 = vadd.f32 %v2120, %v2106
      %v2122 = vrot.slane %v2121, 4
      %v2123 = vadd.f32 %v2121, %v2122
      %v2124 = vrot.slane %v2123, 2
      %v2125 = vadd.f32 %v2123, %v2124
      %v2126 = vrot.slane %v2125, 1
      %v2127 = vadd.f32 %v2125, %v2126
      %vm2128 = vcmask 1040384
      %v2129 = vsel %vm2128, %v2090, %v2127
      %2130 = vst [vmem:[%s224] sm:$0x3] %v2129
      %s2131 = smul.u32 8, %s22
      %p2132 = scmp.lt.s32.totalorder %s21, 1
      %s2133 = scalar_select %p2132, %s21, 1
      %p2134 = scmp.lt.s32.totalorder %s2131, 15
      %s2135 = scalar_select %p2134, %s2131, 15
      %s2136 = smul.addr %s2135, 2
      %s2137 = smul.addr %s2133, 32
      %s2138 = sadd.s32 %s2136, %s2137
      %s2139 = smul.addr %s2138, 8
      %s2140 = scalar_lea.vmem %s4, %s2139
      %p2141 = scmp.lt.s32.totalorder %s21, 1
      %s2142 = scalar_select %p2141, %s21, 1
      %p2143 = scmp.lt.s32.totalorder %s22, 1
      %s2144 = scalar_select %p2143, %s22, 1
      %s2145 = smul.addr %s2142, 2
      %s2146 = sadd.s32 %s2144, %s2145
      %s2147 = smul.addr %s2146, 2
      %s2148 = scalar_lea.vmem %s5, %s2147
      // Predicated region
      $region151: #{unet_block_forward.4} parent=31 // pred_check
        %p2149 = pneg %p112
      $region152: #{unet_block_forward.4} parent=31 // pred_check_branch
        %2151 = sbr.rel (%p2149) target = $region154
      $region153: #{unet_block_forward.4} parent=31 // pred_region
        %s2152 = smul.u32 8, %s22
      $region154: #{unet_block_forward.4} parent=31 // pred_fallthru
        _
      // Predicated region
      $region155: #{unet_block_forward.4} parent=31 // pred_check
        %p2153 = pneg %p140
      $region156: #{unet_block_forward.4} parent=31 // pred_check_branch
        %2155 = sbr.rel (%p2153) target = $region158
      $region157: #{unet_block_forward.4} parent=31 // pred_region
        _
      $region158: #{unet_block_forward.4} parent=31 // pred_fallthru
        _
    $region32: #{unet_block_forward.4} parent=5 // pred_fallthru
      _
    %p2156 = scmp.le.s32.totalorder 2, %s12
    // Predicated region
    $region159: #{unet_block_forward.4} parent=5 // pred_check
      %p2157 = pneg %p2156
    $region160: #{unet_block_forward.4} parent=5 // pred_check_branch
      %2159 = sbr.rel (%p2157) target = $region162
    $region161: #{unet_block_forward.4} parent=5 // pred_region
      %s2160 = ssub.s32 %s12, 2
      // Predicated region
      $region163: #{unet_block_forward.4} parent=161 // pred_check
        %p2161 = pneg %p118
      $region164: #{unet_block_forward.4} parent=161 // pred_check_branch
        %2163 = sbr.rel (%p2161) target = $region166
      $region165: #{unet_block_forward.4} parent=161 // pred_region
        %s2164 = smul.u32 8, %s24
        %p2165 = scmp.lt.s32.totalorder %s23, 1
        %s2166 = scalar_select %p2165, %s23, 1
        %p2167 = scmp.lt.s32.totalorder %s2164, 15
        %s2168 = scalar_select %p2167, %s2164, 15
        %s2169 = smul.addr %s2168, 2
        %s2170 = smul.addr %s2166, 32
        %s2171 = sadd.s32 %s2169, %s2170
        %s2172 = smul.addr %s2171, 8
        %s2173 = scalar_lea.vmem %s4, %s2172
      $region166: #{unet_block_forward.4} parent=161 // pred_fallthru
        _
      // Predicated region
      $region167: #{unet_block_forward.4} parent=161 // pred_check
        %p2174 = pneg %p146
      $region168: #{unet_block_forward.4} parent=161 // pred_check_branch
        %2176 = sbr.rel (%p2174) target = $region170
      $region169: #{unet_block_forward.4} parent=161 // pred_region
        %p2177 = scmp.lt.s32.totalorder %s23, 1
        %s2178 = scalar_select %p2177, %s23, 1
        %p2179 = scmp.lt.s32.totalorder %s24, 1
        %s2180 = scalar_select %p2179, %s24, 1
        %s2181 = smul.addr %s2178, 2
        %s2182 = sadd.s32 %s2180, %s2181
        %s2183 = smul.addr %s2182, 2
        %s2184 = scalar_lea.vmem %s5, %s2183
      $region170: #{unet_block_forward.4} parent=161 // pred_fallthru
        _
    $region162: #{unet_block_forward.4} parent=5 // pred_fallthru
      _
  $region6: #{unet_block_forward.4} parent=0 // loop_footer
    %s16 = sadd.s32 1, %s12
  $region7: #{unet_block_forward.4} parent=0 // loop_footer_branch
    %11 = sbr.rel target = $region3
  $region8: #{unet_block_forward.4} parent=0 // loop_exit
    _
  %2185 = vsyncmov [#allocation3]
  %s2186 = vpop.sfrf %2185
  %p2187 = scmp.eq.s32.totalorder %s2186, 0
  %p2188 = pneg %p2187
  %2190 = shalt.err (%p2188)
  %s2191 = scalar_lea.sflag [#allocation3], 1
  %2192 = vsyncmov %s2191
  %s2193 = vpop.sfrf %2192
  %p2194 = scmp.eq.s32.totalorder %s2193, 0
  %p2195 = pneg %p2194
  %2197 = shalt.err (%p2195)
  %s2198 = scalar_lea.sflag [#allocation3], 2
  %2199 = vsyncmov %s2198
  %s2200 = vpop.sfrf %2199
  %p2201 = scmp.eq.s32.totalorder %s2200, 0
  %p2202 = pneg %p2201
  %2204 = shalt.err (%p2202)

</llo_original>
